<compile_context>
chip_gen: v7x
topology: tpu7x:2x2x1
jax: 0.10.0
libtpu: 0.0.40
codegen_flags: <defaults>
</compile_context>

<pallas_src>
import functools

import jax
import jax.numpy as jnp
from jax.experimental import pallas as pl
from jax.experimental.pallas import tpu as pltpu


# ------------------------- fused kernel -------------------------
def fused_aux_kernel(x_ref, wc_ref, scale_ref, shift_ref,
                     w1_ref, b1_ref, w2_ref, b2_ref,
                     o_ref, feat_ref):
    """Grid: (1024 // tile_h,) over the fc1 hidden dimension (reduction axis for fc2).

    x_ref     : (16*N_pad, C_pad)  pooled input, rows ordered p*N_pad + n, bf16
    wc_ref    : (C_pad, 128)       1x1 conv weight (transposed), bf16
    scale_ref : (1, 128)           folded BN scale, f32
    shift_ref : (1, 128)           folded BN shift, f32
    w1_ref    : (2048, tile_h)     fc1 weight slab (pre-tiled), rows ordered p*128 + c_out, bf16
    b1_ref    : (1, tile_h)        f32
    w2_ref    : (tile_h, NC_pad)   fc2 weight slab, bf16
    b2_ref    : (1, NC_pad)        f32
    o_ref     : (N_pad, NC_pad)    output block (resident accumulator across k), f32
    feat_ref  : (N_pad, 2048)      VMEM scratch: flattened conv features, cols p*128 + c_out, bf16
    """
    k = pl.program_id(0)
    n_pad = feat_ref.shape[0]

    @pl.when(k == 0)
    def _():
        # 1x1 conv == channel matmul (bf16 x bf16 -> f32), then folded BN (eval) + ReLU.
        y = jnp.dot(x_ref[...], wc_ref[...],
                    preferred_element_type=jnp.float32)            # (16*N_pad, 128) f32
        y = jnp.maximum(y * scale_ref[...] + shift_ref[...], 0.0)
        # Scatter row-blocks (p, n) into the flattened (N_pad, 2048) feature map.
        # n_pad is a multiple of 8, so each copy is full-sublane / unmasked.
        for p in range(16):
            feat_ref[:, p * 128:(p + 1) * 128] = (
                y[p * n_pad:(p + 1) * n_pad, :].astype(jnp.bfloat16))
        # Zero the resident output accumulator.
        o_ref[...] = jnp.zeros_like(o_ref)

    # fc1 hidden tile (bf16 x bf16 -> f32) + bias + ReLU.
    h = jnp.dot(feat_ref[...], w1_ref[...],
                preferred_element_type=jnp.float32)                # (N_pad, tile_h) f32
    h = jnp.maximum(h + b1_ref[...], 0.0)
    # TODO(synk): F.dropout(p=0.7) is identity in eval mode; training-mode dropout not implemented.

    # fc2 partial contraction over this hidden tile, accumulated in the output block.
    o_ref[...] += jnp.dot(h.astype(jnp.bfloat16), w2_ref[...],
                          preferred_element_type=jnp.float32)

    @pl.when(k == pl.num_programs(0) - 1)
    def _():
        o_ref[...] = jax.nn.sigmoid(o_ref[...] + b2_ref[...])


# ------------------------- one-time parameter prep -------------------------
def _round_up(x, m):
    return (x + m - 1) // m * m


def prepare_params(params, num_classes, tile_h=512):
    """One-time weight preparation (call at parameter-load time, NOT per forward):
    fold BN stats, permute fc1 rows to the kernel's p*128+c feature order, transpose,
    pre-tile w1 into contiguous per-grid-step slabs, pad C_in / num_classes to multiples
    of 128, and cast matmul weights to bf16.

    tile_h: hidden-dim tile (grid = 1024 // tile_h). 512 -> 2-step grid (DMA/compute
    overlap, good default for v5e/v6e); 1024 -> single step (lowest per-step overhead,
    good for v7x at small batch)."""
    hidden = 1024
    assert hidden % tile_h == 0 and tile_h % 128 == 0
    k_tiles = hidden // tile_h

    conv_w = params["conv_w"]
    C_in = conv_w.shape[1]
    C_pad = _round_up(C_in, 128)
    NC_pad = _round_up(num_classes, 128)

    wc = conv_w.reshape(128, C_in).T                       # (C_in, 128)
    wc = jnp.pad(wc, ((0, C_pad - C_in), (0, 0)))          # (C_pad, 128)

    scale = params["bn_gamma"] / jnp.sqrt(params["bn_var"] + 1e-3)
    shift = params["bn_beta"] - params["bn_mean"] * scale

    # torch.flatten on (N,128,4,4) orders features as c_out*16 + p; the kernel feature
    # layout is p*128 + c_out, so permute the fc1 weight rows accordingly (once), then
    # pre-tile along the hidden dim so each grid step's slab is one contiguous DMA.
    w1 = params["fc1_w"].reshape(hidden, 128, 16).transpose(2, 1, 0).reshape(2048, hidden)
    w1 = w1.reshape(2048, k_tiles, tile_h).transpose(1, 0, 2)          # (k_tiles, 2048, tile_h)

    w2 = jnp.pad(params["fc2_w"].T, ((0, 0), (0, NC_pad - num_classes)))   # (1024, NC_pad)
    b2 = jnp.pad(params["fc2_b"], (0, NC_pad - num_classes))

    return {
        "wc": wc.astype(jnp.bfloat16),
        "scale": scale.reshape(1, 128).astype(jnp.float32),
        "shift": shift.reshape(1, 128).astype(jnp.float32),
        "w1": w1.astype(jnp.bfloat16),
        "b1": params["fc1_b"].reshape(1, hidden).astype(jnp.float32),
        "w2": w2.astype(jnp.bfloat16),
        "b2": b2.reshape(1, NC_pad).astype(jnp.float32),
    }


# ------------------------- forward -------------------------
@functools.partial(jax.jit, static_argnames=("num_classes",))
def inception_aux_forward(x, prep, num_classes):
    N, C_in, H, W = x.shape
    C_pad = prep["wc"].shape[0]
    NC_pad = prep["w2"].shape[1]
    k_tiles, _, tile_h = prep["w1"].shape
    N_pad = _round_up(N, 8)
    # TODO(synk): exact uniform-bin pooling only; general adaptive_avg_pool2d for H,W not
    # divisible by 4 (e.g. torchvision's 14x14 aux feature maps) is not implemented.
    assert H % 4 == 0 and W % 4 == 0

    # adaptive_avg_pool2d to (4,4): exact uniform binning for divisible H,W (host glue, tiny).
    xp = x.reshape(N, C_in, 4, H // 4, 4, W // 4).mean(axis=(3, 5))   # (N, C_in, 4, 4)
    # rows ordered (p, n): row index = p*N_pad + n (batch padded to 8 sublanes);
    # cols = input channels (zero padded to C_pad); bf16 for the MXU fast path.
    xr = xp.reshape(N, C_in, 16).transpose(2, 0, 1)                   # (16, N, C_in)
    xr = jnp.pad(xr, ((0, 0), (0, N_pad - N), (0, C_pad - C_in)))
    xr = xr.reshape(16 * N_pad, C_pad).astype(jnp.bfloat16)

    out = pl.pallas_call(
        fused_aux_kernel,
        out_shape=jax.ShapeDtypeStruct((N_pad, NC_pad), jnp.float32),
        grid_spec=pltpu.PrefetchScalarGridSpec(
            num_scalar_prefetch=0,
            grid=(k_tiles,),
            in_specs=[
                pl.BlockSpec((16 * N_pad, C_pad), lambda k: (0, 0)),
                pl.BlockSpec((C_pad, 128), lambda k: (0, 0)),
                pl.BlockSpec((1, 128), lambda k: (0, 0)),
                pl.BlockSpec((1, 128), lambda k: (0, 0)),
                pl.BlockSpec((None, 2048, tile_h), lambda k: (k, 0, 0)),
                pl.BlockSpec((1, tile_h), lambda k: (0, k)),
                pl.BlockSpec((tile_h, NC_pad), lambda k: (k, 0)),
                pl.BlockSpec((1, NC_pad), lambda k: (0, 0)),
            ],
            out_specs=pl.BlockSpec((N_pad, NC_pad), lambda k: (0, 0)),
            scratch_shapes=[pltpu.VMEM((N_pad, 2048), jnp.bfloat16)],
        ),
        compiler_params=pltpu.CompilerParams(dimension_semantics=("arbitrary",)),
    )(xr, prep["wc"], prep["scale"], prep["shift"],
      prep["w1"], prep["b1"], prep["w2"], prep["b2"])
    return out[:N, :num_classes]


# ------------------------- pure-JAX reference -------------------------
def reference(x, params, num_classes):
    """Reference of the PyTorch eval-mode forward, modelling the same bf16 rounding of
    weights AND matmul LHS activations as the kernel path (f32 accumulation), so the
    comparison isolates kernel correctness."""
    q = lambda a: a.astype(jnp.bfloat16).astype(jnp.float32)
    N, C_in, H, W = x.shape
    xp = x.reshape(N, C_in, 4, H // 4, 4, W // 4).mean(axis=(3, 5))    # (N, C_in, 4, 4)
    wc = q(params["conv_w"].reshape(128, C_in))
    y = jnp.einsum("oc,ncp->nop", wc, q(xp.reshape(N, C_in, 16)))       # (N, 128, 16)
    scale = params["bn_gamma"] / jnp.sqrt(params["bn_var"] + 1e-3)
    shift = params["bn_beta"] - params["bn_mean"] * scale
    y = jnp.maximum(y * scale[None, :, None] + shift[None, :, None], 0.0)
    feat = q(y.reshape(N, 2048))                                        # torch.flatten: c*16 + p
    h = jnp.maximum(feat @ q(params["fc1_w"]).T + params["fc1_b"], 0.0)
    return jax.nn.sigmoid(q(h) @ q(params["fc2_w"]).T + params["fc2_b"])


if __name__ == "__main__":
    key = jax.random.PRNGKey(0)
    N, C_in, H, W = 2, 16, 16, 16
    num_classes = 8
    ks = jax.random.split(key, 10)

    x = jax.random.normal(ks[0], (N, C_in, H, W), jnp.float32)
    params = {
        "conv_w": jax.random.normal(ks[1], (128, C_in, 1, 1), jnp.float32) * 0.1,
        "bn_gamma": 1.0 + 0.1 * jax.random.normal(ks[2], (128,), jnp.float32),
        "bn_beta": 0.1 * jax.random.normal(ks[3], (128,), jnp.float32),
        "bn_mean": 0.1 * jax.random.normal(ks[4], (128,), jnp.float32),
        "bn_var": jax.random.uniform(ks[5], (128,), jnp.float32, minval=0.5, maxval=1.5),
        "fc1_w": jax.random.normal(ks[6], (1024, 2048), jnp.float32) * 0.02,
        "fc1_b": 0.01 * jax.random.normal(ks[7], (1024,), jnp.float32),
        "fc2_w": jax.random.normal(ks[8], (num_classes, 1024), jnp.float32) * 0.02,
        "fc2_b": 0.01 * jax.random.normal(ks[9], (num_classes,), jnp.float32),
    }

    prep = prepare_params(params, num_classes, tile_h=512)   # one-time, load-time weight prep
    out = inception_aux_forward(x, prep, num_classes=num_classes)
    out = jax.block_until_ready(out)

    ref = reference(x, params, num_classes)
    assert out.shape == (N, num_classes)
    err = jnp.max(jnp.abs(out - ref))
    assert jnp.allclose(out, ref, atol=2e-3, rtol=2e-3), f"mismatch: max abs err {err}"
    print("KERNEL_OK")
</pallas_src>

<mosaic_0001>
module attributes {stable_mosaic.version = 11 : i64} {
  func.func @fused_aux_kernel(%arg0: i32, %arg1: memref<128x128xbf16, #tpu.memory_space<vmem>>, %arg2: memref<128x128xbf16, #tpu.memory_space<vmem>>, %arg3: memref<1x128xf32, #tpu.memory_space<vmem>>, %arg4: memref<1x128xf32, #tpu.memory_space<vmem>>, %arg5: memref<1x2048x512xbf16, #tpu.memory_space<vmem>>, %arg6: memref<1x512xf32, #tpu.memory_space<vmem>>, %arg7: memref<512x128xbf16, #tpu.memory_space<vmem>>, %arg8: memref<1x128xf32, #tpu.memory_space<vmem>>, %arg9: memref<8x128xf32, #tpu.memory_space<vmem>>, %arg10: memref<8x2048xbf16, #tpu.memory_space<vmem>>) attributes {dimension_semantics = [#tpu.dimension_semantics<arbitrary>], iteration_bounds = array<i64: 2>, scalar_prefetch = 0 : i64, scratch_operands = 1 : i64, tpu.core_type = #tpu.core_type<tc>, window_params = [{pipeline_mode = #tpu.pipeline_mode<synchronous>, transform_indices = @transform_0, window_bounds = array<i64: 128, 128>}, {pipeline_mode = #tpu.pipeline_mode<synchronous>, transform_indices = @transform_1, window_bounds = array<i64: 128, 128>}, {pipeline_mode = #tpu.pipeline_mode<synchronous>, transform_indices = @transform_2, window_bounds = array<i64: 1, 128>}, {pipeline_mode = #tpu.pipeline_mode<synchronous>, transform_indices = @transform_3, window_bounds = array<i64: 1, 128>}, {transform_indices = @transform_4, window_bounds = array<i64: 1, 2048, 512>}, {transform_indices = @transform_5, window_bounds = array<i64: 1, 512>}, {transform_indices = @transform_6, window_bounds = array<i64: 512, 128>}, {pipeline_mode = #tpu.pipeline_mode<synchronous>, transform_indices = @transform_7, window_bounds = array<i64: 1, 128>}, {pipeline_mode = #tpu.pipeline_mode<synchronous>, transform_indices = @transform_8, window_bounds = array<i64: 8, 128>}]} {
    %c0_i32 = arith.constant 0 : i32
    %0 = arith.cmpi eq, %arg0, %c0_i32 : i32
    %1 = arith.extui %0 : i1 to i32
    %c0_i32_0 = arith.constant 0 : i32
    %2 = arith.cmpi ne, %1, %c0_i32_0 : i32
    scf.if %2 {
      %c0_16 = arith.constant 0 : index
      %c0_17 = arith.constant 0 : index
      %21 = vector.load %arg1[%c0_16, %c0_17] : memref<128x128xbf16, #tpu.memory_space<vmem>>, vector<128x128xbf16>
      %c0_18 = arith.constant 0 : index
      %c0_19 = arith.constant 0 : index
      %22 = vector.load %arg2[%c0_18, %c0_19] : memref<128x128xbf16, #tpu.memory_space<vmem>>, vector<128x128xbf16>
      %cst_20 = arith.constant dense<0.000000e+00> : vector<128x128xf32>
      %23 = tpu.matmul %21, %22, %cst_20 {dimension_numbers = #tpu.dot_dimension_numbers<[1], [0], [0], [1], [0, 0, 1, 1], [], []>} : vector<128x128xbf16>, vector<128x128xbf16>, vector<128x128xf32> -> vector<128x128xf32>
      %c0_21 = arith.constant 0 : index
      %c0_22 = arith.constant 0 : index
      %24 = vector.load %arg3[%c0_21, %c0_22] : memref<1x128xf32, #tpu.memory_space<vmem>>, vector<1x128xf32>
      %25 = vector.broadcast %24 : vector<1x128xf32> to vector<128x128xf32>
      %26 = arith.mulf %23, %25 : vector<128x128xf32>
      %c0_23 = arith.constant 0 : index
      %c0_24 = arith.constant 0 : index
      %27 = vector.load %arg4[%c0_23, %c0_24] : memref<1x128xf32, #tpu.memory_space<vmem>>, vector<1x128xf32>
      %28 = vector.broadcast %27 : vector<1x128xf32> to vector<128x128xf32>
      %29 = arith.addf %26, %28 : vector<128x128xf32>
      %cst_25 = arith.constant 0.000000e+00 : f32
      %30 = vector.broadcast %cst_25 : f32 to vector<128x128xf32>
      %31 = arith.maximumf %29, %30 : vector<128x128xf32>
      %32 = vector.extract_strided_slice %31 {offsets = [0, 0], sizes = [8, 128], strides = [1, 1]} : vector<128x128xf32> to vector<8x128xf32>
      %33 = arith.truncf %32 : vector<8x128xf32> to vector<8x128xbf16>
      %c0_26 = arith.constant 0 : index
      %c0_27 = arith.constant 0 : index
      %34 = vector.load %arg10[%c0_26, %c0_27] : memref<8x2048xbf16, #tpu.memory_space<vmem>>, vector<8x128xbf16>
      tpu.vector_store %arg10[%c0_26, %c0_27], %33 {strides = array<i32>} : memref<8x2048xbf16, #tpu.memory_space<vmem>>, vector<8x128xbf16>,
      %35 = vector.extract_strided_slice %31 {offsets = [8, 0], sizes = [8, 128], strides = [1, 1]} : vector<128x128xf32> to vector<8x128xf32>
      %36 = arith.truncf %35 : vector<8x128xf32> to vector<8x128xbf16>
      %c0_28 = arith.constant 0 : index
      %c128 = arith.constant 128 : index
      %37 = vector.load %arg10[%c0_28, %c128] : memref<8x2048xbf16, #tpu.memory_space<vmem>>, vector<8x128xbf16>
      tpu.vector_store %arg10[%c0_28, %c128], %36 {strides = array<i32>} : memref<8x2048xbf16, #tpu.memory_space<vmem>>, vector<8x128xbf16>,
      %38 = vector.extract_strided_slice %31 {offsets = [16, 0], sizes = [8, 128], strides = [1, 1]} : vector<128x128xf32> to vector<8x128xf32>
      %39 = arith.truncf %38 : vector<8x128xf32> to vector<8x128xbf16>
      %c0_29 = arith.constant 0 : index
      %c256 = arith.constant 256 : index
      %40 = vector.load %arg10[%c0_29, %c256] : memref<8x2048xbf16, #tpu.memory_space<vmem>>, vector<8x128xbf16>
      tpu.vector_store %arg10[%c0_29, %c256], %39 {strides = array<i32>} : memref<8x2048xbf16, #tpu.memory_space<vmem>>, vector<8x128xbf16>,
      %41 = vector.extract_strided_slice %31 {offsets = [24, 0], sizes = [8, 128], strides = [1, 1]} : vector<128x128xf32> to vector<8x128xf32>
      %42 = arith.truncf %41 : vector<8x128xf32> to vector<8x128xbf16>
      %c0_30 = arith.constant 0 : index
      %c384 = arith.constant 384 : index
      %43 = vector.load %arg10[%c0_30, %c384] : memref<8x2048xbf16, #tpu.memory_space<vmem>>, vector<8x128xbf16>
      tpu.vector_store %arg10[%c0_30, %c384], %42 {strides = array<i32>} : memref<8x2048xbf16, #tpu.memory_space<vmem>>, vector<8x128xbf16>,
      %44 = vector.extract_strided_slice %31 {offsets = [32, 0], sizes = [8, 128], strides = [1, 1]} : vector<128x128xf32> to vector<8x128xf32>
      %45 = arith.truncf %44 : vector<8x128xf32> to vector<8x128xbf16>
      %c0_31 = arith.constant 0 : index
      %c512 = arith.constant 512 : index
      %46 = vector.load %arg10[%c0_31, %c512] : memref<8x2048xbf16, #tpu.memory_space<vmem>>, vector<8x128xbf16>
      tpu.vector_store %arg10[%c0_31, %c512], %45 {strides = array<i32>} : memref<8x2048xbf16, #tpu.memory_space<vmem>>, vector<8x128xbf16>,
      %47 = vector.extract_strided_slice %31 {offsets = [40, 0], sizes = [8, 128], strides = [1, 1]} : vector<128x128xf32> to vector<8x128xf32>
      %48 = arith.truncf %47 : vector<8x128xf32> to vector<8x128xbf16>
      %c0_32 = arith.constant 0 : index
      %c640 = arith.constant 640 : index
      %49 = vector.load %arg10[%c0_32, %c640] : memref<8x2048xbf16, #tpu.memory_space<vmem>>, vector<8x128xbf16>
      tpu.vector_store %arg10[%c0_32, %c640], %48 {strides = array<i32>} : memref<8x2048xbf16, #tpu.memory_space<vmem>>, vector<8x128xbf16>,
      %50 = vector.extract_strided_slice %31 {offsets = [48, 0], sizes = [8, 128], strides = [1, 1]} : vector<128x128xf32> to vector<8x128xf32>
      %51 = arith.truncf %50 : vector<8x128xf32> to vector<8x128xbf16>
      %c0_33 = arith.constant 0 : index
      %c768 = arith.constant 768 : index
      %52 = vector.load %arg10[%c0_33, %c768] : memref<8x2048xbf16, #tpu.memory_space<vmem>>, vector<8x128xbf16>
      tpu.vector_store %arg10[%c0_33, %c768], %51 {strides = array<i32>} : memref<8x2048xbf16, #tpu.memory_space<vmem>>, vector<8x128xbf16>,
      %53 = vector.extract_strided_slice %31 {offsets = [56, 0], sizes = [8, 128], strides = [1, 1]} : vector<128x128xf32> to vector<8x128xf32>
      %54 = arith.truncf %53 : vector<8x128xf32> to vector<8x128xbf16>
      %c0_34 = arith.constant 0 : index
      %c896 = arith.constant 896 : index
      %55 = vector.load %arg10[%c0_34, %c896] : memref<8x2048xbf16, #tpu.memory_space<vmem>>, vector<8x128xbf16>
      tpu.vector_store %arg10[%c0_34, %c896], %54 {strides = array<i32>} : memref<8x2048xbf16, #tpu.memory_space<vmem>>, vector<8x128xbf16>,
      %56 = vector.extract_strided_slice %31 {offsets = [64, 0], sizes = [8, 128], strides = [1, 1]} : vector<128x128xf32> to vector<8x128xf32>
      %57 = arith.truncf %56 : vector<8x128xf32> to vector<8x128xbf16>
      %c0_35 = arith.constant 0 : index
      %c1024 = arith.constant 1024 : index
      %58 = vector.load %arg10[%c0_35, %c1024] : memref<8x2048xbf16, #tpu.memory_space<vmem>>, vector<8x128xbf16>
      tpu.vector_store %arg10[%c0_35, %c1024], %57 {strides = array<i32>} : memref<8x2048xbf16, #tpu.memory_space<vmem>>, vector<8x128xbf16>,
      %59 = vector.extract_strided_slice %31 {offsets = [72, 0], sizes = [8, 128], strides = [1, 1]} : vector<128x128xf32> to vector<8x128xf32>
      %60 = arith.truncf %59 : vector<8x128xf32> to vector<8x128xbf16>
      %c0_36 = arith.constant 0 : index
      %c1152 = arith.constant 1152 : index
      %61 = vector.load %arg10[%c0_36, %c1152] : memref<8x2048xbf16, #tpu.memory_space<vmem>>, vector<8x128xbf16>
      tpu.vector_store %arg10[%c0_36, %c1152], %60 {strides = array<i32>} : memref<8x2048xbf16, #tpu.memory_space<vmem>>, vector<8x128xbf16>,
      %62 = vector.extract_strided_slice %31 {offsets = [80, 0], sizes = [8, 128], strides = [1, 1]} : vector<128x128xf32> to vector<8x128xf32>
      %63 = arith.truncf %62 : vector<8x128xf32> to vector<8x128xbf16>
      %c0_37 = arith.constant 0 : index
      %c1280 = arith.constant 1280 : index
      %64 = vector.load %arg10[%c0_37, %c1280] : memref<8x2048xbf16, #tpu.memory_space<vmem>>, vector<8x128xbf16>
      tpu.vector_store %arg10[%c0_37, %c1280], %63 {strides = array<i32>} : memref<8x2048xbf16, #tpu.memory_space<vmem>>, vector<8x128xbf16>,
      %65 = vector.extract_strided_slice %31 {offsets = [88, 0], sizes = [8, 128], strides = [1, 1]} : vector<128x128xf32> to vector<8x128xf32>
      %66 = arith.truncf %65 : vector<8x128xf32> to vector<8x128xbf16>
      %c0_38 = arith.constant 0 : index
      %c1408 = arith.constant 1408 : index
      %67 = vector.load %arg10[%c0_38, %c1408] : memref<8x2048xbf16, #tpu.memory_space<vmem>>, vector<8x128xbf16>
      tpu.vector_store %arg10[%c0_38, %c1408], %66 {strides = array<i32>} : memref<8x2048xbf16, #tpu.memory_space<vmem>>, vector<8x128xbf16>,
      %68 = vector.extract_strided_slice %31 {offsets = [96, 0], sizes = [8, 128], strides = [1, 1]} : vector<128x128xf32> to vector<8x128xf32>
      %69 = arith.truncf %68 : vector<8x128xf32> to vector<8x128xbf16>
      %c0_39 = arith.constant 0 : index
      %c1536 = arith.constant 1536 : index
      %70 = vector.load %arg10[%c0_39, %c1536] : memref<8x2048xbf16, #tpu.memory_space<vmem>>, vector<8x128xbf16>
      tpu.vector_store %arg10[%c0_39, %c1536], %69 {strides = array<i32>} : memref<8x2048xbf16, #tpu.memory_space<vmem>>, vector<8x128xbf16>,
      %71 = vector.extract_strided_slice %31 {offsets = [104, 0], sizes = [8, 128], strides = [1, 1]} : vector<128x128xf32> to vector<8x128xf32>
      %72 = arith.truncf %71 : vector<8x128xf32> to vector<8x128xbf16>
      %c0_40 = arith.constant 0 : index
      %c1664 = arith.constant 1664 : index
      %73 = vector.load %arg10[%c0_40, %c1664] : memref<8x2048xbf16, #tpu.memory_space<vmem>>, vector<8x128xbf16>
      tpu.vector_store %arg10[%c0_40, %c1664], %72 {strides = array<i32>} : memref<8x2048xbf16, #tpu.memory_space<vmem>>, vector<8x128xbf16>,
      %74 = vector.extract_strided_slice %31 {offsets = [112, 0], sizes = [8, 128], strides = [1, 1]} : vector<128x128xf32> to vector<8x128xf32>
      %75 = arith.truncf %74 : vector<8x128xf32> to vector<8x128xbf16>
      %c0_41 = arith.constant 0 : index
      %c1792 = arith.constant 1792 : index
      %76 = vector.load %arg10[%c0_41, %c1792] : memref<8x2048xbf16, #tpu.memory_space<vmem>>, vector<8x128xbf16>
      tpu.vector_store %arg10[%c0_41, %c1792], %75 {strides = array<i32>} : memref<8x2048xbf16, #tpu.memory_space<vmem>>, vector<8x128xbf16>,
      %77 = vector.extract_strided_slice %31 {offsets = [120, 0], sizes = [8, 128], strides = [1, 1]} : vector<128x128xf32> to vector<8x128xf32>
      %78 = arith.truncf %77 : vector<8x128xf32> to vector<8x128xbf16>
      %c0_42 = arith.constant 0 : index
      %c1920 = arith.constant 1920 : index
      %79 = vector.load %arg10[%c0_42, %c1920] : memref<8x2048xbf16, #tpu.memory_space<vmem>>, vector<8x128xbf16>
      tpu.vector_store %arg10[%c0_42, %c1920], %78 {strides = array<i32>} : memref<8x2048xbf16, #tpu.memory_space<vmem>>, vector<8x128xbf16>,
      %cst_43 = arith.constant 0.000000e+00 : f32
      %80 = vector.broadcast %cst_43 : f32 to vector<8x128xf32>
      %c0_44 = arith.constant 0 : index
      %c0_45 = arith.constant 0 : index
      %81 = vector.load %arg9[%c0_44, %c0_45] : memref<8x128xf32, #tpu.memory_space<vmem>>, vector<8x128xf32>
      tpu.vector_store %arg9[%c0_44, %c0_45], %80 {strides = array<i32>} : memref<8x128xf32, #tpu.memory_space<vmem>>, vector<8x128xf32>,
    } else {
    }
    %c0 = arith.constant 0 : index
    %c0_1 = arith.constant 0 : index
    %3 = vector.load %arg10[%c0, %c0_1] : memref<8x2048xbf16, #tpu.memory_space<vmem>>, vector<8x2048xbf16>
    %c0_2 = arith.constant 0 : index
    %c0_3 = arith.constant 0 : index
    %c0_4 = arith.constant 0 : index
    %4 = vector.load %arg5[%c0_2, %c0_3, %c0_4] : memref<1x2048x512xbf16, #tpu.memory_space<vmem>>, vector<1x2048x512xbf16>
    %5 = vector.shape_cast %4 : vector<1x2048x512xbf16> to vector<2048x512xbf16>
    %cst = arith.constant dense<0.000000e+00> : vector<8x512xf32>
    %6 = tpu.matmul %3, %5, %cst {dimension_numbers = #tpu.dot_dimension_numbers<[1], [0], [0], [1], [0, 0, 1, 1], [], []>} : vector<8x2048xbf16>, vector<2048x512xbf16>, vector<8x512xf32> -> vector<8x512xf32>
    %c0_5 = arith.constant 0 : index
    %c0_6 = arith.constant 0 : index
    %7 = vector.load %arg6[%c0_5, %c0_6] : memref<1x512xf32, #tpu.memory_space<vmem>>, vector<1x512xf32>
    %8 = vector.broadcast %7 : vector<1x512xf32> to vector<8x512xf32>
    %9 = arith.addf %6, %8 : vector<8x512xf32>
    %cst_7 = arith.constant 0.000000e+00 : f32
    %10 = vector.broadcast %cst_7 : f32 to vector<8x512xf32>
    %11 = arith.maximumf %9, %10 : vector<8x512xf32>
    %c0_8 = arith.constant 0 : index
    %c0_9 = arith.constant 0 : index
    %12 = vector.load %arg9[%c0_8, %c0_9] : memref<8x128xf32, #tpu.memory_space<vmem>>, vector<8x128xf32>
    %13 = arith.truncf %11 : vector<8x512xf32> to vector<8x512xbf16>
    %c0_10 = arith.constant 0 : index
    %c0_11 = arith.constant 0 : index
    %14 = vector.load %arg7[%c0_10, %c0_11] : memref<512x128xbf16, #tpu.memory_space<vmem>>, vector<512x128xbf16>
    %cst_12 = arith.constant dense<0.000000e+00> : vector<8x128xf32>
    %15 = tpu.matmul %13, %14, %cst_12 {dimension_numbers = #tpu.dot_dimension_numbers<[1], [0], [0], [1], [0, 0, 1, 1], [], []>} : vector<8x512xbf16>, vector<512x128xbf16>, vector<8x128xf32> -> vector<8x128xf32>
    %16 = arith.addf %12, %15 : vector<8x128xf32>
    %c0_13 = arith.constant 0 : index
    %c0_14 = arith.constant 0 : index
    %17 = vector.load %arg9[%c0_13, %c0_14] : memref<8x128xf32, #tpu.memory_space<vmem>>, vector<8x128xf32>
    tpu.vector_store %arg9[%c0_13, %c0_14], %16 {strides = array<i32>} : memref<8x128xf32, #tpu.memory_space<vmem>>, vector<8x128xf32>,
    %c1_i32 = arith.constant 1 : i32
    %18 = arith.cmpi eq, %arg0, %c1_i32 : i32
    %19 = arith.extui %18 : i1 to i32
    %c0_i32_15 = arith.constant 0 : i32
    %20 = arith.cmpi ne, %19, %c0_i32_15 : i32
    scf.if %20 {
      %c0_16 = arith.constant 0 : index
      %c0_17 = arith.constant 0 : index
      %21 = vector.load %arg9[%c0_16, %c0_17] : memref<8x128xf32, #tpu.memory_space<vmem>>, vector<8x128xf32>
      %c0_18 = arith.constant 0 : index
      %c0_19 = arith.constant 0 : index
      %22 = vector.load %arg8[%c0_18, %c0_19] : memref<1x128xf32, #tpu.memory_space<vmem>>, vector<1x128xf32>
      %23 = vector.broadcast %22 : vector<1x128xf32> to vector<8x128xf32>
      %24 = arith.addf %21, %23 : vector<8x128xf32>
      %25 = arith.negf %24 : vector<8x128xf32>
      %26 = math.exp %25 : vector<8x128xf32>
      %cst_20 = arith.constant 1.000000e+00 : f32
      %27 = vector.broadcast %cst_20 : f32 to vector<8x128xf32>
      %28 = arith.addf %27, %26 : vector<8x128xf32>
      %29 = arith.divf %27, %28 : vector<8x128xf32>
      %c0_21 = arith.constant 0 : index
      %c0_22 = arith.constant 0 : index
      %30 = vector.load %arg9[%c0_21, %c0_22] : memref<8x128xf32, #tpu.memory_space<vmem>>, vector<8x128xf32>
      tpu.vector_store %arg9[%c0_21, %c0_22], %29 {strides = array<i32>} : memref<8x128xf32, #tpu.memory_space<vmem>>, vector<8x128xf32>,
    } else {
    }
    return
  }
  func.func @transform_0(%arg0: i32) -> (i32, i32) {
    %c0_i32 = arith.constant 0 : i32
    %c0_i32_0 = arith.constant 0 : i32
    %c0_i32_1 = arith.constant 0 : i32
    return %c0_i32, %c0_i32_0 : i32, i32
  }
  func.func @transform_1(%arg0: i32) -> (i32, i32) {
    %c0_i32 = arith.constant 0 : i32
    %c0_i32_0 = arith.constant 0 : i32
    %c0_i32_1 = arith.constant 0 : i32
    return %c0_i32, %c0_i32_0 : i32, i32
  }
  func.func @transform_2(%arg0: i32) -> (i32, i32) {
    %c0_i32 = arith.constant 0 : i32
    %c0_i32_0 = arith.constant 0 : i32
    %c0_i32_1 = arith.constant 0 : i32
    return %c0_i32, %c0_i32_0 : i32, i32
  }
  func.func @transform_3(%arg0: i32) -> (i32, i32) {
    %c0_i32 = arith.constant 0 : i32
    %c0_i32_0 = arith.constant 0 : i32
    %c0_i32_1 = arith.constant 0 : i32
    return %c0_i32, %c0_i32_0 : i32, i32
  }
  func.func @transform_4(%arg0: i32) -> (i32, i32, i32) {
    %c0_i32 = arith.constant 0 : i32
    %c0_i32_0 = arith.constant 0 : i32
    %c0_i32_1 = arith.constant 0 : i32
    return %arg0, %c0_i32, %c0_i32_0 : i32, i32, i32
  }
  func.func @transform_5(%arg0: i32) -> (i32, i32) {
    %c0_i32 = arith.constant 0 : i32
    %c0_i32_0 = arith.constant 0 : i32
    return %c0_i32, %arg0 : i32, i32
  }
  func.func @transform_6(%arg0: i32) -> (i32, i32) {
    %c0_i32 = arith.constant 0 : i32
    %c0_i32_0 = arith.constant 0 : i32
    return %arg0, %c0_i32 : i32, i32
  }
  func.func @transform_7(%arg0: i32) -> (i32, i32) {
    %c0_i32 = arith.constant 0 : i32
    %c0_i32_0 = arith.constant 0 : i32
    %c0_i32_1 = arith.constant 0 : i32
    return %c0_i32, %c0_i32_0 : i32, i32
  }
  func.func @transform_8(%arg0: i32) -> (i32, i32) {
    %c0_i32 = arith.constant 0 : i32
    %c0_i32_0 = arith.constant 0 : i32
    %c0_i32_1 = arith.constant 0 : i32
    return %c0_i32, %c0_i32_0 : i32, i32
  }
}

</mosaic_0001>

<llo_original>
// kernel: inception_aux_forward.1
$region0: #{inception_aux_forward.1}
  #allocation0 [shape = 'u32[]', space=smem, size = 0x4, offset = 0x4, fixed_abs, tag = 'smem constant byte address 0x4 - core index']
  #allocation1 [shape = 'u32[144,128]{1,0:T(1,128)}', space=vmem, size = 0x12000, scoped, tag = 'internal scratch']
  #allocation2 [shape = 'bf16[8,2048]{1,0:T(8,128)(2,1)}', space=vmem, size = 0x8000, scoped, tag = 'scratch operand']
  %s0 = inlined_call_operand.vmem [shape: bf16[128,128], index: 0, kind: input, shape index: {}]
  %s1 = inlined_call_operand.hbm [shape: bf16[128,128], index: 1, kind: input, shape index: {}]
  %s2 = inlined_call_operand.hbm [shape: f32[1,128], index: 2, kind: input, shape index: {}]
  %s3 = inlined_call_operand.hbm [shape: f32[1,128], index: 3, kind: input, shape index: {}]
  %s4 = inlined_call_operand.hbm [shape: bf16[2,2048,512], index: 4, kind: input, shape index: {}]
  %s5 = inlined_call_operand.hbm [shape: f32[1,1024], index: 5, kind: input, shape index: {}]
  %s6 = inlined_call_operand.hbm [shape: bf16[1024,128], index: 6, kind: input, shape index: {}]
  %s7 = inlined_call_operand.hbm [shape: f32[1,128], index: 7, kind: input, shape index: {}]
  %s8 = inlined_call_operand.vmem [shape: f32[8,128], index: 8, kind: output, shape index: {}]
  %s9 = sld [smem:[#allocation0]]
  $region101: #{inception_aux_forward.1} parent=0
    _
  %s11 = ssub.s32 1, %s9
  %s12 = scalar_select 0, %s11, %s9
  $region1: #{inception_aux_forward.1} parent=0
    #allocation3 [shape = 'u8[32768]{0}', space=vmem, size = 0x8000, scoped, tag = 'input window, operand 1, single buffered']
    #allocation4 [shape = 's32[2]{0}', space=sflag, size = 0x8, scoped, tag = 'scoped memory for inception_aux_forward.1']
    #allocation5 [shape = 'u8[512]{0}', space=vmem, size = 0x400, scoped, tag = 'input window, operand 2, single buffered']
    #allocation6 [shape = 's32[1]{0}', space=sflag, size = 0x4, scoped, tag = 'scoped memory for inception_aux_forward.1']
    #allocation7 [shape = 'u8[512]{0}', space=vmem, size = 0x400, scoped, tag = 'input window, operand 3, single buffered']
    #allocation8 [shape = 'u8[4194304]{0}', space=vmem, size = 0x400000, scoped, tag = 'input window, operand 4']
    #allocation9 [shape = 's32[2]{0}', space=sflag, size = 0x8, scoped, tag = 'scoped memory for inception_aux_forward.1']
    #allocation10 [shape = 'u8[4096]{0}', space=vmem, size = 0x1000, scoped, tag = 'input window, operand 5']
    #allocation11 [shape = 'u8[262144]{0}', space=vmem, size = 0x40000, scoped, tag = 'input window, operand 6']
    #allocation12 [shape = 's32[2]{0}', space=sflag, size = 0x8, scoped, tag = 'scoped memory for inception_aux_forward.1']
    #allocation13 [shape = 'u8[512]{0}', space=vmem, size = 0x400, scoped, tag = 'input window, operand 7, single buffered']
    %13 = vsyncpa [#allocation4], 0
    %14 = vsyncpa [#allocation6], 0
    %15 = vsyncpa [#allocation9], 0
    %s16 = scalar_lea.sflag [#allocation9], 1
    %17 = vsyncpa %s16, 0
    %18 = vsyncpa [#allocation12], 0
    %s19 = scalar_lea.sflag [#allocation12], 1
    %20 = vsyncpa %s19, 0
    loop: start=0, step=1, limit=4
    $region2: #{inception_aux_forward.1} parent=1 // loop_pre_header
      _
    $region3: #{inception_aux_forward.1} parent=1 // loop_header
      %s22 = sphi 0, %s26
      %p23 = scmp.ge.s32.totalorder %s22, 4
      %s30 = sphi 0, %s30
      %s32 = sphi 0, %s30
      %s33 = sphi 0, %s32
      %s47 = sphi 0, %s33
      %s51 = sphi 0, %s51
      %s53 = sphi 0, %s51
      %s54 = sphi 0, %s53
      %s68 = sphi 0, %s54
      %s72 = sphi 0, %s72
      %s74 = sphi 0, %s72
      %s75 = sphi 0, %s74
      %s89 = sphi 0, %s75
      %s93 = sphi 0, %s93
      %s95 = sphi 0, %s93
      %s96 = sphi 0, %s95
      %s110 = sphi 0, %s96
      %s116 = sphi 0, %s118
      %s119 = sphi 0, %s116
      %s120 = sphi 0, %s119
      %s136 = sphi 0, %s120
      %s142 = sphi 0, %s144
      %s145 = sphi 0, %s142
      %s146 = sphi 0, %s145
      %s162 = sphi 0, %s146
      %s168 = sphi 0, %s170
      %s171 = sphi 0, %s168
      %s172 = sphi 0, %s171
      %s188 = sphi 0, %s172
      %s192 = sphi 0, %s192
      %s194 = sphi 0, %s192
      %s195 = sphi 0, %s194
      %s209 = sphi 0, %s195
      %s213 = sphi 0, %s213
      %s215 = sphi 0, %s213
      %s216 = sphi 0, %s215
      %s230 = sphi 0, %s216
    $region4: #{inception_aux_forward.1} parent=1 // loop_header_branch
      %25 = sbr.rel (%p23) target = $region8
    $region5: #{inception_aux_forward.1} parent=1 // loop_body
      %s27 = ssub.s32 %s22, 1
      %s28 = ssub.s32 %s22, 2
      %s29 = sadd.s32 %s22, 1
      %s31 = sadd.s32 %s30, 1
      %p34 = scmp.eq.s32.totalorder %s22, 1
      %p35 = scmp.ne.s32.totalorder %s30, %s32
      %p36 = scmp.eq.s32.totalorder %s22, 0
      %p37 = por %p35, %p36
      %p38 = scmp.ne.s32.totalorder %s30, %s32
      %p39 = scmp.eq.s32.totalorder %s27, 1
      %p40 = por %p38, %p39
      %p41 = scmp.ne.s32.totalorder %s32, %s33
      %p42 = scmp.eq.s32.totalorder %s27, 0
      %p43 = por %p41, %p42
      %p44 = scmp.ne.s32.totalorder %s32, %s33
      %p45 = scmp.eq.s32.totalorder %s28, 1
      %p46 = por %p44, %p45
      %p48 = scmp.ne.s32.totalorder %s33, %s47
      %p49 = scmp.eq.s32.totalorder %s28, 0
      %p50 = por %p48, %p49
      %s52 = sadd.s32 %s51, 1
      %p55 = scmp.eq.s32.totalorder %s22, 1
      %p56 = scmp.ne.s32.totalorder %s51, %s53
      %p57 = scmp.eq.s32.totalorder %s22, 0
      %p58 = por %p56, %p57
      %p59 = scmp.ne.s32.totalorder %s51, %s53
      %p60 = scmp.eq.s32.totalorder %s27, 1
      %p61 = por %p59, %p60
      %p62 = scmp.ne.s32.totalorder %s53, %s54
      %p63 = scmp.eq.s32.totalorder %s27, 0
      %p64 = por %p62, %p63
      %p65 = scmp.ne.s32.totalorder %s53, %s54
      %p66 = scmp.eq.s32.totalorder %s28, 1
      %p67 = por %p65, %p66
      %p69 = scmp.ne.s32.totalorder %s54, %s68
      %p70 = scmp.eq.s32.totalorder %s28, 0
      %p71 = por %p69, %p70
      %s73 = sadd.s32 %s72, 1
      %p76 = scmp.eq.s32.totalorder %s22, 1
      %p77 = scmp.ne.s32.totalorder %s72, %s74
      %p78 = scmp.eq.s32.totalorder %s22, 0
      %p79 = por %p77, %p78
      %p80 = scmp.ne.s32.totalorder %s72, %s74
      %p81 = scmp.eq.s32.totalorder %s27, 1
      %p82 = por %p80, %p81
      %p83 = scmp.ne.s32.totalorder %s74, %s75
      %p84 = scmp.eq.s32.totalorder %s27, 0
      %p85 = por %p83, %p84
      %p86 = scmp.ne.s32.totalorder %s74, %s75
      %p87 = scmp.eq.s32.totalorder %s28, 1
      %p88 = por %p86, %p87
      %p90 = scmp.ne.s32.totalorder %s75, %s89
      %p91 = scmp.eq.s32.totalorder %s28, 0
      %p92 = por %p90, %p91
      %s94 = sadd.s32 %s93, 1
      %p97 = scmp.eq.s32.totalorder %s22, 1
      %p98 = scmp.ne.s32.totalorder %s93, %s95
      %p99 = scmp.eq.s32.totalorder %s22, 0
      %p100 = por %p98, %p99
      %p101 = scmp.ne.s32.totalorder %s93, %s95
      %p102 = scmp.eq.s32.totalorder %s27, 1
      %p103 = por %p101, %p102
      %p104 = scmp.ne.s32.totalorder %s95, %s96
      %p105 = scmp.eq.s32.totalorder %s27, 0
      %p106 = por %p104, %p105
      %p107 = scmp.ne.s32.totalorder %s95, %s96
      %p108 = scmp.eq.s32.totalorder %s28, 1
      %p109 = por %p107, %p108
      %p111 = scmp.ne.s32.totalorder %s96, %s110
      %p112 = scmp.eq.s32.totalorder %s28, 0
      %p113 = por %p111, %p112
      %s114 = ssub.s32 %s22, %s29
      %p115 = scmp.eq.s32.totalorder %s114, 0
      %s117 = sadd.s32 %s116, 1
      %s118 = scalar_select %p115, %s116, %s117
      %p121 = pneg %p115
      %p122 = scmp.eq.s32.totalorder %s22, 1
      %p123 = por %p121, %p122
      %p124 = scmp.ne.s32.totalorder %s116, %s119
      %p125 = scmp.eq.s32.totalorder %s22, 0
      %p126 = por %p124, %p125
      %p127 = scmp.ne.s32.totalorder %s116, %s119
      %p128 = scmp.eq.s32.totalorder %s27, 1
      %p129 = por %p127, %p128
      %p130 = scmp.ne.s32.totalorder %s119, %s120
      %p131 = scmp.eq.s32.totalorder %s27, 0
      %p132 = por %p130, %p131
      %p133 = scmp.ne.s32.totalorder %s119, %s120
      %p134 = scmp.eq.s32.totalorder %s28, 1
      %p135 = por %p133, %p134
      %p137 = scmp.ne.s32.totalorder %s120, %s136
      %p138 = scmp.eq.s32.totalorder %s28, 0
      %p139 = por %p137, %p138
      %s140 = ssub.s32 %s22, %s29
      %p141 = scmp.eq.s32.totalorder %s140, 0
      %s143 = sadd.s32 %s142, 1
      %s144 = scalar_select %p141, %s142, %s143
      %p147 = pneg %p141
      %p148 = scmp.eq.s32.totalorder %s22, 1
      %p149 = por %p147, %p148
      %p150 = scmp.ne.s32.totalorder %s142, %s145
      %p151 = scmp.eq.s32.totalorder %s22, 0
      %p152 = por %p150, %p151
      %p153 = scmp.ne.s32.totalorder %s142, %s145
      %p154 = scmp.eq.s32.totalorder %s27, 1
      %p155 = por %p153, %p154
      %p156 = scmp.ne.s32.totalorder %s145, %s146
      %p157 = scmp.eq.s32.totalorder %s27, 0
      %p158 = por %p156, %p157
      %p159 = scmp.ne.s32.totalorder %s145, %s146
      %p160 = scmp.eq.s32.totalorder %s28, 1
      %p161 = por %p159, %p160
      %p163 = scmp.ne.s32.totalorder %s146, %s162
      %p164 = scmp.eq.s32.totalorder %s28, 0
      %p165 = por %p163, %p164
      %s166 = ssub.s32 %s22, %s29
      %p167 = scmp.eq.s32.totalorder %s166, 0
      %s169 = sadd.s32 %s168, 1
      %s170 = scalar_select %p167, %s168, %s169
      %p173 = pneg %p167
      %p174 = scmp.eq.s32.totalorder %s22, 1
      %p175 = por %p173, %p174
      %p176 = scmp.ne.s32.totalorder %s168, %s171
      %p177 = scmp.eq.s32.totalorder %s22, 0
      %p178 = por %p176, %p177
      %p179 = scmp.ne.s32.totalorder %s168, %s171
      %p180 = scmp.eq.s32.totalorder %s27, 1
      %p181 = por %p179, %p180
      %p182 = scmp.ne.s32.totalorder %s171, %s172
      %p183 = scmp.eq.s32.totalorder %s27, 0
      %p184 = por %p182, %p183
      %p185 = scmp.ne.s32.totalorder %s171, %s172
      %p186 = scmp.eq.s32.totalorder %s28, 1
      %p187 = por %p185, %p186
      %p189 = scmp.ne.s32.totalorder %s172, %s188
      %p190 = scmp.eq.s32.totalorder %s28, 0
      %p191 = por %p189, %p190
      %s193 = sadd.s32 %s192, 1
      %p196 = scmp.eq.s32.totalorder %s22, 1
      %p197 = scmp.ne.s32.totalorder %s192, %s194
      %p198 = scmp.eq.s32.totalorder %s22, 0
      %p199 = por %p197, %p198
      %p200 = scmp.ne.s32.totalorder %s192, %s194
      %p201 = scmp.eq.s32.totalorder %s27, 1
      %p202 = por %p200, %p201
      %p203 = scmp.ne.s32.totalorder %s194, %s195
      %p204 = scmp.eq.s32.totalorder %s27, 0
      %p205 = por %p203, %p204
      %p206 = scmp.ne.s32.totalorder %s194, %s195
      %p207 = scmp.eq.s32.totalorder %s28, 1
      %p208 = por %p206, %p207
      %p210 = scmp.ne.s32.totalorder %s195, %s209
      %p211 = scmp.eq.s32.totalorder %s28, 0
      %p212 = por %p210, %p211
      %s214 = sadd.s32 %s213, 1
      %p217 = scmp.eq.s32.totalorder %s22, 1
      %p218 = scmp.ne.s32.totalorder %s213, %s215
      %p219 = scmp.eq.s32.totalorder %s22, 0
      %p220 = por %p218, %p219
      %p221 = scmp.ne.s32.totalorder %s213, %s215
      %p222 = scmp.eq.s32.totalorder %s27, 1
      %p223 = por %p221, %p222
      %p224 = scmp.ne.s32.totalorder %s215, %s216
      %p225 = scmp.eq.s32.totalorder %s27, 0
      %p226 = por %p224, %p225
      %p227 = scmp.ne.s32.totalorder %s215, %s216
      %p228 = scmp.eq.s32.totalorder %s28, 1
      %p229 = por %p227, %p228
      %p231 = scmp.ne.s32.totalorder %s216, %s230
      %p232 = scmp.eq.s32.totalorder %s28, 0
      %p233 = por %p231, %p232
      %p234 = scmp.le.s32.totalorder 1, %s22
      %p235 = scmp.lt.s32.totalorder %s22, 3
      %p236 = pnand %p234, %p235
      %p237 = pneg %p236
      // Predicated region
      $region9: #{inception_aux_forward.1} parent=5 // pred_check
        _
      $region10: #{inception_aux_forward.1} parent=5 // pred_check_branch
        %239 = sbr.rel (%p236) target = $region12
      $region11: #{inception_aux_forward.1} parent=5 // pred_region
        %s240 = ssub.s32 %s22, 1
        // Predicated region
        $region13: #{inception_aux_forward.1} parent=11 // pred_check
          %p241 = pneg %p43
        $region14: #{inception_aux_forward.1} parent=11 // pred_check_branch
          %243 = sbr.rel (%p241) target = $region16
        $region15: #{inception_aux_forward.1} parent=11 // pred_region
          _
        $region16: #{inception_aux_forward.1} parent=11 // pred_fallthru
          _
        // Predicated region
        $region17: #{inception_aux_forward.1} parent=11 // pred_check
          %p244 = pneg %p64
        $region18: #{inception_aux_forward.1} parent=11 // pred_check_branch
          %246 = sbr.rel (%p244) target = $region20
        $region19: #{inception_aux_forward.1} parent=11 // pred_region
          %s248 = ssub.s32 1024, 1024
          %249 = vsyncadd [#allocation4], %s248
          %s250 = sshll.u32 [#allocation3], 4
          %s251 = int_to_ptr.vmem [resolvable:$true] %s250
          %256 = dma.hbm_to_vmem [thread:$0]  %s1, 1024, %s251, [#allocation4], 64, 64, 4
        $region20: #{inception_aux_forward.1} parent=11 // pred_fallthru
          _
        // Predicated region
        $region21: #{inception_aux_forward.1} parent=11 // pred_check
          %p257 = pneg %p85
        $region22: #{inception_aux_forward.1} parent=11 // pred_check_branch
          %259 = sbr.rel (%p257) target = $region24
        $region23: #{inception_aux_forward.1} parent=11 // pred_region
          %s261 = ssub.s32 16, 16
          %262 = vsyncadd [#allocation6], %s261
          %s264 = sshll.u32 [#allocation5], 4
          %s265 = int_to_ptr.vmem [resolvable:$true] %s264
          %267 = dma.hbm_to_vmem [thread:$0]  %s2, 16, %s265, [#allocation6]
        $region24: #{inception_aux_forward.1} parent=11 // pred_fallthru
          _
        // Predicated region
        $region25: #{inception_aux_forward.1} parent=11 // pred_check
          %p268 = pneg %p106
        $region26: #{inception_aux_forward.1} parent=11 // pred_check_branch
          %270 = sbr.rel (%p268) target = $region28
        $region27: #{inception_aux_forward.1} parent=11 // pred_region
          %s272 = ssub.s32 16, 16
          %273 = vsyncadd [#allocation6], %s272
          %s275 = sshll.u32 [#allocation7], 4
          %s276 = int_to_ptr.vmem [resolvable:$true] %s275
          %278 = dma.hbm_to_vmem [thread:$0]  %s3, 16, %s276, [#allocation6]
        $region28: #{inception_aux_forward.1} parent=11 // pred_fallthru
          _
        // Predicated region
        $region29: #{inception_aux_forward.1} parent=11 // pred_check
          %p279 = pneg %p205
        $region30: #{inception_aux_forward.1} parent=11 // pred_check_branch
          %281 = sbr.rel (%p279) target = $region32
        $region31: #{inception_aux_forward.1} parent=11 // pred_region
          %s283 = ssub.s32 16, 16
          %284 = vsyncadd [#allocation12], %s283
          %s286 = sshll.u32 [#allocation13], 4
          %s287 = int_to_ptr.vmem [resolvable:$true] %s286
          %289 = dma.hbm_to_vmem [thread:$0]  %s7, 16, %s287, [#allocation12]
        $region32: #{inception_aux_forward.1} parent=11 // pred_fallthru
          _
      $region12: #{inception_aux_forward.1} parent=5 // pred_fallthru
        _
      %p290 = scmp.lt.s32.totalorder %s22, 2
      // Predicated region
      $region33: #{inception_aux_forward.1} parent=5 // pred_check
        %p291 = pneg %p290
      $region34: #{inception_aux_forward.1} parent=5 // pred_check_branch
        %293 = sbr.rel (%p291) target = $region36
      $region35: #{inception_aux_forward.1} parent=5 // pred_region
        // Predicated region
        $region37: #{inception_aux_forward.1} parent=35 // pred_check
          %p294 = pneg %p126
        $region38: #{inception_aux_forward.1} parent=35 // pred_check_branch
          %296 = sbr.rel (%p294) target = $region40
        $region39: #{inception_aux_forward.1} parent=35 // pred_region
          %s297 = sand.u32 %s22, 1
          %s298 = scalar_lea.sflag [#allocation9], %s297
          %s299 = sand.u32 %s116, 1
          %s300 = smul.addr %s299, 4096
          %s301 = scalar_lea.vmem [#allocation8], %s300
          %s303 = ssub.s32 65536, 65536
          %304 = vsyncadd %s298, %s303
          %s305 = smul.addr %s22, 1024
          %s306 = smul.addr %s305, 64
          %s307 = scalar_lea.hbm %s4, %s306
          %s308 = sshll.u32 %s301, 4
          %s309 = int_to_ptr.vmem [resolvable:$true] %s308
          %314 = dma.hbm_to_vmem [thread:$0]  %s307, 65536, %s309, %s298, 256, 256, 16
        $region40: #{inception_aux_forward.1} parent=35 // pred_fallthru
          _
        // Predicated region
        $region41: #{inception_aux_forward.1} parent=35 // pred_check
          %p315 = pneg %p152
        $region42: #{inception_aux_forward.1} parent=35 // pred_check_branch
          %317 = sbr.rel (%p315) target = $region44
        $region43: #{inception_aux_forward.1} parent=35 // pred_region
          %s318 = sand.u32 %s22, 1
          %s319 = scalar_lea.sflag [#allocation9], %s318
          %s320 = sand.u32 %s142, 1
          %s321 = smul.addr %s320, 4
          %s322 = scalar_lea.vmem [#allocation10], %s321
          %s323 = smul.u32 4, %s22
          %s325 = ssub.s32 64, 64
          %326 = vsyncadd %s319, %s325
          %s327 = smul.addr %s323, 16
          %s328 = scalar_lea.hbm %s5, %s327
          %s330 = sshll.u32 %s322, 4
          %s331 = int_to_ptr.vmem [resolvable:$true] %s330
          %333 = dma.hbm_to_vmem [thread:$0]  %s328, 64, %s331, %s319
        $region44: #{inception_aux_forward.1} parent=35 // pred_fallthru
          _
        // Predicated region
        $region45: #{inception_aux_forward.1} parent=35 // pred_check
          %p334 = pneg %p178
        $region46: #{inception_aux_forward.1} parent=35 // pred_check_branch
          %336 = sbr.rel (%p334) target = $region48
        $region47: #{inception_aux_forward.1} parent=35 // pred_region
          %s337 = sand.u32 %s22, 1
          %s338 = scalar_lea.sflag [#allocation12], %s337
          %s339 = sand.u32 %s168, 1
          %s340 = smul.addr %s339, 256
          %s341 = scalar_lea.vmem [#allocation11], %s340
          %s342 = smul.u32 64, %s22
          %s344 = ssub.s32 4096, 4096
          %345 = vsyncadd %s338, %s344
          %s346 = smul.addr %s342, 64
          %s347 = scalar_lea.hbm %s6, %s346
          %s348 = sshll.u32 %s341, 4
          %s349 = int_to_ptr.vmem [resolvable:$true] %s348
          %354 = dma.hbm_to_vmem [thread:$0]  %s347, 4096, %s349, %s338, 64, 64, 4
        $region48: #{inception_aux_forward.1} parent=35 // pred_fallthru
          _
      $region36: #{inception_aux_forward.1} parent=5 // pred_fallthru
        _
      %p355 = scmp.le.s32.totalorder 1, %s22
      %p356 = scmp.lt.s32.totalorder %s22, 3
      %p357 = pnand %p355, %p356
      %p358 = pneg %p357
      // Predicated region
      $region49: #{inception_aux_forward.1} parent=5 // pred_check
        _
      $region50: #{inception_aux_forward.1} parent=5 // pred_check_branch
        %360 = sbr.rel (%p357) target = $region52
      $region51: #{inception_aux_forward.1} parent=5 // pred_region
        %s361 = ssub.s32 %s22, 1
        // Predicated region
        $region53: #{inception_aux_forward.1} parent=51 // pred_check
          %p362 = pneg %p64
        $region54: #{inception_aux_forward.1} parent=51 // pred_check_branch
          %364 = sbr.rel (%p362) target = $region56
        $region55: #{inception_aux_forward.1} parent=51 // pred_region
          %365 = dma.done [#allocation4], 1024
        $region56: #{inception_aux_forward.1} parent=51 // pred_fallthru
          _
        // Predicated region
        $region57: #{inception_aux_forward.1} parent=51 // pred_check
          %p366 = pneg %p85
        $region58: #{inception_aux_forward.1} parent=51 // pred_check_branch
          %368 = sbr.rel (%p366) target = $region60
        $region59: #{inception_aux_forward.1} parent=51 // pred_region
          %369 = dma.done [#allocation6], 16
        $region60: #{inception_aux_forward.1} parent=51 // pred_fallthru
          _
        // Predicated region
        $region61: #{inception_aux_forward.1} parent=51 // pred_check
          %p370 = pneg %p106
        $region62: #{inception_aux_forward.1} parent=51 // pred_check_branch
          %372 = sbr.rel (%p370) target = $region64
        $region63: #{inception_aux_forward.1} parent=51 // pred_region
          %373 = dma.done [#allocation6], 16
        $region64: #{inception_aux_forward.1} parent=51 // pred_fallthru
          _
        %s374 = sand.u32 %s27, 1
        %s375 = scalar_lea.sflag [#allocation9], %s374
        %s376 = sand.u32 %s119, 1
        %s377 = smul.addr %s376, 4096
        %s378 = scalar_lea.vmem [#allocation8], %s377
        // Predicated region
        $region65: #{inception_aux_forward.1} parent=51 // pred_check
          %p379 = pneg %p132
        $region66: #{inception_aux_forward.1} parent=51 // pred_check_branch
          %381 = sbr.rel (%p379) target = $region68
        $region67: #{inception_aux_forward.1} parent=51 // pred_region
          %382 = dma.done %s375, 65536
        $region68: #{inception_aux_forward.1} parent=51 // pred_fallthru
          _
        %s383 = sand.u32 %s27, 1
        %s384 = scalar_lea.sflag [#allocation9], %s383
        %s385 = sand.u32 %s145, 1
        %s386 = smul.addr %s385, 4
        %s387 = scalar_lea.vmem [#allocation10], %s386
        // Predicated region
        $region69: #{inception_aux_forward.1} parent=51 // pred_check
          %p388 = pneg %p158
        $region70: #{inception_aux_forward.1} parent=51 // pred_check_branch
          %390 = sbr.rel (%p388) target = $region72
        $region71: #{inception_aux_forward.1} parent=51 // pred_region
          %391 = dma.done %s384, 64
        $region72: #{inception_aux_forward.1} parent=51 // pred_fallthru
          _
        %s392 = sand.u32 %s27, 1
        %s393 = scalar_lea.sflag [#allocation12], %s392
        %s394 = sand.u32 %s171, 1
        %s395 = smul.addr %s394, 256
        %s396 = scalar_lea.vmem [#allocation11], %s395
        // Predicated region
        $region73: #{inception_aux_forward.1} parent=51 // pred_check
          %p397 = pneg %p184
        $region74: #{inception_aux_forward.1} parent=51 // pred_check_branch
          %399 = sbr.rel (%p397) target = $region76
        $region75: #{inception_aux_forward.1} parent=51 // pred_region
          %400 = dma.done %s393, 4096
        $region76: #{inception_aux_forward.1} parent=51 // pred_fallthru
          _
        // Predicated region
        $region77: #{inception_aux_forward.1} parent=51 // pred_check
          %p401 = pneg %p205
        $region78: #{inception_aux_forward.1} parent=51 // pred_check_branch
          %403 = sbr.rel (%p401) target = $region80
        $region79: #{inception_aux_forward.1} parent=51 // pred_region
          %404 = dma.done [#allocation12], 16
        $region80: #{inception_aux_forward.1} parent=51 // pred_fallthru
          _
        %p405 = pneg %p43
        %p406 = pneg %p40
        %p407 = pneg %p64
        %p408 = pneg %p61
        %p409 = pneg %p85
        %p410 = pneg %p82
        %p411 = pneg %p106
        %p412 = pneg %p103
        %s413 = sand.u32 %s27, 1
        %s414 = scalar_lea.sflag [#allocation9], %s413
        %s415 = sand.u32 %s119, 1
        %s416 = smul.addr %s415, 4096
        %s417 = scalar_lea.vmem [#allocation8], %s416
        %p418 = pneg %p132
        %p419 = pneg %p129
        %s420 = sand.u32 %s27, 1
        %s421 = scalar_lea.sflag [#allocation9], %s420
        %s422 = sand.u32 %s145, 1
        %s423 = smul.addr %s422, 4
        %s424 = scalar_lea.vmem [#allocation10], %s423
        %p425 = pneg %p158
        %p426 = pneg %p155
        %s427 = sand.u32 %s27, 1
        %s428 = scalar_lea.sflag [#allocation12], %s427
        %s429 = sand.u32 %s171, 1
        %s430 = smul.addr %s429, 256
        %s431 = scalar_lea.vmem [#allocation11], %s430
        %p432 = pneg %p184
        %p433 = pneg %p181
        %p434 = pneg %p205
        %p435 = pneg %p202
        %p436 = pneg %p226
        %p437 = pneg %p223
        %s438 = smul.u32 4, %s27
        %s439 = smul.u32 64, %s27
        %p441 = scmp.eq.s32.totalorder %s27, 0
        // Predicated region
        $region81: #{inception_aux_forward.1} parent=51 // pred_check
          %p442 = pneg %p441
        $region82: #{inception_aux_forward.1} parent=51 // pred_check_branch
          %444 = sbr.rel (%p442) target = $region84
        $region83: #{inception_aux_forward.1} parent=51 // pred_region
          %v445 = vld [vmem:[%s0] sm:$0xf]
          %v446 = vld [vmem:[%s0 + $0x4] sm:$0xf]
          %v447 = vld [vmem:[%s0 + $0x8] sm:$0xf]
          %v448 = vld [vmem:[%s0 + $0xc] sm:$0xf]
          %v449 = vld [vmem:[%s0 + $0x10] sm:$0xf]
          %v450 = vld [vmem:[%s0 + $0x14] sm:$0xf]
          %v451 = vld [vmem:[%s0 + $0x18] sm:$0xf]
          %v452 = vld [vmem:[%s0 + $0x1c] sm:$0xf]
          %v453 = vld [vmem:[%s0 + $0x20] sm:$0xf]
          %v454 = vld [vmem:[%s0 + $0x24] sm:$0xf]
          %v455 = vld [vmem:[%s0 + $0x28] sm:$0xf]
          %v456 = vld [vmem:[%s0 + $0x2c] sm:$0xf]
          %v457 = vld [vmem:[%s0 + $0x30] sm:$0xf]
          %v458 = vld [vmem:[%s0 + $0x34] sm:$0xf]
          %v459 = vld [vmem:[%s0 + $0x38] sm:$0xf]
          %v460 = vld [vmem:[%s0 + $0x3c] sm:$0xf]
          %v461 = vld [vmem:[#allocation3] sm:$0xf]
          %v462 = vld [vmem:[#allocation3 + $0x4] sm:$0xf]
          %v463 = vld [vmem:[#allocation3 + $0x8] sm:$0xf]
          %v464 = vld [vmem:[#allocation3 + $0xc] sm:$0xf]
          %v465 = vld [vmem:[#allocation3 + $0x10] sm:$0xf]
          %v466 = vld [vmem:[#allocation3 + $0x14] sm:$0xf]
          %v467 = vld [vmem:[#allocation3 + $0x18] sm:$0xf]
          %v468 = vld [vmem:[#allocation3 + $0x1c] sm:$0xf]
          %v469 = vld [vmem:[#allocation3 + $0x20] sm:$0xf]
          %v470 = vld [vmem:[#allocation3 + $0x24] sm:$0xf]
          %v471 = vld [vmem:[#allocation3 + $0x28] sm:$0xf]
          %v472 = vld [vmem:[#allocation3 + $0x2c] sm:$0xf]
          %v473 = vld [vmem:[#allocation3 + $0x30] sm:$0xf]
          %v474 = vld [vmem:[#allocation3 + $0x34] sm:$0xf]
          %v475 = vld [vmem:[#allocation3 + $0x38] sm:$0xf]
          %v476 = vld [vmem:[#allocation3 + $0x3c] sm:$0xf]
          %v493 = vunpack.c.l.b16 %v445
          %v494 = vunpack.c.l.b16 %v446
          %v495 = vunpack.c.l.b16 %v447
          %v496 = vunpack.c.l.b16 %v448
          %v497 = vunpack.c.l.b16 %v449
          %v498 = vunpack.c.l.b16 %v450
          %v499 = vunpack.c.l.b16 %v451
          %v500 = vunpack.c.l.b16 %v452
          %v501 = vunpack.c.l.b16 %v453
          %v502 = vunpack.c.l.b16 %v454
          %v503 = vunpack.c.l.b16 %v455
          %v504 = vunpack.c.l.b16 %v456
          %v505 = vunpack.c.l.b16 %v457
          %v506 = vunpack.c.l.b16 %v458
          %v507 = vunpack.c.l.b16 %v459
          %v508 = vunpack.c.l.b16 %v460
          %v509 = vpack.c.b16 %v494, %v493
          %v510 = vpack.c.b16 %v496, %v495
          %v511 = vpack.c.b16 %v498, %v497
          %v512 = vpack.c.b16 %v500, %v499
          %v513 = vpack.c.b16 %v502, %v501
          %v514 = vpack.c.b16 %v504, %v503
          %v515 = vpack.c.b16 %v506, %v505
          %v516 = vpack.c.b16 %v508, %v507
          %v541 = vunpack.c.l.b16 %v461
          %v542 = vunpack.c.l.b16 %v462
          %v543 = vunpack.c.l.b16 %v463
          %v544 = vunpack.c.l.b16 %v464
          %v545 = vunpack.c.l.b16 %v465
          %v546 = vunpack.c.l.b16 %v466
          %v547 = vunpack.c.l.b16 %v467
          %v548 = vunpack.c.l.b16 %v468
          %v549 = vunpack.c.l.b16 %v469
          %v550 = vunpack.c.l.b16 %v470
          %v551 = vunpack.c.l.b16 %v471
          %v552 = vunpack.c.l.b16 %v472
          %v553 = vunpack.c.l.b16 %v473
          %v554 = vunpack.c.l.b16 %v474
          %v555 = vunpack.c.l.b16 %v475
          %v556 = vunpack.c.l.b16 %v476
          %v557 = vpack.c.b16 %v542, %v541
          %v558 = vpack.c.b16 %v544, %v543
          %v559 = vpack.c.b16 %v546, %v545
          %v560 = vpack.c.b16 %v548, %v547
          %v561 = vpack.c.b16 %v550, %v549
          %v562 = vpack.c.b16 %v552, %v551
          %v563 = vpack.c.b16 %v554, %v553
          %v564 = vpack.c.b16 %v556, %v555
          %573 = vmatprep.subr.bf16.mxu0 0
          %574 = vmatpush1.bf16.msra.mxu0 %v557
          %575 = vmatprep.subr.bf16.mxu0 0
          %576 = vmatpush1.bf16.msra.mxu0 %v558
          %577 = vmatprep.subr.bf16.mxu0 0
          %578 = vmatpush1.bf16.msra.mxu0 %v559
          %579 = vmatprep.subr.bf16.mxu0 0
          %580 = vmatpush1.bf16.msra.mxu0 %v560
          %581 = vmatprep.subr.bf16.mxu0 0
          %582 = vmatpush1.bf16.msra.mxu0 %v561
          %583 = vmatprep.subr.bf16.mxu0 0
          %584 = vmatpush1.bf16.msra.mxu0 %v562
          %585 = vmatprep.subr.bf16.mxu0 0
          %586 = vmatpush1.bf16.msra.mxu0 %v563
          %587 = vmatprep.subr.bf16.mxu0 0
          %588 = vmatpush1.bf16.msra.mxu0 %v564
          %589 = vmatprep.subr.bf16.mxu0 0
          %590 = vmatpush1.bf16.msra.mxu0 0
          %591 = vmatprep.subr.bf16.mxu0 0
          %592 = vmatpush1.bf16.msra.mxu0 0
          %593 = vmatprep.subr.bf16.mxu0 0
          %594 = vmatpush1.bf16.msra.mxu0 0
          %595 = vmatprep.subr.bf16.mxu0 0
          %596 = vmatpush1.bf16.msra.mxu0 0
          %597 = vmatprep.subr.bf16.mxu0 0
          %598 = vmatpush1.bf16.msra.mxu0 0
          %599 = vmatprep.subr.bf16.mxu0 0
          %600 = vmatpush1.bf16.msra.mxu0 0
          %601 = vmatprep.subr.bf16.mxu0 0
          %602 = vmatpush1.bf16.msra.mxu0 0
          %603 = vmatprep.subr.bf16.mxu0 0
          %604 = vmatpush1.bf16.msra.mxu0 0
          %605 = vmatprep.mubr.bf16.mxu0 0
          %606 = vmatmul.mubr.bf16.gmra.mrb[0].mxu0 %v509
          %v607 = vpop.f32.mrb[0].mxu0
          %v608 = vadd.f32 0.0, %v607
          %v609 = vpop.f32.mrb[0].mxu0
          %v610 = vpop.f32.mrb[0].mxu0
          %v611 = vadd.f32 0.0, %v610
          %v612 = vpop.f32.mrb[0].mxu0
          %613 = vmatprep.mubr.bf16.mxu0 0
          %614 = vmatmul.mubr.bf16.gmra.mrb[0].mxu0 %v510
          %v615 = vpop.f32.mrb[0].mxu0
          %v616 = vadd.f32 0.0, %v615
          %v617 = vpop.f32.mrb[0].mxu0
          %v618 = vpop.f32.mrb[0].mxu0
          %v619 = vadd.f32 0.0, %v618
          %v620 = vpop.f32.mrb[0].mxu0
          %621 = vmatprep.mubr.bf16.mxu0 0
          %622 = vmatmul.mubr.bf16.gmra.mrb[0].mxu0 %v511
          %v623 = vpop.f32.mrb[0].mxu0
          %v624 = vadd.f32 0.0, %v623
          %v625 = vpop.f32.mrb[0].mxu0
          %v626 = vpop.f32.mrb[0].mxu0
          %v627 = vadd.f32 0.0, %v626
          %v628 = vpop.f32.mrb[0].mxu0
          %629 = vmatprep.mubr.bf16.mxu0 0
          %630 = vmatmul.mubr.bf16.gmra.mrb[0].mxu0 %v512
          %v631 = vpop.f32.mrb[0].mxu0
          %v632 = vadd.f32 0.0, %v631
          %v633 = vpop.f32.mrb[0].mxu0
          %v634 = vpop.f32.mrb[0].mxu0
          %v635 = vadd.f32 0.0, %v634
          %v636 = vpop.f32.mrb[0].mxu0
          %637 = vmatprep.mubr.bf16.mxu0 0
          %638 = vmatmul.mubr.bf16.gmra.mrb[0].mxu0 %v513
          %v639 = vpop.f32.mrb[0].mxu0
          %v640 = vadd.f32 0.0, %v639
          %v641 = vpop.f32.mrb[0].mxu0
          %v642 = vpop.f32.mrb[0].mxu0
          %v643 = vadd.f32 0.0, %v642
          %v644 = vpop.f32.mrb[0].mxu0
          %645 = vmatprep.mubr.bf16.mxu0 0
          %646 = vmatmul.mubr.bf16.gmra.mrb[0].mxu0 %v514
          %v647 = vpop.f32.mrb[0].mxu0
          %v648 = vadd.f32 0.0, %v647
          %v649 = vpop.f32.mrb[0].mxu0
          %v650 = vpop.f32.mrb[0].mxu0
          %v651 = vadd.f32 0.0, %v650
          %v652 = vpop.f32.mrb[0].mxu0
          %653 = vmatprep.mubr.bf16.mxu0 0
          %654 = vmatmul.mubr.bf16.gmra.mrb[0].mxu0 %v515
          %v655 = vpop.f32.mrb[0].mxu0
          %v656 = vadd.f32 0.0, %v655
          %v657 = vpop.f32.mrb[0].mxu0
          %v658 = vpop.f32.mrb[0].mxu0
          %v659 = vadd.f32 0.0, %v658
          %v660 = vpop.f32.mrb[0].mxu0
          %661 = vmatprep.mubr.bf16.mxu0 0
          %662 = vmatmul.mubr.bf16.gmra.mrb[0].mxu0 %v516
          %v663 = vpop.f32.mrb[0].mxu0
          %v664 = vadd.f32 0.0, %v663
          %v665 = vpop.f32.mrb[0].mxu0
          %v666 = vpop.f32.mrb[0].mxu0
          %v667 = vadd.f32 0.0, %v666
          %v668 = vpop.f32.mrb[0].mxu0
          %669 = vdwg.mxu0
          %v670 = vld [vmem:[#allocation5] sm:$0x1]
          %v672 = vlaneseq
          %v673 = vshrl.u32 %v672, 7
          %v674 = vsub.s32 0, %v673
          %v675 = vrot.slane %v670, %v674
          %v677 = vmul.f32 %v608, %v675
          %v678 = vmul.f32 %v611, %v675
          %v679 = vmul.f32 %v616, %v675
          %v680 = vmul.f32 %v619, %v675
          %v681 = vmul.f32 %v624, %v675
          %v682 = vmul.f32 %v627, %v675
          %v683 = vmul.f32 %v632, %v675
          %v684 = vmul.f32 %v635, %v675
          %v685 = vmul.f32 %v640, %v675
          %v686 = vmul.f32 %v643, %v675
          %v687 = vmul.f32 %v648, %v675
          %v688 = vmul.f32 %v651, %v675
          %v689 = vmul.f32 %v656, %v675
          %v690 = vmul.f32 %v659, %v675
          %v691 = vmul.f32 %v664, %v675
          %v692 = vmul.f32 %v667, %v675
          %v693 = vld [vmem:[#allocation7] sm:$0x1]
          %v695 = vlaneseq
          %v696 = vshrl.u32 %v695, 7
          %v697 = vsub.s32 0, %v696
          %v698 = vrot.slane %v693, %v697
          %v700 = vadd.f32 %v677, %v698
          %v701 = vadd.f32 %v678, %v698
          %v702 = vadd.f32 %v679, %v698
          %v703 = vadd.f32 %v680, %v698
          %v704 = vadd.f32 %v681, %v698
          %v705 = vadd.f32 %v682, %v698
          %v706 = vadd.f32 %v683, %v698
          %v707 = vadd.f32 %v684, %v698
          %v708 = vadd.f32 %v685, %v698
          %v709 = vadd.f32 %v686, %v698
          %v710 = vadd.f32 %v687, %v698
          %v711 = vadd.f32 %v688, %v698
          %v712 = vadd.f32 %v689, %v698
          %v713 = vadd.f32 %v690, %v698
          %v714 = vadd.f32 %v691, %v698
          %v715 = vadd.f32 %v692, %v698
          %v716 = vmax.f32 %v700, 0.0
          %v717 = vmax.f32 %v701, 0.0
          %v718 = vmax.f32 %v702, 0.0
          %v719 = vmax.f32 %v703, 0.0
          %v720 = vmax.f32 %v704, 0.0
          %v721 = vmax.f32 %v705, 0.0
          %v722 = vmax.f32 %v706, 0.0
          %v723 = vmax.f32 %v707, 0.0
          %v724 = vmax.f32 %v708, 0.0
          %v725 = vmax.f32 %v709, 0.0
          %v726 = vmax.f32 %v710, 0.0
          %v727 = vmax.f32 %v711, 0.0
          %v728 = vmax.f32 %v712, 0.0
          %v729 = vmax.f32 %v713, 0.0
          %v730 = vmax.f32 %v714, 0.0
          %v731 = vmax.f32 %v715, 0.0
          %v732 = vpack.c.bf16 %v716, %v716
          %733 = vst [vmem:[#allocation2] sm:$0xf] %v732
          %v734 = vpack.c.bf16 %v717, %v717
          %735 = vst [vmem:[#allocation2 + $0x4] sm:$0xf] %v734
          %v736 = vpack.c.bf16 %v718, %v718
          %737 = vst [vmem:[#allocation2 + $0x8] sm:$0xf] %v736
          %v738 = vpack.c.bf16 %v719, %v719
          %739 = vst [vmem:[#allocation2 + $0xc] sm:$0xf] %v738
          %v740 = vpack.c.bf16 %v720, %v720
          %741 = vst [vmem:[#allocation2 + $0x10] sm:$0xf] %v740
          %v742 = vpack.c.bf16 %v721, %v721
          %743 = vst [vmem:[#allocation2 + $0x14] sm:$0xf] %v742
          %v744 = vpack.c.bf16 %v722, %v722
          %745 = vst [vmem:[#allocation2 + $0x18] sm:$0xf] %v744
          %v746 = vpack.c.bf16 %v723, %v723
          %747 = vst [vmem:[#allocation2 + $0x1c] sm:$0xf] %v746
          %v748 = vpack.c.bf16 %v724, %v724
          %749 = vst [vmem:[#allocation2 + $0x20] sm:$0xf] %v748
          %v750 = vpack.c.bf16 %v725, %v725
          %751 = vst [vmem:[#allocation2 + $0x24] sm:$0xf] %v750
          %v752 = vpack.c.bf16 %v726, %v726
          %753 = vst [vmem:[#allocation2 + $0x28] sm:$0xf] %v752
          %v754 = vpack.c.bf16 %v727, %v727
          %755 = vst [vmem:[#allocation2 + $0x2c] sm:$0xf] %v754
          %v756 = vpack.c.bf16 %v728, %v728
          %757 = vst [vmem:[#allocation2 + $0x30] sm:$0xf] %v756
          %v758 = vpack.c.bf16 %v729, %v729
          %759 = vst [vmem:[#allocation2 + $0x34] sm:$0xf] %v758
          %v760 = vpack.c.bf16 %v730, %v730
          %761 = vst [vmem:[#allocation2 + $0x38] sm:$0xf] %v760
          %v762 = vpack.c.bf16 %v731, %v731
          %763 = vst [vmem:[#allocation2 + $0x3c] sm:$0xf] %v762
          %764 = vst [vmem:[%s8] sm:$0xff] 0.0
        $region84: #{inception_aux_forward.1} parent=51 // pred_fallthru
          _
        %v765 = vld [vmem:[#allocation2] sm:$0xff]
        %v766 = vld [vmem:[#allocation2 + $0x8] sm:$0xff]
        %v767 = vld [vmem:[#allocation2 + $0x10] sm:$0xff]
        %v768 = vld [vmem:[#allocation2 + $0x18] sm:$0xff]
        %v769 = vld [vmem:[#allocation2 + $0x20] sm:$0xff]
        %v770 = vld [vmem:[#allocation2 + $0x28] sm:$0xff]
        %v771 = vld [vmem:[#allocation2 + $0x30] sm:$0xff]
        %v772 = vld [vmem:[#allocation2 + $0x38] sm:$0xff]
        %v773 = vld [vmem:[%s378] sm:$0xff]
        %v774 = vld [vmem:[%s378 + $0x8] sm:$0xff]
        %v775 = vld [vmem:[%s378 + $0x10] sm:$0xff]
        %v776 = vld [vmem:[%s378 + $0x18] sm:$0xff]
        %v777 = vld [vmem:[%s378 + $0x20] sm:$0xff]
        %v778 = vld [vmem:[%s378 + $0x28] sm:$0xff]
        %v779 = vld [vmem:[%s378 + $0x30] sm:$0xff]
        %v780 = vld [vmem:[%s378 + $0x38] sm:$0xff]
        %v781 = vld [vmem:[%s378 + $0x40] sm:$0xff]
        %v782 = vld [vmem:[%s378 + $0x48] sm:$0xff]
        %v783 = vld [vmem:[%s378 + $0x50] sm:$0xff]
        %v784 = vld [vmem:[%s378 + $0x58] sm:$0xff]
        %v785 = vld [vmem:[%s378 + $0x60] sm:$0xff]
        %v786 = vld [vmem:[%s378 + $0x68] sm:$0xff]
        %v787 = vld [vmem:[%s378 + $0x70] sm:$0xff]
        %v788 = vld [vmem:[%s378 + $0x78] sm:$0xff]
        %v789 = vld [vmem:[%s378 + $0x80] sm:$0xff]
        %v790 = vld [vmem:[%s378 + $0x88] sm:$0xff]
        %v791 = vld [vmem:[%s378 + $0x90] sm:$0xff]
        %v792 = vld [vmem:[%s378 + $0x98] sm:$0xff]
        %v793 = vld [vmem:[%s378 + $0xa0] sm:$0xff]
        %v794 = vld [vmem:[%s378 + $0xa8] sm:$0xff]
        %v795 = vld [vmem:[%s378 + $0xb0] sm:$0xff]
        %v796 = vld [vmem:[%s378 + $0xb8] sm:$0xff]
        %v797 = vld [vmem:[%s378 + $0xc0] sm:$0xff]
        %v798 = vld [vmem:[%s378 + $0xc8] sm:$0xff]
        %v799 = vld [vmem:[%s378 + $0xd0] sm:$0xff]
        %v800 = vld [vmem:[%s378 + $0xd8] sm:$0xff]
        %v801 = vld [vmem:[%s378 + $0xe0] sm:$0xff]
        %v802 = vld [vmem:[%s378 + $0xe8] sm:$0xff]
        %v803 = vld [vmem:[%s378 + $0xf0] sm:$0xff]
        %v804 = vld [vmem:[%s378 + $0xf8] sm:$0xff]
        %v805 = vld [vmem:[%s378 + $0x100] sm:$0xff]
        %v806 = vld [vmem:[%s378 + $0x108] sm:$0xff]
        %v807 = vld [vmem:[%s378 + $0x110] sm:$0xff]
        %v808 = vld [vmem:[%s378 + $0x118] sm:$0xff]
        %v809 = vld [vmem:[%s378 + $0x120] sm:$0xff]
        %v810 = vld [vmem:[%s378 + $0x128] sm:$0xff]
        %v811 = vld [vmem:[%s378 + $0x130] sm:$0xff]
        %v812 = vld [vmem:[%s378 + $0x138] sm:$0xff]
        %v813 = vld [vmem:[%s378 + $0x140] sm:$0xff]
        %v814 = vld [vmem:[%s378 + $0x148] sm:$0xff]
        %v815 = vld [vmem:[%s378 + $0x150] sm:$0xff]
        %v816 = vld [vmem:[%s378 + $0x158] sm:$0xff]
        %v817 = vld [vmem:[%s378 + $0x160] sm:$0xff]
        %v818 = vld [vmem:[%s378 + $0x168] sm:$0xff]
        %v819 = vld [vmem:[%s378 + $0x170] sm:$0xff]
        %v820 = vld [vmem:[%s378 + $0x178] sm:$0xff]
        %v821 = vld [vmem:[%s378 + $0x180] sm:$0xff]
        %v822 = vld [vmem:[%s378 + $0x188] sm:$0xff]
        %v823 = vld [vmem:[%s378 + $0x190] sm:$0xff]
        %v824 = vld [vmem:[%s378 + $0x198] sm:$0xff]
        %v825 = vld [vmem:[%s378 + $0x1a0] sm:$0xff]
        %v826 = vld [vmem:[%s378 + $0x1a8] sm:$0xff]
        %v827 = vld [vmem:[%s378 + $0x1b0] sm:$0xff]
        %v828 = vld [vmem:[%s378 + $0x1b8] sm:$0xff]
        %v829 = vld [vmem:[%s378 + $0x1c0] sm:$0xff]
        %v830 = vld [vmem:[%s378 + $0x1c8] sm:$0xff]
        %v831 = vld [vmem:[%s378 + $0x1d0] sm:$0xff]
        %v832 = vld [vmem:[%s378 + $0x1d8] sm:$0xff]
        %v833 = vld [vmem:[%s378 + $0x1e0] sm:$0xff]
        %v834 = vld [vmem:[%s378 + $0x1e8] sm:$0xff]
        %v835 = vld [vmem:[%s378 + $0x1f0] sm:$0xff]
        %v836 = vld [vmem:[%s378 + $0x1f8] sm:$0xff]
        %v837 = vld [vmem:[%s378 + $0x200] sm:$0xff]
        %v838 = vld [vmem:[%s378 + $0x208] sm:$0xff]
        %v839 = vld [vmem:[%s378 + $0x210] sm:$0xff]
        %v840 = vld [vmem:[%s378 + $0x218] sm:$0xff]
        %v841 = vld [vmem:[%s378 + $0x220] sm:$0xff]
        %v842 = vld [vmem:[%s378 + $0x228] sm:$0xff]
        %v843 = vld [vmem:[%s378 + $0x230] sm:$0xff]
        %v844 = vld [vmem:[%s378 + $0x238] sm:$0xff]
        %v845 = vld [vmem:[%s378 + $0x240] sm:$0xff]
        %v846 = vld [vmem:[%s378 + $0x248] sm:$0xff]
        %v847 = vld [vmem:[%s378 + $0x250] sm:$0xff]
        %v848 = vld [vmem:[%s378 + $0x258] sm:$0xff]
        %v849 = vld [vmem:[%s378 + $0x260] sm:$0xff]
        %v850 = vld [vmem:[%s378 + $0x268] sm:$0xff]
        %v851 = vld [vmem:[%s378 + $0x270] sm:$0xff]
        %v852 = vld [vmem:[%s378 + $0x278] sm:$0xff]
        %v853 = vld [vmem:[%s378 + $0x280] sm:$0xff]
        %v854 = vld [vmem:[%s378 + $0x288] sm:$0xff]
        %v855 = vld [vmem:[%s378 + $0x290] sm:$0xff]
        %v856 = vld [vmem:[%s378 + $0x298] sm:$0xff]
        %v857 = vld [vmem:[%s378 + $0x2a0] sm:$0xff]
        %v858 = vld [vmem:[%s378 + $0x2a8] sm:$0xff]
        %v859 = vld [vmem:[%s378 + $0x2b0] sm:$0xff]
        %v860 = vld [vmem:[%s378 + $0x2b8] sm:$0xff]
        %v861 = vld [vmem:[%s378 + $0x2c0] sm:$0xff]
        %v862 = vld [vmem:[%s378 + $0x2c8] sm:$0xff]
        %v863 = vld [vmem:[%s378 + $0x2d0] sm:$0xff]
        %v864 = vld [vmem:[%s378 + $0x2d8] sm:$0xff]
        %v865 = vld [vmem:[%s378 + $0x2e0] sm:$0xff]
        %v866 = vld [vmem:[%s378 + $0x2e8] sm:$0xff]
        %v867 = vld [vmem:[%s378 + $0x2f0] sm:$0xff]
        %v868 = vld [vmem:[%s378 + $0x2f8] sm:$0xff]
        %v869 = vld [vmem:[%s378 + $0x300] sm:$0xff]
        %v870 = vld [vmem:[%s378 + $0x308] sm:$0xff]
        %v871 = vld [vmem:[%s378 + $0x310] sm:$0xff]
        %v872 = vld [vmem:[%s378 + $0x318] sm:$0xff]
        %v873 = vld [vmem:[%s378 + $0x320] sm:$0xff]
        %v874 = vld [vmem:[%s378 + $0x328] sm:$0xff]
        %v875 = vld [vmem:[%s378 + $0x330] sm:$0xff]
        %v876 = vld [vmem:[%s378 + $0x338] sm:$0xff]
        %v877 = vld [vmem:[%s378 + $0x340] sm:$0xff]
        %v878 = vld [vmem:[%s378 + $0x348] sm:$0xff]
        %v879 = vld [vmem:[%s378 + $0x350] sm:$0xff]
        %v880 = vld [vmem:[%s378 + $0x358] sm:$0xff]
        %v881 = vld [vmem:[%s378 + $0x360] sm:$0xff]
        %v882 = vld [vmem:[%s378 + $0x368] sm:$0xff]
        %v883 = vld [vmem:[%s378 + $0x370] sm:$0xff]
        %v884 = vld [vmem:[%s378 + $0x378] sm:$0xff]
        %v885 = vld [vmem:[%s378 + $0x380] sm:$0xff]
        %v886 = vld [vmem:[%s378 + $0x388] sm:$0xff]
        %v887 = vld [vmem:[%s378 + $0x390] sm:$0xff]
        %v888 = vld [vmem:[%s378 + $0x398] sm:$0xff]
        %v889 = vld [vmem:[%s378 + $0x3a0] sm:$0xff]
        %v890 = vld [vmem:[%s378 + $0x3a8] sm:$0xff]
        %v891 = vld [vmem:[%s378 + $0x3b0] sm:$0xff]
        %v892 = vld [vmem:[%s378 + $0x3b8] sm:$0xff]
        %v893 = vld [vmem:[%s378 + $0x3c0] sm:$0xff]
        %v894 = vld [vmem:[%s378 + $0x3c8] sm:$0xff]
        %v895 = vld [vmem:[%s378 + $0x3d0] sm:$0xff]
        %v896 = vld [vmem:[%s378 + $0x3d8] sm:$0xff]
        %v897 = vld [vmem:[%s378 + $0x3e0] sm:$0xff]
        %v898 = vld [vmem:[%s378 + $0x3e8] sm:$0xff]
        %v899 = vld [vmem:[%s378 + $0x3f0] sm:$0xff]
        %v900 = vld [vmem:[%s378 + $0x3f8] sm:$0xff]
        %v901 = vld [vmem:[%s378 + $0x400] sm:$0xff]
        %v902 = vld [vmem:[%s378 + $0x408] sm:$0xff]
        %v903 = vld [vmem:[%s378 + $0x410] sm:$0xff]
        %v904 = vld [vmem:[%s378 + $0x418] sm:$0xff]
        %v905 = vld [vmem:[%s378 + $0x420] sm:$0xff]
        %v906 = vld [vmem:[%s378 + $0x428] sm:$0xff]
        %v907 = vld [vmem:[%s378 + $0x430] sm:$0xff]
        %v908 = vld [vmem:[%s378 + $0x438] sm:$0xff]
        %v909 = vld [vmem:[%s378 + $0x440] sm:$0xff]
        %v910 = vld [vmem:[%s378 + $0x448] sm:$0xff]
        %v911 = vld [vmem:[%s378 + $0x450] sm:$0xff]
        %v912 = vld [vmem:[%s378 + $0x458] sm:$0xff]
        %v913 = vld [vmem:[%s378 + $0x460] sm:$0xff]
        %v914 = vld [vmem:[%s378 + $0x468] sm:$0xff]
        %v915 = vld [vmem:[%s378 + $0x470] sm:$0xff]
        %v916 = vld [vmem:[%s378 + $0x478] sm:$0xff]
        %v917 = vld [vmem:[%s378 + $0x480] sm:$0xff]
        %v918 = vld [vmem:[%s378 + $0x488] sm:$0xff]
        %v919 = vld [vmem:[%s378 + $0x490] sm:$0xff]
        %v920 = vld [vmem:[%s378 + $0x498] sm:$0xff]
        %v921 = vld [vmem:[%s378 + $0x4a0] sm:$0xff]
        %v922 = vld [vmem:[%s378 + $0x4a8] sm:$0xff]
        %v923 = vld [vmem:[%s378 + $0x4b0] sm:$0xff]
        %v924 = vld [vmem:[%s378 + $0x4b8] sm:$0xff]
        %v925 = vld [vmem:[%s378 + $0x4c0] sm:$0xff]
        %v926 = vld [vmem:[%s378 + $0x4c8] sm:$0xff]
        %v927 = vld [vmem:[%s378 + $0x4d0] sm:$0xff]
        %v928 = vld [vmem:[%s378 + $0x4d8] sm:$0xff]
        %v929 = vld [vmem:[%s378 + $0x4e0] sm:$0xff]
        %v930 = vld [vmem:[%s378 + $0x4e8] sm:$0xff]
        %v931 = vld [vmem:[%s378 + $0x4f0] sm:$0xff]
        %v932 = vld [vmem:[%s378 + $0x4f8] sm:$0xff]
        %v933 = vld [vmem:[%s378 + $0x500] sm:$0xff]
        %v934 = vld [vmem:[%s378 + $0x508] sm:$0xff]
        %v935 = vld [vmem:[%s378 + $0x510] sm:$0xff]
        %v936 = vld [vmem:[%s378 + $0x518] sm:$0xff]
        %v937 = vld [vmem:[%s378 + $0x520] sm:$0xff]
        %v938 = vld [vmem:[%s378 + $0x528] sm:$0xff]
        %v939 = vld [vmem:[%s378 + $0x530] sm:$0xff]
        %v940 = vld [vmem:[%s378 + $0x538] sm:$0xff]
        %v941 = vld [vmem:[%s378 + $0x540] sm:$0xff]
        %v942 = vld [vmem:[%s378 + $0x548] sm:$0xff]
        %v943 = vld [vmem:[%s378 + $0x550] sm:$0xff]
        %v944 = vld [vmem:[%s378 + $0x558] sm:$0xff]
        %v945 = vld [vmem:[%s378 + $0x560] sm:$0xff]
        %v946 = vld [vmem:[%s378 + $0x568] sm:$0xff]
        %v947 = vld [vmem:[%s378 + $0x570] sm:$0xff]
        %v948 = vld [vmem:[%s378 + $0x578] sm:$0xff]
        %v949 = vld [vmem:[%s378 + $0x580] sm:$0xff]
        %v950 = vld [vmem:[%s378 + $0x588] sm:$0xff]
        %v951 = vld [vmem:[%s378 + $0x590] sm:$0xff]
        %v952 = vld [vmem:[%s378 + $0x598] sm:$0xff]
        %v953 = vld [vmem:[%s378 + $0x5a0] sm:$0xff]
        %v954 = vld [vmem:[%s378 + $0x5a8] sm:$0xff]
        %v955 = vld [vmem:[%s378 + $0x5b0] sm:$0xff]
        %v956 = vld [vmem:[%s378 + $0x5b8] sm:$0xff]
        %v957 = vld [vmem:[%s378 + $0x5c0] sm:$0xff]
        %v958 = vld [vmem:[%s378 + $0x5c8] sm:$0xff]
        %v959 = vld [vmem:[%s378 + $0x5d0] sm:$0xff]
        %v960 = vld [vmem:[%s378 + $0x5d8] sm:$0xff]
        %v961 = vld [vmem:[%s378 + $0x5e0] sm:$0xff]
        %v962 = vld [vmem:[%s378 + $0x5e8] sm:$0xff]
        %v963 = vld [vmem:[%s378 + $0x5f0] sm:$0xff]
        %v964 = vld [vmem:[%s378 + $0x5f8] sm:$0xff]
        %v965 = vld [vmem:[%s378 + $0x600] sm:$0xff]
        %v966 = vld [vmem:[%s378 + $0x608] sm:$0xff]
        %v967 = vld [vmem:[%s378 + $0x610] sm:$0xff]
        %v968 = vld [vmem:[%s378 + $0x618] sm:$0xff]
        %v969 = vld [vmem:[%s378 + $0x620] sm:$0xff]
        %v970 = vld [vmem:[%s378 + $0x628] sm:$0xff]
        %v971 = vld [vmem:[%s378 + $0x630] sm:$0xff]
        %v972 = vld [vmem:[%s378 + $0x638] sm:$0xff]
        %v973 = vld [vmem:[%s378 + $0x640] sm:$0xff]
        %v974 = vld [vmem:[%s378 + $0x648] sm:$0xff]
        %v975 = vld [vmem:[%s378 + $0x650] sm:$0xff]
        %v976 = vld [vmem:[%s378 + $0x658] sm:$0xff]
        %v977 = vld [vmem:[%s378 + $0x660] sm:$0xff]
        %v978 = vld [vmem:[%s378 + $0x668] sm:$0xff]
        %v979 = vld [vmem:[%s378 + $0x670] sm:$0xff]
        %v980 = vld [vmem:[%s378 + $0x678] sm:$0xff]
        %v981 = vld [vmem:[%s378 + $0x680] sm:$0xff]
        %v982 = vld [vmem:[%s378 + $0x688] sm:$0xff]
        %v983 = vld [vmem:[%s378 + $0x690] sm:$0xff]
        %v984 = vld [vmem:[%s378 + $0x698] sm:$0xff]
        %v985 = vld [vmem:[%s378 + $0x6a0] sm:$0xff]
        %v986 = vld [vmem:[%s378 + $0x6a8] sm:$0xff]
        %v987 = vld [vmem:[%s378 + $0x6b0] sm:$0xff]
        %v988 = vld [vmem:[%s378 + $0x6b8] sm:$0xff]
        %v989 = vld [vmem:[%s378 + $0x6c0] sm:$0xff]
        %v990 = vld [vmem:[%s378 + $0x6c8] sm:$0xff]
        %v991 = vld [vmem:[%s378 + $0x6d0] sm:$0xff]
        %v992 = vld [vmem:[%s378 + $0x6d8] sm:$0xff]
        %v993 = vld [vmem:[%s378 + $0x6e0] sm:$0xff]
        %v994 = vld [vmem:[%s378 + $0x6e8] sm:$0xff]
        %v995 = vld [vmem:[%s378 + $0x6f0] sm:$0xff]
        %v996 = vld [vmem:[%s378 + $0x6f8] sm:$0xff]
        %v997 = vld [vmem:[%s378 + $0x700] sm:$0xff]
        %v998 = vld [vmem:[%s378 + $0x708] sm:$0xff]
        %v999 = vld [vmem:[%s378 + $0x710] sm:$0xff]
        %v1000 = vld [vmem:[%s378 + $0x718] sm:$0xff]
        %v1001 = vld [vmem:[%s378 + $0x720] sm:$0xff]
        %v1002 = vld [vmem:[%s378 + $0x728] sm:$0xff]
        %v1003 = vld [vmem:[%s378 + $0x730] sm:$0xff]
        %v1004 = vld [vmem:[%s378 + $0x738] sm:$0xff]
        %v1005 = vld [vmem:[%s378 + $0x740] sm:$0xff]
        %v1006 = vld [vmem:[%s378 + $0x748] sm:$0xff]
        %v1007 = vld [vmem:[%s378 + $0x750] sm:$0xff]
        %v1008 = vld [vmem:[%s378 + $0x758] sm:$0xff]
        %v1009 = vld [vmem:[%s378 + $0x760] sm:$0xff]
        %v1010 = vld [vmem:[%s378 + $0x768] sm:$0xff]
        %v1011 = vld [vmem:[%s378 + $0x770] sm:$0xff]
        %v1012 = vld [vmem:[%s378 + $0x778] sm:$0xff]
        %v1013 = vld [vmem:[%s378 + $0x780] sm:$0xff]
        %v1014 = vld [vmem:[%s378 + $0x788] sm:$0xff]
        %v1015 = vld [vmem:[%s378 + $0x790] sm:$0xff]
        %v1016 = vld [vmem:[%s378 + $0x798] sm:$0xff]
        %v1017 = vld [vmem:[%s378 + $0x7a0] sm:$0xff]
        %v1018 = vld [vmem:[%s378 + $0x7a8] sm:$0xff]
        %v1019 = vld [vmem:[%s378 + $0x7b0] sm:$0xff]
        %v1020 = vld [vmem:[%s378 + $0x7b8] sm:$0xff]
        %v1021 = vld [vmem:[%s378 + $0x7c0] sm:$0xff]
        %v1022 = vld [vmem:[%s378 + $0x7c8] sm:$0xff]
        %v1023 = vld [vmem:[%s378 + $0x7d0] sm:$0xff]
        %v1024 = vld [vmem:[%s378 + $0x7d8] sm:$0xff]
        %v1025 = vld [vmem:[%s378 + $0x7e0] sm:$0xff]
        %v1026 = vld [vmem:[%s378 + $0x7e8] sm:$0xff]
        %v1027 = vld [vmem:[%s378 + $0x7f0] sm:$0xff]
        %v1028 = vld [vmem:[%s378 + $0x7f8] sm:$0xff]
        %v1029 = vld [vmem:[%s378 + $0x800] sm:$0xff]
        %v1030 = vld [vmem:[%s378 + $0x808] sm:$0xff]
        %v1031 = vld [vmem:[%s378 + $0x810] sm:$0xff]
        %v1032 = vld [vmem:[%s378 + $0x818] sm:$0xff]
        %v1033 = vld [vmem:[%s378 + $0x820] sm:$0xff]
        %v1034 = vld [vmem:[%s378 + $0x828] sm:$0xff]
        %v1035 = vld [vmem:[%s378 + $0x830] sm:$0xff]
        %v1036 = vld [vmem:[%s378 + $0x838] sm:$0xff]
        %v1037 = vld [vmem:[%s378 + $0x840] sm:$0xff]
        %v1038 = vld [vmem:[%s378 + $0x848] sm:$0xff]
        %v1039 = vld [vmem:[%s378 + $0x850] sm:$0xff]
        %v1040 = vld [vmem:[%s378 + $0x858] sm:$0xff]
        %v1041 = vld [vmem:[%s378 + $0x860] sm:$0xff]
        %v1042 = vld [vmem:[%s378 + $0x868] sm:$0xff]
        %v1043 = vld [vmem:[%s378 + $0x870] sm:$0xff]
        %v1044 = vld [vmem:[%s378 + $0x878] sm:$0xff]
        %v1045 = vld [vmem:[%s378 + $0x880] sm:$0xff]
        %v1046 = vld [vmem:[%s378 + $0x888] sm:$0xff]
        %v1047 = vld [vmem:[%s378 + $0x890] sm:$0xff]
        %v1048 = vld [vmem:[%s378 + $0x898] sm:$0xff]
        %v1049 = vld [vmem:[%s378 + $0x8a0] sm:$0xff]
        %v1050 = vld [vmem:[%s378 + $0x8a8] sm:$0xff]
        %v1051 = vld [vmem:[%s378 + $0x8b0] sm:$0xff]
        %v1052 = vld [vmem:[%s378 + $0x8b8] sm:$0xff]
        %v1053 = vld [vmem:[%s378 + $0x8c0] sm:$0xff]
        %v1054 = vld [vmem:[%s378 + $0x8c8] sm:$0xff]
        %v1055 = vld [vmem:[%s378 + $0x8d0] sm:$0xff]
        %v1056 = vld [vmem:[%s378 + $0x8d8] sm:$0xff]
        %v1057 = vld [vmem:[%s378 + $0x8e0] sm:$0xff]
        %v1058 = vld [vmem:[%s378 + $0x8e8] sm:$0xff]
        %v1059 = vld [vmem:[%s378 + $0x8f0] sm:$0xff]
        %v1060 = vld [vmem:[%s378 + $0x8f8] sm:$0xff]
        %v1061 = vld [vmem:[%s378 + $0x900] sm:$0xff]
        %v1062 = vld [vmem:[%s378 + $0x908] sm:$0xff]
        %v1063 = vld [vmem:[%s378 + $0x910] sm:$0xff]
        %v1064 = vld [vmem:[%s378 + $0x918] sm:$0xff]
        %v1065 = vld [vmem:[%s378 + $0x920] sm:$0xff]
        %v1066 = vld [vmem:[%s378 + $0x928] sm:$0xff]
        %v1067 = vld [vmem:[%s378 + $0x930] sm:$0xff]
        %v1068 = vld [vmem:[%s378 + $0x938] sm:$0xff]
        %v1069 = vld [vmem:[%s378 + $0x940] sm:$0xff]
        %v1070 = vld [vmem:[%s378 + $0x948] sm:$0xff]
        %v1071 = vld [vmem:[%s378 + $0x950] sm:$0xff]
        %v1072 = vld [vmem:[%s378 + $0x958] sm:$0xff]
        %v1073 = vld [vmem:[%s378 + $0x960] sm:$0xff]
        %v1074 = vld [vmem:[%s378 + $0x968] sm:$0xff]
        %v1075 = vld [vmem:[%s378 + $0x970] sm:$0xff]
        %v1076 = vld [vmem:[%s378 + $0x978] sm:$0xff]
        %v1077 = vld [vmem:[%s378 + $0x980] sm:$0xff]
        %v1078 = vld [vmem:[%s378 + $0x988] sm:$0xff]
        %v1079 = vld [vmem:[%s378 + $0x990] sm:$0xff]
        %v1080 = vld [vmem:[%s378 + $0x998] sm:$0xff]
        %v1081 = vld [vmem:[%s378 + $0x9a0] sm:$0xff]
        %v1082 = vld [vmem:[%s378 + $0x9a8] sm:$0xff]
        %v1083 = vld [vmem:[%s378 + $0x9b0] sm:$0xff]
        %v1084 = vld [vmem:[%s378 + $0x9b8] sm:$0xff]
        %v1085 = vld [vmem:[%s378 + $0x9c0] sm:$0xff]
        %v1086 = vld [vmem:[%s378 + $0x9c8] sm:$0xff]
        %v1087 = vld [vmem:[%s378 + $0x9d0] sm:$0xff]
        %v1088 = vld [vmem:[%s378 + $0x9d8] sm:$0xff]
        %v1089 = vld [vmem:[%s378 + $0x9e0] sm:$0xff]
        %v1090 = vld [vmem:[%s378 + $0x9e8] sm:$0xff]
        %v1091 = vld [vmem:[%s378 + $0x9f0] sm:$0xff]
        %v1092 = vld [vmem:[%s378 + $0x9f8] sm:$0xff]
        %v1093 = vld [vmem:[%s378 + $0xa00] sm:$0xff]
        %v1094 = vld [vmem:[%s378 + $0xa08] sm:$0xff]
        %v1095 = vld [vmem:[%s378 + $0xa10] sm:$0xff]
        %v1096 = vld [vmem:[%s378 + $0xa18] sm:$0xff]
        %v1097 = vld [vmem:[%s378 + $0xa20] sm:$0xff]
        %v1098 = vld [vmem:[%s378 + $0xa28] sm:$0xff]
        %v1099 = vld [vmem:[%s378 + $0xa30] sm:$0xff]
        %v1100 = vld [vmem:[%s378 + $0xa38] sm:$0xff]
        %v1101 = vld [vmem:[%s378 + $0xa40] sm:$0xff]
        %v1102 = vld [vmem:[%s378 + $0xa48] sm:$0xff]
        %v1103 = vld [vmem:[%s378 + $0xa50] sm:$0xff]
        %v1104 = vld [vmem:[%s378 + $0xa58] sm:$0xff]
        %v1105 = vld [vmem:[%s378 + $0xa60] sm:$0xff]
        %v1106 = vld [vmem:[%s378 + $0xa68] sm:$0xff]
        %v1107 = vld [vmem:[%s378 + $0xa70] sm:$0xff]
        %v1108 = vld [vmem:[%s378 + $0xa78] sm:$0xff]
        %v1109 = vld [vmem:[%s378 + $0xa80] sm:$0xff]
        %v1110 = vld [vmem:[%s378 + $0xa88] sm:$0xff]
        %v1111 = vld [vmem:[%s378 + $0xa90] sm:$0xff]
        %v1112 = vld [vmem:[%s378 + $0xa98] sm:$0xff]
        %v1113 = vld [vmem:[%s378 + $0xaa0] sm:$0xff]
        %v1114 = vld [vmem:[%s378 + $0xaa8] sm:$0xff]
        %v1115 = vld [vmem:[%s378 + $0xab0] sm:$0xff]
        %v1116 = vld [vmem:[%s378 + $0xab8] sm:$0xff]
        %v1117 = vld [vmem:[%s378 + $0xac0] sm:$0xff]
        %v1118 = vld [vmem:[%s378 + $0xac8] sm:$0xff]
        %v1119 = vld [vmem:[%s378 + $0xad0] sm:$0xff]
        %v1120 = vld [vmem:[%s378 + $0xad8] sm:$0xff]
        %v1121 = vld [vmem:[%s378 + $0xae0] sm:$0xff]
        %v1122 = vld [vmem:[%s378 + $0xae8] sm:$0xff]
        %v1123 = vld [vmem:[%s378 + $0xaf0] sm:$0xff]
        %v1124 = vld [vmem:[%s378 + $0xaf8] sm:$0xff]
        %v1125 = vld [vmem:[%s378 + $0xb00] sm:$0xff]
        %v1126 = vld [vmem:[%s378 + $0xb08] sm:$0xff]
        %v1127 = vld [vmem:[%s378 + $0xb10] sm:$0xff]
        %v1128 = vld [vmem:[%s378 + $0xb18] sm:$0xff]
        %v1129 = vld [vmem:[%s378 + $0xb20] sm:$0xff]
        %v1130 = vld [vmem:[%s378 + $0xb28] sm:$0xff]
        %v1131 = vld [vmem:[%s378 + $0xb30] sm:$0xff]
        %v1132 = vld [vmem:[%s378 + $0xb38] sm:$0xff]
        %v1133 = vld [vmem:[%s378 + $0xb40] sm:$0xff]
        %v1134 = vld [vmem:[%s378 + $0xb48] sm:$0xff]
        %v1135 = vld [vmem:[%s378 + $0xb50] sm:$0xff]
        %v1136 = vld [vmem:[%s378 + $0xb58] sm:$0xff]
        %v1137 = vld [vmem:[%s378 + $0xb60] sm:$0xff]
        %v1138 = vld [vmem:[%s378 + $0xb68] sm:$0xff]
        %v1139 = vld [vmem:[%s378 + $0xb70] sm:$0xff]
        %v1140 = vld [vmem:[%s378 + $0xb78] sm:$0xff]
        %v1141 = vld [vmem:[%s378 + $0xb80] sm:$0xff]
        %v1142 = vld [vmem:[%s378 + $0xb88] sm:$0xff]
        %v1143 = vld [vmem:[%s378 + $0xb90] sm:$0xff]
        %v1144 = vld [vmem:[%s378 + $0xb98] sm:$0xff]
        %v1145 = vld [vmem:[%s378 + $0xba0] sm:$0xff]
        %v1146 = vld [vmem:[%s378 + $0xba8] sm:$0xff]
        %v1147 = vld [vmem:[%s378 + $0xbb0] sm:$0xff]
        %v1148 = vld [vmem:[%s378 + $0xbb8] sm:$0xff]
        %v1149 = vld [vmem:[%s378 + $0xbc0] sm:$0xff]
        %v1150 = vld [vmem:[%s378 + $0xbc8] sm:$0xff]
        %v1151 = vld [vmem:[%s378 + $0xbd0] sm:$0xff]
        %v1152 = vld [vmem:[%s378 + $0xbd8] sm:$0xff]
        %v1153 = vld [vmem:[%s378 + $0xbe0] sm:$0xff]
        %v1154 = vld [vmem:[%s378 + $0xbe8] sm:$0xff]
        %v1155 = vld [vmem:[%s378 + $0xbf0] sm:$0xff]
        %v1156 = vld [vmem:[%s378 + $0xbf8] sm:$0xff]
        %v1157 = vld [vmem:[%s378 + $0xc00] sm:$0xff]
        %v1158 = vld [vmem:[%s378 + $0xc08] sm:$0xff]
        %v1159 = vld [vmem:[%s378 + $0xc10] sm:$0xff]
        %v1160 = vld [vmem:[%s378 + $0xc18] sm:$0xff]
        %v1161 = vld [vmem:[%s378 + $0xc20] sm:$0xff]
        %v1162 = vld [vmem:[%s378 + $0xc28] sm:$0xff]
        %v1163 = vld [vmem:[%s378 + $0xc30] sm:$0xff]
        %v1164 = vld [vmem:[%s378 + $0xc38] sm:$0xff]
        %v1165 = vld [vmem:[%s378 + $0xc40] sm:$0xff]
        %v1166 = vld [vmem:[%s378 + $0xc48] sm:$0xff]
        %v1167 = vld [vmem:[%s378 + $0xc50] sm:$0xff]
        %v1168 = vld [vmem:[%s378 + $0xc58] sm:$0xff]
        %v1169 = vld [vmem:[%s378 + $0xc60] sm:$0xff]
        %v1170 = vld [vmem:[%s378 + $0xc68] sm:$0xff]
        %v1171 = vld [vmem:[%s378 + $0xc70] sm:$0xff]
        %v1172 = vld [vmem:[%s378 + $0xc78] sm:$0xff]
        %v1173 = vld [vmem:[%s378 + $0xc80] sm:$0xff]
        %v1174 = vld [vmem:[%s378 + $0xc88] sm:$0xff]
        %v1175 = vld [vmem:[%s378 + $0xc90] sm:$0xff]
        %v1176 = vld [vmem:[%s378 + $0xc98] sm:$0xff]
        %v1177 = vld [vmem:[%s378 + $0xca0] sm:$0xff]
        %v1178 = vld [vmem:[%s378 + $0xca8] sm:$0xff]
        %v1179 = vld [vmem:[%s378 + $0xcb0] sm:$0xff]
        %v1180 = vld [vmem:[%s378 + $0xcb8] sm:$0xff]
        %v1181 = vld [vmem:[%s378 + $0xcc0] sm:$0xff]
        %v1182 = vld [vmem:[%s378 + $0xcc8] sm:$0xff]
        %v1183 = vld [vmem:[%s378 + $0xcd0] sm:$0xff]
        %v1184 = vld [vmem:[%s378 + $0xcd8] sm:$0xff]
        %v1185 = vld [vmem:[%s378 + $0xce0] sm:$0xff]
        %v1186 = vld [vmem:[%s378 + $0xce8] sm:$0xff]
        %v1187 = vld [vmem:[%s378 + $0xcf0] sm:$0xff]
        %v1188 = vld [vmem:[%s378 + $0xcf8] sm:$0xff]
        %v1189 = vld [vmem:[%s378 + $0xd00] sm:$0xff]
        %v1190 = vld [vmem:[%s378 + $0xd08] sm:$0xff]
        %v1191 = vld [vmem:[%s378 + $0xd10] sm:$0xff]
        %v1192 = vld [vmem:[%s378 + $0xd18] sm:$0xff]
        %v1193 = vld [vmem:[%s378 + $0xd20] sm:$0xff]
        %v1194 = vld [vmem:[%s378 + $0xd28] sm:$0xff]
        %v1195 = vld [vmem:[%s378 + $0xd30] sm:$0xff]
        %v1196 = vld [vmem:[%s378 + $0xd38] sm:$0xff]
        %v1197 = vld [vmem:[%s378 + $0xd40] sm:$0xff]
        %v1198 = vld [vmem:[%s378 + $0xd48] sm:$0xff]
        %v1199 = vld [vmem:[%s378 + $0xd50] sm:$0xff]
        %v1200 = vld [vmem:[%s378 + $0xd58] sm:$0xff]
        %v1201 = vld [vmem:[%s378 + $0xd60] sm:$0xff]
        %v1202 = vld [vmem:[%s378 + $0xd68] sm:$0xff]
        %v1203 = vld [vmem:[%s378 + $0xd70] sm:$0xff]
        %v1204 = vld [vmem:[%s378 + $0xd78] sm:$0xff]
        %v1205 = vld [vmem:[%s378 + $0xd80] sm:$0xff]
        %v1206 = vld [vmem:[%s378 + $0xd88] sm:$0xff]
        %v1207 = vld [vmem:[%s378 + $0xd90] sm:$0xff]
        %v1208 = vld [vmem:[%s378 + $0xd98] sm:$0xff]
        %v1209 = vld [vmem:[%s378 + $0xda0] sm:$0xff]
        %v1210 = vld [vmem:[%s378 + $0xda8] sm:$0xff]
        %v1211 = vld [vmem:[%s378 + $0xdb0] sm:$0xff]
        %v1212 = vld [vmem:[%s378 + $0xdb8] sm:$0xff]
        %v1213 = vld [vmem:[%s378 + $0xdc0] sm:$0xff]
        %v1214 = vld [vmem:[%s378 + $0xdc8] sm:$0xff]
        %v1215 = vld [vmem:[%s378 + $0xdd0] sm:$0xff]
        %v1216 = vld [vmem:[%s378 + $0xdd8] sm:$0xff]
        %v1217 = vld [vmem:[%s378 + $0xde0] sm:$0xff]
        %v1218 = vld [vmem:[%s378 + $0xde8] sm:$0xff]
        %v1219 = vld [vmem:[%s378 + $0xdf0] sm:$0xff]
        %v1220 = vld [vmem:[%s378 + $0xdf8] sm:$0xff]
        %v1221 = vld [vmem:[%s378 + $0xe00] sm:$0xff]
        %v1222 = vld [vmem:[%s378 + $0xe08] sm:$0xff]
        %v1223 = vld [vmem:[%s378 + $0xe10] sm:$0xff]
        %v1224 = vld [vmem:[%s378 + $0xe18] sm:$0xff]
        %v1225 = vld [vmem:[%s378 + $0xe20] sm:$0xff]
        %v1226 = vld [vmem:[%s378 + $0xe28] sm:$0xff]
        %v1227 = vld [vmem:[%s378 + $0xe30] sm:$0xff]
        %v1228 = vld [vmem:[%s378 + $0xe38] sm:$0xff]
        %v1229 = vld [vmem:[%s378 + $0xe40] sm:$0xff]
        %v1230 = vld [vmem:[%s378 + $0xe48] sm:$0xff]
        %v1231 = vld [vmem:[%s378 + $0xe50] sm:$0xff]
        %v1232 = vld [vmem:[%s378 + $0xe58] sm:$0xff]
        %v1233 = vld [vmem:[%s378 + $0xe60] sm:$0xff]
        %v1234 = vld [vmem:[%s378 + $0xe68] sm:$0xff]
        %v1235 = vld [vmem:[%s378 + $0xe70] sm:$0xff]
        %v1236 = vld [vmem:[%s378 + $0xe78] sm:$0xff]
        %v1237 = vld [vmem:[%s378 + $0xe80] sm:$0xff]
        %v1238 = vld [vmem:[%s378 + $0xe88] sm:$0xff]
        %v1239 = vld [vmem:[%s378 + $0xe90] sm:$0xff]
        %v1240 = vld [vmem:[%s378 + $0xe98] sm:$0xff]
        %v1241 = vld [vmem:[%s378 + $0xea0] sm:$0xff]
        %v1242 = vld [vmem:[%s378 + $0xea8] sm:$0xff]
        %v1243 = vld [vmem:[%s378 + $0xeb0] sm:$0xff]
        %v1244 = vld [vmem:[%s378 + $0xeb8] sm:$0xff]
        %v1245 = vld [vmem:[%s378 + $0xec0] sm:$0xff]
        %v1246 = vld [vmem:[%s378 + $0xec8] sm:$0xff]
        %v1247 = vld [vmem:[%s378 + $0xed0] sm:$0xff]
        %v1248 = vld [vmem:[%s378 + $0xed8] sm:$0xff]
        %v1249 = vld [vmem:[%s378 + $0xee0] sm:$0xff]
        %v1250 = vld [vmem:[%s378 + $0xee8] sm:$0xff]
        %v1251 = vld [vmem:[%s378 + $0xef0] sm:$0xff]
        %v1252 = vld [vmem:[%s378 + $0xef8] sm:$0xff]
        %v1253 = vld [vmem:[%s378 + $0xf00] sm:$0xff]
        %v1254 = vld [vmem:[%s378 + $0xf08] sm:$0xff]
        %v1255 = vld [vmem:[%s378 + $0xf10] sm:$0xff]
        %v1256 = vld [vmem:[%s378 + $0xf18] sm:$0xff]
        %v1257 = vld [vmem:[%s378 + $0xf20] sm:$0xff]
        %v1258 = vld [vmem:[%s378 + $0xf28] sm:$0xff]
        %v1259 = vld [vmem:[%s378 + $0xf30] sm:$0xff]
        %v1260 = vld [vmem:[%s378 + $0xf38] sm:$0xff]
        %v1261 = vld [vmem:[%s378 + $0xf40] sm:$0xff]
        %v1262 = vld [vmem:[%s378 + $0xf48] sm:$0xff]
        %v1263 = vld [vmem:[%s378 + $0xf50] sm:$0xff]
        %v1264 = vld [vmem:[%s378 + $0xf58] sm:$0xff]
        %v1265 = vld [vmem:[%s378 + $0xf60] sm:$0xff]
        %v1266 = vld [vmem:[%s378 + $0xf68] sm:$0xff]
        %v1267 = vld [vmem:[%s378 + $0xf70] sm:$0xff]
        %v1268 = vld [vmem:[%s378 + $0xf78] sm:$0xff]
        %v1269 = vld [vmem:[%s378 + $0xf80] sm:$0xff]
        %v1270 = vld [vmem:[%s378 + $0xf88] sm:$0xff]
        %v1271 = vld [vmem:[%s378 + $0xf90] sm:$0xff]
        %v1272 = vld [vmem:[%s378 + $0xf98] sm:$0xff]
        %v1273 = vld [vmem:[%s378 + $0xfa0] sm:$0xff]
        %v1274 = vld [vmem:[%s378 + $0xfa8] sm:$0xff]
        %v1275 = vld [vmem:[%s378 + $0xfb0] sm:$0xff]
        %v1276 = vld [vmem:[%s378 + $0xfb8] sm:$0xff]
        %v1277 = vld [vmem:[%s378 + $0xfc0] sm:$0xff]
        %v1278 = vld [vmem:[%s378 + $0xfc8] sm:$0xff]
        %v1279 = vld [vmem:[%s378 + $0xfd0] sm:$0xff]
        %v1280 = vld [vmem:[%s378 + $0xfd8] sm:$0xff]
        %v1281 = vld [vmem:[%s378 + $0xfe0] sm:$0xff]
        %v1282 = vld [vmem:[%s378 + $0xfe8] sm:$0xff]
        %v1283 = vld [vmem:[%s378 + $0xff0] sm:$0xff]
        %v1284 = vld [vmem:[%s378 + $0xff8] sm:$0xff]
        %v1285 = vld [vmem:[%s387] sm:$0xf]
        %v1287 = vlaneseq
        %v1288 = vshrl.u32 %v1287, 7
        %v1289 = vsub.s32 0, %v1288
        %v1290 = vrot.slane %v1285, %v1289
        %v1291 = vlaneseq
        %v1292 = vshrl.u32 %v1291, 7
        %v1293 = vsub.s32 1, %v1292
        %v1294 = vrot.slane %v1285, %v1293
        %v1295 = vlaneseq
        %v1296 = vshrl.u32 %v1295, 7
        %v1297 = vsub.s32 2, %v1296
        %v1298 = vrot.slane %v1285, %v1297
        %v1299 = vlaneseq
        %v1300 = vshrl.u32 %v1299, 7
        %v1301 = vsub.s32 3, %v1300
        %v1302 = vrot.slane %v1285, %v1301
        %v1315 = vunpack.c.l.b16 %v765
        %v1316 = vunpack.c.h.b16 %v765
        %v1317 = vunpack.c.l.b16 %v766
        %v1318 = vunpack.c.h.b16 %v766
        %v1319 = vunpack.c.l.b16 %v767
        %v1320 = vunpack.c.h.b16 %v767
        %v1321 = vunpack.c.l.b16 %v768
        %v1322 = vunpack.c.h.b16 %v768
        %v1323 = vunpack.c.l.b16 %v769
        %v1324 = vunpack.c.h.b16 %v769
        %v1325 = vunpack.c.l.b16 %v770
        %v1326 = vunpack.c.h.b16 %v770
        %v1327 = vunpack.c.l.b16 %v771
        %v1328 = vunpack.c.h.b16 %v771
        %v1329 = vunpack.c.l.b16 %v772
        %v1330 = vunpack.c.h.b16 %v772
        %v1331 = vpack.c.b16 %v1315, %v1315
        %v1332 = vpack.c.b16 %v1316, %v1316
        %v1333 = vpack.c.b16 %v1317, %v1317
        %v1334 = vpack.c.b16 %v1318, %v1318
        %v1335 = vpack.c.b16 %v1319, %v1319
        %v1336 = vpack.c.b16 %v1320, %v1320
        %v1337 = vpack.c.b16 %v1321, %v1321
        %v1338 = vpack.c.b16 %v1322, %v1322
        %v1339 = vpack.c.b16 %v1323, %v1323
        %v1340 = vpack.c.b16 %v1324, %v1324
        %v1341 = vpack.c.b16 %v1325, %v1325
        %v1342 = vpack.c.b16 %v1326, %v1326
        %v1343 = vpack.c.b16 %v1327, %v1327
        %v1344 = vpack.c.b16 %v1328, %v1328
        %v1345 = vpack.c.b16 %v1329, %v1329
        %v1346 = vpack.c.b16 %v1330, %v1330
        %v1875 = vunpack.c.l.b16 %v773
        %v1876 = vunpack.c.h.b16 %v773
        %v1877 = vunpack.c.l.b16 %v774
        %v1878 = vunpack.c.h.b16 %v774
        %v1879 = vunpack.c.l.b16 %v775
        %v1880 = vunpack.c.h.b16 %v775
        %v1881 = vunpack.c.l.b16 %v776
        %v1882 = vunpack.c.h.b16 %v776
        %v1883 = vunpack.c.l.b16 %v777
        %v1884 = vunpack.c.h.b16 %v777
        %v1885 = vunpack.c.l.b16 %v778
        %v1886 = vunpack.c.h.b16 %v778
        %v1887 = vunpack.c.l.b16 %v779
        %v1888 = vunpack.c.h.b16 %v779
        %v1889 = vunpack.c.l.b16 %v780
        %v1890 = vunpack.c.h.b16 %v780
        %v1891 = vunpack.c.l.b16 %v781
        %v1892 = vunpack.c.h.b16 %v781
        %v1893 = vunpack.c.l.b16 %v782
        %v1894 = vunpack.c.h.b16 %v782
        %v1895 = vunpack.c.l.b16 %v783
        %v1896 = vunpack.c.h.b16 %v783
        %v1897 = vunpack.c.l.b16 %v784
        %v1898 = vunpack.c.h.b16 %v784
        %v1899 = vunpack.c.l.b16 %v785
        %v1900 = vunpack.c.h.b16 %v785
        %v1901 = vunpack.c.l.b16 %v786
        %v1902 = vunpack.c.h.b16 %v786
        %v1903 = vunpack.c.l.b16 %v787
        %v1904 = vunpack.c.h.b16 %v787
        %v1905 = vunpack.c.l.b16 %v788
        %v1906 = vunpack.c.h.b16 %v788
        %v1907 = vunpack.c.l.b16 %v789
        %v1908 = vunpack.c.h.b16 %v789
        %v1909 = vunpack.c.l.b16 %v790
        %v1910 = vunpack.c.h.b16 %v790
        %v1911 = vunpack.c.l.b16 %v791
        %v1912 = vunpack.c.h.b16 %v791
        %v1913 = vunpack.c.l.b16 %v792
        %v1914 = vunpack.c.h.b16 %v792
        %v1915 = vunpack.c.l.b16 %v793
        %v1916 = vunpack.c.h.b16 %v793
        %v1917 = vunpack.c.l.b16 %v794
        %v1918 = vunpack.c.h.b16 %v794
        %v1919 = vunpack.c.l.b16 %v795
        %v1920 = vunpack.c.h.b16 %v795
        %v1921 = vunpack.c.l.b16 %v796
        %v1922 = vunpack.c.h.b16 %v796
        %v1923 = vunpack.c.l.b16 %v797
        %v1924 = vunpack.c.h.b16 %v797
        %v1925 = vunpack.c.l.b16 %v798
        %v1926 = vunpack.c.h.b16 %v798
        %v1927 = vunpack.c.l.b16 %v799
        %v1928 = vunpack.c.h.b16 %v799
        %v1929 = vunpack.c.l.b16 %v800
        %v1930 = vunpack.c.h.b16 %v800
        %v1931 = vunpack.c.l.b16 %v801
        %v1932 = vunpack.c.h.b16 %v801
        %v1933 = vunpack.c.l.b16 %v802
        %v1934 = vunpack.c.h.b16 %v802
        %v1935 = vunpack.c.l.b16 %v803
        %v1936 = vunpack.c.h.b16 %v803
        %v1937 = vunpack.c.l.b16 %v804
        %v1938 = vunpack.c.h.b16 %v804
        %v1939 = vunpack.c.l.b16 %v805
        %v1940 = vunpack.c.h.b16 %v805
        %v1941 = vunpack.c.l.b16 %v806
        %v1942 = vunpack.c.h.b16 %v806
        %v1943 = vunpack.c.l.b16 %v807
        %v1944 = vunpack.c.h.b16 %v807
        %v1945 = vunpack.c.l.b16 %v808
        %v1946 = vunpack.c.h.b16 %v808
        %v1947 = vunpack.c.l.b16 %v809
        %v1948 = vunpack.c.h.b16 %v809
        %v1949 = vunpack.c.l.b16 %v810
        %v1950 = vunpack.c.h.b16 %v810
        %v1951 = vunpack.c.l.b16 %v811
        %v1952 = vunpack.c.h.b16 %v811
        %v1953 = vunpack.c.l.b16 %v812
        %v1954 = vunpack.c.h.b16 %v812
        %v1955 = vunpack.c.l.b16 %v813
        %v1956 = vunpack.c.h.b16 %v813
        %v1957 = vunpack.c.l.b16 %v814
        %v1958 = vunpack.c.h.b16 %v814
        %v1959 = vunpack.c.l.b16 %v815
        %v1960 = vunpack.c.h.b16 %v815
        %v1961 = vunpack.c.l.b16 %v816
        %v1962 = vunpack.c.h.b16 %v816
        %v1963 = vunpack.c.l.b16 %v817
        %v1964 = vunpack.c.h.b16 %v817
        %v1965 = vunpack.c.l.b16 %v818
        %v1966 = vunpack.c.h.b16 %v818
        %v1967 = vunpack.c.l.b16 %v819
        %v1968 = vunpack.c.h.b16 %v819
        %v1969 = vunpack.c.l.b16 %v820
        %v1970 = vunpack.c.h.b16 %v820
        %v1971 = vunpack.c.l.b16 %v821
        %v1972 = vunpack.c.h.b16 %v821
        %v1973 = vunpack.c.l.b16 %v822
        %v1974 = vunpack.c.h.b16 %v822
        %v1975 = vunpack.c.l.b16 %v823
        %v1976 = vunpack.c.h.b16 %v823
        %v1977 = vunpack.c.l.b16 %v824
        %v1978 = vunpack.c.h.b16 %v824
        %v1979 = vunpack.c.l.b16 %v825
        %v1980 = vunpack.c.h.b16 %v825
        %v1981 = vunpack.c.l.b16 %v826
        %v1982 = vunpack.c.h.b16 %v826
        %v1983 = vunpack.c.l.b16 %v827
        %v1984 = vunpack.c.h.b16 %v827
        %v1985 = vunpack.c.l.b16 %v828
        %v1986 = vunpack.c.h.b16 %v828
        %v1987 = vunpack.c.l.b16 %v829
        %v1988 = vunpack.c.h.b16 %v829
        %v1989 = vunpack.c.l.b16 %v830
        %v1990 = vunpack.c.h.b16 %v830
        %v1991 = vunpack.c.l.b16 %v831
        %v1992 = vunpack.c.h.b16 %v831
        %v1993 = vunpack.c.l.b16 %v832
        %v1994 = vunpack.c.h.b16 %v832
        %v1995 = vunpack.c.l.b16 %v833
        %v1996 = vunpack.c.h.b16 %v833
        %v1997 = vunpack.c.l.b16 %v834
        %v1998 = vunpack.c.h.b16 %v834
        %v1999 = vunpack.c.l.b16 %v835
        %v2000 = vunpack.c.h.b16 %v835
        %v2001 = vunpack.c.l.b16 %v836
        %v2002 = vunpack.c.h.b16 %v836
        %v2003 = vunpack.c.l.b16 %v837
        %v2004 = vunpack.c.h.b16 %v837
        %v2005 = vunpack.c.l.b16 %v838
        %v2006 = vunpack.c.h.b16 %v838
        %v2007 = vunpack.c.l.b16 %v839
        %v2008 = vunpack.c.h.b16 %v839
        %v2009 = vunpack.c.l.b16 %v840
        %v2010 = vunpack.c.h.b16 %v840
        %v2011 = vunpack.c.l.b16 %v841
        %v2012 = vunpack.c.h.b16 %v841
        %v2013 = vunpack.c.l.b16 %v842
        %v2014 = vunpack.c.h.b16 %v842
        %v2015 = vunpack.c.l.b16 %v843
        %v2016 = vunpack.c.h.b16 %v843
        %v2017 = vunpack.c.l.b16 %v844
        %v2018 = vunpack.c.h.b16 %v844
        %v2019 = vunpack.c.l.b16 %v845
        %v2020 = vunpack.c.h.b16 %v845
        %v2021 = vunpack.c.l.b16 %v846
        %v2022 = vunpack.c.h.b16 %v846
        %v2023 = vunpack.c.l.b16 %v847
        %v2024 = vunpack.c.h.b16 %v847
        %v2025 = vunpack.c.l.b16 %v848
        %v2026 = vunpack.c.h.b16 %v848
        %v2027 = vunpack.c.l.b16 %v849
        %v2028 = vunpack.c.h.b16 %v849
        %v2029 = vunpack.c.l.b16 %v850
        %v2030 = vunpack.c.h.b16 %v850
        %v2031 = vunpack.c.l.b16 %v851
        %v2032 = vunpack.c.h.b16 %v851
        %v2033 = vunpack.c.l.b16 %v852
        %v2034 = vunpack.c.h.b16 %v852
        %v2035 = vunpack.c.l.b16 %v853
        %v2036 = vunpack.c.h.b16 %v853
        %v2037 = vunpack.c.l.b16 %v854
        %v2038 = vunpack.c.h.b16 %v854
        %v2039 = vunpack.c.l.b16 %v855
        %v2040 = vunpack.c.h.b16 %v855
        %v2041 = vunpack.c.l.b16 %v856
        %v2042 = vunpack.c.h.b16 %v856
        %v2043 = vunpack.c.l.b16 %v857
        %v2044 = vunpack.c.h.b16 %v857
        %v2045 = vunpack.c.l.b16 %v858
        %v2046 = vunpack.c.h.b16 %v858
        %v2047 = vunpack.c.l.b16 %v859
        %v2048 = vunpack.c.h.b16 %v859
        %v2049 = vunpack.c.l.b16 %v860
        %v2050 = vunpack.c.h.b16 %v860
        %v2051 = vunpack.c.l.b16 %v861
        %v2052 = vunpack.c.h.b16 %v861
        %v2053 = vunpack.c.l.b16 %v862
        %v2054 = vunpack.c.h.b16 %v862
        %v2055 = vunpack.c.l.b16 %v863
        %v2056 = vunpack.c.h.b16 %v863
        %v2057 = vunpack.c.l.b16 %v864
        %v2058 = vunpack.c.h.b16 %v864
        %v2059 = vunpack.c.l.b16 %v865
        %v2060 = vunpack.c.h.b16 %v865
        %v2061 = vunpack.c.l.b16 %v866
        %v2062 = vunpack.c.h.b16 %v866
        %v2063 = vunpack.c.l.b16 %v867
        %v2064 = vunpack.c.h.b16 %v867
        %v2065 = vunpack.c.l.b16 %v868
        %v2066 = vunpack.c.h.b16 %v868
        %v2067 = vunpack.c.l.b16 %v869
        %v2068 = vunpack.c.h.b16 %v869
        %v2069 = vunpack.c.l.b16 %v870
        %v2070 = vunpack.c.h.b16 %v870
        %v2071 = vunpack.c.l.b16 %v871
        %v2072 = vunpack.c.h.b16 %v871
        %v2073 = vunpack.c.l.b16 %v872
        %v2074 = vunpack.c.h.b16 %v872
        %v2075 = vunpack.c.l.b16 %v873
        %v2076 = vunpack.c.h.b16 %v873
        %v2077 = vunpack.c.l.b16 %v874
        %v2078 = vunpack.c.h.b16 %v874
        %v2079 = vunpack.c.l.b16 %v875
        %v2080 = vunpack.c.h.b16 %v875
        %v2081 = vunpack.c.l.b16 %v876
        %v2082 = vunpack.c.h.b16 %v876
        %v2083 = vunpack.c.l.b16 %v877
        %v2084 = vunpack.c.h.b16 %v877
        %v2085 = vunpack.c.l.b16 %v878
        %v2086 = vunpack.c.h.b16 %v878
        %v2087 = vunpack.c.l.b16 %v879
        %v2088 = vunpack.c.h.b16 %v879
        %v2089 = vunpack.c.l.b16 %v880
        %v2090 = vunpack.c.h.b16 %v880
        %v2091 = vunpack.c.l.b16 %v881
        %v2092 = vunpack.c.h.b16 %v881
        %v2093 = vunpack.c.l.b16 %v882
        %v2094 = vunpack.c.h.b16 %v882
        %v2095 = vunpack.c.l.b16 %v883
        %v2096 = vunpack.c.h.b16 %v883
        %v2097 = vunpack.c.l.b16 %v884
        %v2098 = vunpack.c.h.b16 %v884
        %v2099 = vunpack.c.l.b16 %v885
        %v2100 = vunpack.c.h.b16 %v885
        %v2101 = vunpack.c.l.b16 %v886
        %v2102 = vunpack.c.h.b16 %v886
        %v2103 = vunpack.c.l.b16 %v887
        %v2104 = vunpack.c.h.b16 %v887
        %v2105 = vunpack.c.l.b16 %v888
        %v2106 = vunpack.c.h.b16 %v888
        %v2107 = vunpack.c.l.b16 %v889
        %v2108 = vunpack.c.h.b16 %v889
        %v2109 = vunpack.c.l.b16 %v890
        %v2110 = vunpack.c.h.b16 %v890
        %v2111 = vunpack.c.l.b16 %v891
        %v2112 = vunpack.c.h.b16 %v891
        %v2113 = vunpack.c.l.b16 %v892
        %v2114 = vunpack.c.h.b16 %v892
        %v2115 = vunpack.c.l.b16 %v893
        %v2116 = vunpack.c.h.b16 %v893
        %v2117 = vunpack.c.l.b16 %v894
        %v2118 = vunpack.c.h.b16 %v894
        %v2119 = vunpack.c.l.b16 %v895
        %v2120 = vunpack.c.h.b16 %v895
        %v2121 = vunpack.c.l.b16 %v896
        %v2122 = vunpack.c.h.b16 %v896
        %v2123 = vunpack.c.l.b16 %v897
        %v2124 = vunpack.c.h.b16 %v897
        %v2125 = vunpack.c.l.b16 %v898
        %v2126 = vunpack.c.h.b16 %v898
        %v2127 = vunpack.c.l.b16 %v899
        %v2128 = vunpack.c.h.b16 %v899
        %v2129 = vunpack.c.l.b16 %v900
        %v2130 = vunpack.c.h.b16 %v900
        %v2131 = vunpack.c.l.b16 %v901
        %v2132 = vunpack.c.h.b16 %v901
        %v2133 = vunpack.c.l.b16 %v902
        %v2134 = vunpack.c.h.b16 %v902
        %v2135 = vunpack.c.l.b16 %v903
        %v2136 = vunpack.c.h.b16 %v903
        %v2137 = vunpack.c.l.b16 %v904
        %v2138 = vunpack.c.h.b16 %v904
        %v2139 = vunpack.c.l.b16 %v905
        %v2140 = vunpack.c.h.b16 %v905
        %v2141 = vunpack.c.l.b16 %v906
        %v2142 = vunpack.c.h.b16 %v906
        %v2143 = vunpack.c.l.b16 %v907
        %v2144 = vunpack.c.h.b16 %v907
        %v2145 = vunpack.c.l.b16 %v908
        %v2146 = vunpack.c.h.b16 %v908
        %v2147 = vunpack.c.l.b16 %v909
        %v2148 = vunpack.c.h.b16 %v909
        %v2149 = vunpack.c.l.b16 %v910
        %v2150 = vunpack.c.h.b16 %v910
        %v2151 = vunpack.c.l.b16 %v911
        %v2152 = vunpack.c.h.b16 %v911
        %v2153 = vunpack.c.l.b16 %v912
        %v2154 = vunpack.c.h.b16 %v912
        %v2155 = vunpack.c.l.b16 %v913
        %v2156 = vunpack.c.h.b16 %v913
        %v2157 = vunpack.c.l.b16 %v914
        %v2158 = vunpack.c.h.b16 %v914
        %v2159 = vunpack.c.l.b16 %v915
        %v2160 = vunpack.c.h.b16 %v915
        %v2161 = vunpack.c.l.b16 %v916
        %v2162 = vunpack.c.h.b16 %v916
        %v2163 = vunpack.c.l.b16 %v917
        %v2164 = vunpack.c.h.b16 %v917
        %v2165 = vunpack.c.l.b16 %v918
        %v2166 = vunpack.c.h.b16 %v918
        %v2167 = vunpack.c.l.b16 %v919
        %v2168 = vunpack.c.h.b16 %v919
        %v2169 = vunpack.c.l.b16 %v920
        %v2170 = vunpack.c.h.b16 %v920
        %v2171 = vunpack.c.l.b16 %v921
        %v2172 = vunpack.c.h.b16 %v921
        %v2173 = vunpack.c.l.b16 %v922
        %v2174 = vunpack.c.h.b16 %v922
        %v2175 = vunpack.c.l.b16 %v923
        %v2176 = vunpack.c.h.b16 %v923
        %v2177 = vunpack.c.l.b16 %v924
        %v2178 = vunpack.c.h.b16 %v924
        %v2179 = vunpack.c.l.b16 %v925
        %v2180 = vunpack.c.h.b16 %v925
        %v2181 = vunpack.c.l.b16 %v926
        %v2182 = vunpack.c.h.b16 %v926
        %v2183 = vunpack.c.l.b16 %v927
        %v2184 = vunpack.c.h.b16 %v927
        %v2185 = vunpack.c.l.b16 %v928
        %v2186 = vunpack.c.h.b16 %v928
        %v2187 = vunpack.c.l.b16 %v929
        %v2188 = vunpack.c.h.b16 %v929
        %v2189 = vunpack.c.l.b16 %v930
        %v2190 = vunpack.c.h.b16 %v930
        %v2191 = vunpack.c.l.b16 %v931
        %v2192 = vunpack.c.h.b16 %v931
        %v2193 = vunpack.c.l.b16 %v932
        %v2194 = vunpack.c.h.b16 %v932
        %v2195 = vunpack.c.l.b16 %v933
        %v2196 = vunpack.c.h.b16 %v933
        %v2197 = vunpack.c.l.b16 %v934
        %v2198 = vunpack.c.h.b16 %v934
        %v2199 = vunpack.c.l.b16 %v935
        %v2200 = vunpack.c.h.b16 %v935
        %v2201 = vunpack.c.l.b16 %v936
        %v2202 = vunpack.c.h.b16 %v936
        %v2203 = vunpack.c.l.b16 %v937
        %v2204 = vunpack.c.h.b16 %v937
        %v2205 = vunpack.c.l.b16 %v938
        %v2206 = vunpack.c.h.b16 %v938
        %v2207 = vunpack.c.l.b16 %v939
        %v2208 = vunpack.c.h.b16 %v939
        %v2209 = vunpack.c.l.b16 %v940
        %v2210 = vunpack.c.h.b16 %v940
        %v2211 = vunpack.c.l.b16 %v941
        %v2212 = vunpack.c.h.b16 %v941
        %v2213 = vunpack.c.l.b16 %v942
        %v2214 = vunpack.c.h.b16 %v942
        %v2215 = vunpack.c.l.b16 %v943
        %v2216 = vunpack.c.h.b16 %v943
        %v2217 = vunpack.c.l.b16 %v944
        %v2218 = vunpack.c.h.b16 %v944
        %v2219 = vunpack.c.l.b16 %v945
        %v2220 = vunpack.c.h.b16 %v945
        %v2221 = vunpack.c.l.b16 %v946
        %v2222 = vunpack.c.h.b16 %v946
        %v2223 = vunpack.c.l.b16 %v947
        %v2224 = vunpack.c.h.b16 %v947
        %v2225 = vunpack.c.l.b16 %v948
        %v2226 = vunpack.c.h.b16 %v948
        %v2227 = vunpack.c.l.b16 %v949
        %v2228 = vunpack.c.h.b16 %v949
        %v2229 = vunpack.c.l.b16 %v950
        %v2230 = vunpack.c.h.b16 %v950
        %v2231 = vunpack.c.l.b16 %v951
        %v2232 = vunpack.c.h.b16 %v951
        %v2233 = vunpack.c.l.b16 %v952
        %v2234 = vunpack.c.h.b16 %v952
        %v2235 = vunpack.c.l.b16 %v953
        %v2236 = vunpack.c.h.b16 %v953
        %v2237 = vunpack.c.l.b16 %v954
        %v2238 = vunpack.c.h.b16 %v954
        %v2239 = vunpack.c.l.b16 %v955
        %v2240 = vunpack.c.h.b16 %v955
        %v2241 = vunpack.c.l.b16 %v956
        %v2242 = vunpack.c.h.b16 %v956
        %v2243 = vunpack.c.l.b16 %v957
        %v2244 = vunpack.c.h.b16 %v957
        %v2245 = vunpack.c.l.b16 %v958
        %v2246 = vunpack.c.h.b16 %v958
        %v2247 = vunpack.c.l.b16 %v959
        %v2248 = vunpack.c.h.b16 %v959
        %v2249 = vunpack.c.l.b16 %v960
        %v2250 = vunpack.c.h.b16 %v960
        %v2251 = vunpack.c.l.b16 %v961
        %v2252 = vunpack.c.h.b16 %v961
        %v2253 = vunpack.c.l.b16 %v962
        %v2254 = vunpack.c.h.b16 %v962
        %v2255 = vunpack.c.l.b16 %v963
        %v2256 = vunpack.c.h.b16 %v963
        %v2257 = vunpack.c.l.b16 %v964
        %v2258 = vunpack.c.h.b16 %v964
        %v2259 = vunpack.c.l.b16 %v965
        %v2260 = vunpack.c.h.b16 %v965
        %v2261 = vunpack.c.l.b16 %v966
        %v2262 = vunpack.c.h.b16 %v966
        %v2263 = vunpack.c.l.b16 %v967
        %v2264 = vunpack.c.h.b16 %v967
        %v2265 = vunpack.c.l.b16 %v968
        %v2266 = vunpack.c.h.b16 %v968
        %v2267 = vunpack.c.l.b16 %v969
        %v2268 = vunpack.c.h.b16 %v969
        %v2269 = vunpack.c.l.b16 %v970
        %v2270 = vunpack.c.h.b16 %v970
        %v2271 = vunpack.c.l.b16 %v971
        %v2272 = vunpack.c.h.b16 %v971
        %v2273 = vunpack.c.l.b16 %v972
        %v2274 = vunpack.c.h.b16 %v972
        %v2275 = vunpack.c.l.b16 %v973
        %v2276 = vunpack.c.h.b16 %v973
        %v2277 = vunpack.c.l.b16 %v974
        %v2278 = vunpack.c.h.b16 %v974
        %v2279 = vunpack.c.l.b16 %v975
        %v2280 = vunpack.c.h.b16 %v975
        %v2281 = vunpack.c.l.b16 %v976
        %v2282 = vunpack.c.h.b16 %v976
        %v2283 = vunpack.c.l.b16 %v977
        %v2284 = vunpack.c.h.b16 %v977
        %v2285 = vunpack.c.l.b16 %v978
        %v2286 = vunpack.c.h.b16 %v978
        %v2287 = vunpack.c.l.b16 %v979
        %v2288 = vunpack.c.h.b16 %v979
        %v2289 = vunpack.c.l.b16 %v980
        %v2290 = vunpack.c.h.b16 %v980
        %v2291 = vunpack.c.l.b16 %v981
        %v2292 = vunpack.c.h.b16 %v981
        %v2293 = vunpack.c.l.b16 %v982
        %v2294 = vunpack.c.h.b16 %v982
        %v2295 = vunpack.c.l.b16 %v983
        %v2296 = vunpack.c.h.b16 %v983
        %v2297 = vunpack.c.l.b16 %v984
        %v2298 = vunpack.c.h.b16 %v984
        %v2299 = vunpack.c.l.b16 %v985
        %v2300 = vunpack.c.h.b16 %v985
        %v2301 = vunpack.c.l.b16 %v986
        %v2302 = vunpack.c.h.b16 %v986
        %v2303 = vunpack.c.l.b16 %v987
        %v2304 = vunpack.c.h.b16 %v987
        %v2305 = vunpack.c.l.b16 %v988
        %v2306 = vunpack.c.h.b16 %v988
        %v2307 = vunpack.c.l.b16 %v989
        %v2308 = vunpack.c.h.b16 %v989
        %v2309 = vunpack.c.l.b16 %v990
        %v2310 = vunpack.c.h.b16 %v990
        %v2311 = vunpack.c.l.b16 %v991
        %v2312 = vunpack.c.h.b16 %v991
        %v2313 = vunpack.c.l.b16 %v992
        %v2314 = vunpack.c.h.b16 %v992
        %v2315 = vunpack.c.l.b16 %v993
        %v2316 = vunpack.c.h.b16 %v993
        %v2317 = vunpack.c.l.b16 %v994
        %v2318 = vunpack.c.h.b16 %v994
        %v2319 = vunpack.c.l.b16 %v995
        %v2320 = vunpack.c.h.b16 %v995
        %v2321 = vunpack.c.l.b16 %v996
        %v2322 = vunpack.c.h.b16 %v996
        %v2323 = vunpack.c.l.b16 %v997
        %v2324 = vunpack.c.h.b16 %v997
        %v2325 = vunpack.c.l.b16 %v998
        %v2326 = vunpack.c.h.b16 %v998
        %v2327 = vunpack.c.l.b16 %v999
        %v2328 = vunpack.c.h.b16 %v999
        %v2329 = vunpack.c.l.b16 %v1000
        %v2330 = vunpack.c.h.b16 %v1000
        %v2331 = vunpack.c.l.b16 %v1001
        %v2332 = vunpack.c.h.b16 %v1001
        %v2333 = vunpack.c.l.b16 %v1002
        %v2334 = vunpack.c.h.b16 %v1002
        %v2335 = vunpack.c.l.b16 %v1003
        %v2336 = vunpack.c.h.b16 %v1003
        %v2337 = vunpack.c.l.b16 %v1004
        %v2338 = vunpack.c.h.b16 %v1004
        %v2339 = vunpack.c.l.b16 %v1005
        %v2340 = vunpack.c.h.b16 %v1005
        %v2341 = vunpack.c.l.b16 %v1006
        %v2342 = vunpack.c.h.b16 %v1006
        %v2343 = vunpack.c.l.b16 %v1007
        %v2344 = vunpack.c.h.b16 %v1007
        %v2345 = vunpack.c.l.b16 %v1008
        %v2346 = vunpack.c.h.b16 %v1008
        %v2347 = vunpack.c.l.b16 %v1009
        %v2348 = vunpack.c.h.b16 %v1009
        %v2349 = vunpack.c.l.b16 %v1010
        %v2350 = vunpack.c.h.b16 %v1010
        %v2351 = vunpack.c.l.b16 %v1011
        %v2352 = vunpack.c.h.b16 %v1011
        %v2353 = vunpack.c.l.b16 %v1012
        %v2354 = vunpack.c.h.b16 %v1012
        %v2355 = vunpack.c.l.b16 %v1013
        %v2356 = vunpack.c.h.b16 %v1013
        %v2357 = vunpack.c.l.b16 %v1014
        %v2358 = vunpack.c.h.b16 %v1014
        %v2359 = vunpack.c.l.b16 %v1015
        %v2360 = vunpack.c.h.b16 %v1015
        %v2361 = vunpack.c.l.b16 %v1016
        %v2362 = vunpack.c.h.b16 %v1016
        %v2363 = vunpack.c.l.b16 %v1017
        %v2364 = vunpack.c.h.b16 %v1017
        %v2365 = vunpack.c.l.b16 %v1018
        %v2366 = vunpack.c.h.b16 %v1018
        %v2367 = vunpack.c.l.b16 %v1019
        %v2368 = vunpack.c.h.b16 %v1019
        %v2369 = vunpack.c.l.b16 %v1020
        %v2370 = vunpack.c.h.b16 %v1020
        %v2371 = vunpack.c.l.b16 %v1021
        %v2372 = vunpack.c.h.b16 %v1021
        %v2373 = vunpack.c.l.b16 %v1022
        %v2374 = vunpack.c.h.b16 %v1022
        %v2375 = vunpack.c.l.b16 %v1023
        %v2376 = vunpack.c.h.b16 %v1023
        %v2377 = vunpack.c.l.b16 %v1024
        %v2378 = vunpack.c.h.b16 %v1024
        %v2379 = vunpack.c.l.b16 %v1025
        %v2380 = vunpack.c.h.b16 %v1025
        %v2381 = vunpack.c.l.b16 %v1026
        %v2382 = vunpack.c.h.b16 %v1026
        %v2383 = vunpack.c.l.b16 %v1027
        %v2384 = vunpack.c.h.b16 %v1027
        %v2385 = vunpack.c.l.b16 %v1028
        %v2386 = vunpack.c.h.b16 %v1028
        %v2387 = vunpack.c.l.b16 %v1029
        %v2388 = vunpack.c.h.b16 %v1029
        %v2389 = vunpack.c.l.b16 %v1030
        %v2390 = vunpack.c.h.b16 %v1030
        %v2391 = vunpack.c.l.b16 %v1031
        %v2392 = vunpack.c.h.b16 %v1031
        %v2393 = vunpack.c.l.b16 %v1032
        %v2394 = vunpack.c.h.b16 %v1032
        %v2395 = vunpack.c.l.b16 %v1033
        %v2396 = vunpack.c.h.b16 %v1033
        %v2397 = vunpack.c.l.b16 %v1034
        %v2398 = vunpack.c.h.b16 %v1034
        %v2399 = vunpack.c.l.b16 %v1035
        %v2400 = vunpack.c.h.b16 %v1035
        %v2401 = vunpack.c.l.b16 %v1036
        %v2402 = vunpack.c.h.b16 %v1036
        %v2403 = vunpack.c.l.b16 %v1037
        %v2404 = vunpack.c.h.b16 %v1037
        %v2405 = vunpack.c.l.b16 %v1038
        %v2406 = vunpack.c.h.b16 %v1038
        %v2407 = vunpack.c.l.b16 %v1039
        %v2408 = vunpack.c.h.b16 %v1039
        %v2409 = vunpack.c.l.b16 %v1040
        %v2410 = vunpack.c.h.b16 %v1040
        %v2411 = vunpack.c.l.b16 %v1041
        %v2412 = vunpack.c.h.b16 %v1041
        %v2413 = vunpack.c.l.b16 %v1042
        %v2414 = vunpack.c.h.b16 %v1042
        %v2415 = vunpack.c.l.b16 %v1043
        %v2416 = vunpack.c.h.b16 %v1043
        %v2417 = vunpack.c.l.b16 %v1044
        %v2418 = vunpack.c.h.b16 %v1044
        %v2419 = vunpack.c.l.b16 %v1045
        %v2420 = vunpack.c.h.b16 %v1045
        %v2421 = vunpack.c.l.b16 %v1046
        %v2422 = vunpack.c.h.b16 %v1046
        %v2423 = vunpack.c.l.b16 %v1047
        %v2424 = vunpack.c.h.b16 %v1047
        %v2425 = vunpack.c.l.b16 %v1048
        %v2426 = vunpack.c.h.b16 %v1048
        %v2427 = vunpack.c.l.b16 %v1049
        %v2428 = vunpack.c.h.b16 %v1049
        %v2429 = vunpack.c.l.b16 %v1050
        %v2430 = vunpack.c.h.b16 %v1050
        %v2431 = vunpack.c.l.b16 %v1051
        %v2432 = vunpack.c.h.b16 %v1051
        %v2433 = vunpack.c.l.b16 %v1052
        %v2434 = vunpack.c.h.b16 %v1052
        %v2435 = vunpack.c.l.b16 %v1053
        %v2436 = vunpack.c.h.b16 %v1053
        %v2437 = vunpack.c.l.b16 %v1054
        %v2438 = vunpack.c.h.b16 %v1054
        %v2439 = vunpack.c.l.b16 %v1055
        %v2440 = vunpack.c.h.b16 %v1055
        %v2441 = vunpack.c.l.b16 %v1056
        %v2442 = vunpack.c.h.b16 %v1056
        %v2443 = vunpack.c.l.b16 %v1057
        %v2444 = vunpack.c.h.b16 %v1057
        %v2445 = vunpack.c.l.b16 %v1058
        %v2446 = vunpack.c.h.b16 %v1058
        %v2447 = vunpack.c.l.b16 %v1059
        %v2448 = vunpack.c.h.b16 %v1059
        %v2449 = vunpack.c.l.b16 %v1060
        %v2450 = vunpack.c.h.b16 %v1060
        %v2451 = vunpack.c.l.b16 %v1061
        %v2452 = vunpack.c.h.b16 %v1061
        %v2453 = vunpack.c.l.b16 %v1062
        %v2454 = vunpack.c.h.b16 %v1062
        %v2455 = vunpack.c.l.b16 %v1063
        %v2456 = vunpack.c.h.b16 %v1063
        %v2457 = vunpack.c.l.b16 %v1064
        %v2458 = vunpack.c.h.b16 %v1064
        %v2459 = vunpack.c.l.b16 %v1065
        %v2460 = vunpack.c.h.b16 %v1065
        %v2461 = vunpack.c.l.b16 %v1066
        %v2462 = vunpack.c.h.b16 %v1066
        %v2463 = vunpack.c.l.b16 %v1067
        %v2464 = vunpack.c.h.b16 %v1067
        %v2465 = vunpack.c.l.b16 %v1068
        %v2466 = vunpack.c.h.b16 %v1068
        %v2467 = vunpack.c.l.b16 %v1069
        %v2468 = vunpack.c.h.b16 %v1069
        %v2469 = vunpack.c.l.b16 %v1070
        %v2470 = vunpack.c.h.b16 %v1070
        %v2471 = vunpack.c.l.b16 %v1071
        %v2472 = vunpack.c.h.b16 %v1071
        %v2473 = vunpack.c.l.b16 %v1072
        %v2474 = vunpack.c.h.b16 %v1072
        %v2475 = vunpack.c.l.b16 %v1073
        %v2476 = vunpack.c.h.b16 %v1073
        %v2477 = vunpack.c.l.b16 %v1074
        %v2478 = vunpack.c.h.b16 %v1074
        %v2479 = vunpack.c.l.b16 %v1075
        %v2480 = vunpack.c.h.b16 %v1075
        %v2481 = vunpack.c.l.b16 %v1076
        %v2482 = vunpack.c.h.b16 %v1076
        %v2483 = vunpack.c.l.b16 %v1077
        %v2484 = vunpack.c.h.b16 %v1077
        %v2485 = vunpack.c.l.b16 %v1078
        %v2486 = vunpack.c.h.b16 %v1078
        %v2487 = vunpack.c.l.b16 %v1079
        %v2488 = vunpack.c.h.b16 %v1079
        %v2489 = vunpack.c.l.b16 %v1080
        %v2490 = vunpack.c.h.b16 %v1080
        %v2491 = vunpack.c.l.b16 %v1081
        %v2492 = vunpack.c.h.b16 %v1081
        %v2493 = vunpack.c.l.b16 %v1082
        %v2494 = vunpack.c.h.b16 %v1082
        %v2495 = vunpack.c.l.b16 %v1083
        %v2496 = vunpack.c.h.b16 %v1083
        %v2497 = vunpack.c.l.b16 %v1084
        %v2498 = vunpack.c.h.b16 %v1084
        %v2499 = vunpack.c.l.b16 %v1085
        %v2500 = vunpack.c.h.b16 %v1085
        %v2501 = vunpack.c.l.b16 %v1086
        %v2502 = vunpack.c.h.b16 %v1086
        %v2503 = vunpack.c.l.b16 %v1087
        %v2504 = vunpack.c.h.b16 %v1087
        %v2505 = vunpack.c.l.b16 %v1088
        %v2506 = vunpack.c.h.b16 %v1088
        %v2507 = vunpack.c.l.b16 %v1089
        %v2508 = vunpack.c.h.b16 %v1089
        %v2509 = vunpack.c.l.b16 %v1090
        %v2510 = vunpack.c.h.b16 %v1090
        %v2511 = vunpack.c.l.b16 %v1091
        %v2512 = vunpack.c.h.b16 %v1091
        %v2513 = vunpack.c.l.b16 %v1092
        %v2514 = vunpack.c.h.b16 %v1092
        %v2515 = vunpack.c.l.b16 %v1093
        %v2516 = vunpack.c.h.b16 %v1093
        %v2517 = vunpack.c.l.b16 %v1094
        %v2518 = vunpack.c.h.b16 %v1094
        %v2519 = vunpack.c.l.b16 %v1095
        %v2520 = vunpack.c.h.b16 %v1095
        %v2521 = vunpack.c.l.b16 %v1096
        %v2522 = vunpack.c.h.b16 %v1096
        %v2523 = vunpack.c.l.b16 %v1097
        %v2524 = vunpack.c.h.b16 %v1097
        %v2525 = vunpack.c.l.b16 %v1098
        %v2526 = vunpack.c.h.b16 %v1098
        %v2527 = vunpack.c.l.b16 %v1099
        %v2528 = vunpack.c.h.b16 %v1099
        %v2529 = vunpack.c.l.b16 %v1100
        %v2530 = vunpack.c.h.b16 %v1100
        %v2531 = vunpack.c.l.b16 %v1101
        %v2532 = vunpack.c.h.b16 %v1101
        %v2533 = vunpack.c.l.b16 %v1102
        %v2534 = vunpack.c.h.b16 %v1102
        %v2535 = vunpack.c.l.b16 %v1103
        %v2536 = vunpack.c.h.b16 %v1103
        %v2537 = vunpack.c.l.b16 %v1104
        %v2538 = vunpack.c.h.b16 %v1104
        %v2539 = vunpack.c.l.b16 %v1105
        %v2540 = vunpack.c.h.b16 %v1105
        %v2541 = vunpack.c.l.b16 %v1106
        %v2542 = vunpack.c.h.b16 %v1106
        %v2543 = vunpack.c.l.b16 %v1107
        %v2544 = vunpack.c.h.b16 %v1107
        %v2545 = vunpack.c.l.b16 %v1108
        %v2546 = vunpack.c.h.b16 %v1108
        %v2547 = vunpack.c.l.b16 %v1109
        %v2548 = vunpack.c.h.b16 %v1109
        %v2549 = vunpack.c.l.b16 %v1110
        %v2550 = vunpack.c.h.b16 %v1110
        %v2551 = vunpack.c.l.b16 %v1111
        %v2552 = vunpack.c.h.b16 %v1111
        %v2553 = vunpack.c.l.b16 %v1112
        %v2554 = vunpack.c.h.b16 %v1112
        %v2555 = vunpack.c.l.b16 %v1113
        %v2556 = vunpack.c.h.b16 %v1113
        %v2557 = vunpack.c.l.b16 %v1114
        %v2558 = vunpack.c.h.b16 %v1114
        %v2559 = vunpack.c.l.b16 %v1115
        %v2560 = vunpack.c.h.b16 %v1115
        %v2561 = vunpack.c.l.b16 %v1116
        %v2562 = vunpack.c.h.b16 %v1116
        %v2563 = vunpack.c.l.b16 %v1117
        %v2564 = vunpack.c.h.b16 %v1117
        %v2565 = vunpack.c.l.b16 %v1118
        %v2566 = vunpack.c.h.b16 %v1118
        %v2567 = vunpack.c.l.b16 %v1119
        %v2568 = vunpack.c.h.b16 %v1119
        %v2569 = vunpack.c.l.b16 %v1120
        %v2570 = vunpack.c.h.b16 %v1120
        %v2571 = vunpack.c.l.b16 %v1121
        %v2572 = vunpack.c.h.b16 %v1121
        %v2573 = vunpack.c.l.b16 %v1122
        %v2574 = vunpack.c.h.b16 %v1122
        %v2575 = vunpack.c.l.b16 %v1123
        %v2576 = vunpack.c.h.b16 %v1123
        %v2577 = vunpack.c.l.b16 %v1124
        %v2578 = vunpack.c.h.b16 %v1124
        %v2579 = vunpack.c.l.b16 %v1125
        %v2580 = vunpack.c.h.b16 %v1125
        %v2581 = vunpack.c.l.b16 %v1126
        %v2582 = vunpack.c.h.b16 %v1126
        %v2583 = vunpack.c.l.b16 %v1127
        %v2584 = vunpack.c.h.b16 %v1127
        %v2585 = vunpack.c.l.b16 %v1128
        %v2586 = vunpack.c.h.b16 %v1128
        %v2587 = vunpack.c.l.b16 %v1129
        %v2588 = vunpack.c.h.b16 %v1129
        %v2589 = vunpack.c.l.b16 %v1130
        %v2590 = vunpack.c.h.b16 %v1130
        %v2591 = vunpack.c.l.b16 %v1131
        %v2592 = vunpack.c.h.b16 %v1131
        %v2593 = vunpack.c.l.b16 %v1132
        %v2594 = vunpack.c.h.b16 %v1132
        %v2595 = vunpack.c.l.b16 %v1133
        %v2596 = vunpack.c.h.b16 %v1133
        %v2597 = vunpack.c.l.b16 %v1134
        %v2598 = vunpack.c.h.b16 %v1134
        %v2599 = vunpack.c.l.b16 %v1135
        %v2600 = vunpack.c.h.b16 %v1135
        %v2601 = vunpack.c.l.b16 %v1136
        %v2602 = vunpack.c.h.b16 %v1136
        %v2603 = vunpack.c.l.b16 %v1137
        %v2604 = vunpack.c.h.b16 %v1137
        %v2605 = vunpack.c.l.b16 %v1138
        %v2606 = vunpack.c.h.b16 %v1138
        %v2607 = vunpack.c.l.b16 %v1139
        %v2608 = vunpack.c.h.b16 %v1139
        %v2609 = vunpack.c.l.b16 %v1140
        %v2610 = vunpack.c.h.b16 %v1140
        %v2611 = vunpack.c.l.b16 %v1141
        %v2612 = vunpack.c.h.b16 %v1141
        %v2613 = vunpack.c.l.b16 %v1142
        %v2614 = vunpack.c.h.b16 %v1142
        %v2615 = vunpack.c.l.b16 %v1143
        %v2616 = vunpack.c.h.b16 %v1143
        %v2617 = vunpack.c.l.b16 %v1144
        %v2618 = vunpack.c.h.b16 %v1144
        %v2619 = vunpack.c.l.b16 %v1145
        %v2620 = vunpack.c.h.b16 %v1145
        %v2621 = vunpack.c.l.b16 %v1146
        %v2622 = vunpack.c.h.b16 %v1146
        %v2623 = vunpack.c.l.b16 %v1147
        %v2624 = vunpack.c.h.b16 %v1147
        %v2625 = vunpack.c.l.b16 %v1148
        %v2626 = vunpack.c.h.b16 %v1148
        %v2627 = vunpack.c.l.b16 %v1149
        %v2628 = vunpack.c.h.b16 %v1149
        %v2629 = vunpack.c.l.b16 %v1150
        %v2630 = vunpack.c.h.b16 %v1150
        %v2631 = vunpack.c.l.b16 %v1151
        %v2632 = vunpack.c.h.b16 %v1151
        %v2633 = vunpack.c.l.b16 %v1152
        %v2634 = vunpack.c.h.b16 %v1152
        %v2635 = vunpack.c.l.b16 %v1153
        %v2636 = vunpack.c.h.b16 %v1153
        %v2637 = vunpack.c.l.b16 %v1154
        %v2638 = vunpack.c.h.b16 %v1154
        %v2639 = vunpack.c.l.b16 %v1155
        %v2640 = vunpack.c.h.b16 %v1155
        %v2641 = vunpack.c.l.b16 %v1156
        %v2642 = vunpack.c.h.b16 %v1156
        %v2643 = vunpack.c.l.b16 %v1157
        %v2644 = vunpack.c.h.b16 %v1157
        %v2645 = vunpack.c.l.b16 %v1158
        %v2646 = vunpack.c.h.b16 %v1158
        %v2647 = vunpack.c.l.b16 %v1159
        %v2648 = vunpack.c.h.b16 %v1159
        %v2649 = vunpack.c.l.b16 %v1160
        %v2650 = vunpack.c.h.b16 %v1160
        %v2651 = vunpack.c.l.b16 %v1161
        %v2652 = vunpack.c.h.b16 %v1161
        %v2653 = vunpack.c.l.b16 %v1162
        %v2654 = vunpack.c.h.b16 %v1162
        %v2655 = vunpack.c.l.b16 %v1163
        %v2656 = vunpack.c.h.b16 %v1163
        %v2657 = vunpack.c.l.b16 %v1164
        %v2658 = vunpack.c.h.b16 %v1164
        %v2659 = vunpack.c.l.b16 %v1165
        %v2660 = vunpack.c.h.b16 %v1165
        %v2661 = vunpack.c.l.b16 %v1166
        %v2662 = vunpack.c.h.b16 %v1166
        %v2663 = vunpack.c.l.b16 %v1167
        %v2664 = vunpack.c.h.b16 %v1167
        %v2665 = vunpack.c.l.b16 %v1168
        %v2666 = vunpack.c.h.b16 %v1168
        %v2667 = vunpack.c.l.b16 %v1169
        %v2668 = vunpack.c.h.b16 %v1169
        %v2669 = vunpack.c.l.b16 %v1170
        %v2670 = vunpack.c.h.b16 %v1170
        %v2671 = vunpack.c.l.b16 %v1171
        %v2672 = vunpack.c.h.b16 %v1171
        %v2673 = vunpack.c.l.b16 %v1172
        %v2674 = vunpack.c.h.b16 %v1172
        %v2675 = vunpack.c.l.b16 %v1173
        %v2676 = vunpack.c.h.b16 %v1173
        %v2677 = vunpack.c.l.b16 %v1174
        %v2678 = vunpack.c.h.b16 %v1174
        %v2679 = vunpack.c.l.b16 %v1175
        %v2680 = vunpack.c.h.b16 %v1175
        %v2681 = vunpack.c.l.b16 %v1176
        %v2682 = vunpack.c.h.b16 %v1176
        %v2683 = vunpack.c.l.b16 %v1177
        %v2684 = vunpack.c.h.b16 %v1177
        %v2685 = vunpack.c.l.b16 %v1178
        %v2686 = vunpack.c.h.b16 %v1178
        %v2687 = vunpack.c.l.b16 %v1179
        %v2688 = vunpack.c.h.b16 %v1179
        %v2689 = vunpack.c.l.b16 %v1180
        %v2690 = vunpack.c.h.b16 %v1180
        %v2691 = vunpack.c.l.b16 %v1181
        %v2692 = vunpack.c.h.b16 %v1181
        %v2693 = vunpack.c.l.b16 %v1182
        %v2694 = vunpack.c.h.b16 %v1182
        %v2695 = vunpack.c.l.b16 %v1183
        %v2696 = vunpack.c.h.b16 %v1183
        %v2697 = vunpack.c.l.b16 %v1184
        %v2698 = vunpack.c.h.b16 %v1184
        %v2699 = vunpack.c.l.b16 %v1185
        %v2700 = vunpack.c.h.b16 %v1185
        %v2701 = vunpack.c.l.b16 %v1186
        %v2702 = vunpack.c.h.b16 %v1186
        %v2703 = vunpack.c.l.b16 %v1187
        %v2704 = vunpack.c.h.b16 %v1187
        %v2705 = vunpack.c.l.b16 %v1188
        %v2706 = vunpack.c.h.b16 %v1188
        %v2707 = vunpack.c.l.b16 %v1189
        %v2708 = vunpack.c.h.b16 %v1189
        %v2709 = vunpack.c.l.b16 %v1190
        %v2710 = vunpack.c.h.b16 %v1190
        %v2711 = vunpack.c.l.b16 %v1191
        %v2712 = vunpack.c.h.b16 %v1191
        %v2713 = vunpack.c.l.b16 %v1192
        %v2714 = vunpack.c.h.b16 %v1192
        %v2715 = vunpack.c.l.b16 %v1193
        %v2716 = vunpack.c.h.b16 %v1193
        %v2717 = vunpack.c.l.b16 %v1194
        %v2718 = vunpack.c.h.b16 %v1194
        %v2719 = vunpack.c.l.b16 %v1195
        %v2720 = vunpack.c.h.b16 %v1195
        %v2721 = vunpack.c.l.b16 %v1196
        %v2722 = vunpack.c.h.b16 %v1196
        %v2723 = vunpack.c.l.b16 %v1197
        %v2724 = vunpack.c.h.b16 %v1197
        %v2725 = vunpack.c.l.b16 %v1198
        %v2726 = vunpack.c.h.b16 %v1198
        %v2727 = vunpack.c.l.b16 %v1199
        %v2728 = vunpack.c.h.b16 %v1199
        %v2729 = vunpack.c.l.b16 %v1200
        %v2730 = vunpack.c.h.b16 %v1200
        %v2731 = vunpack.c.l.b16 %v1201
        %v2732 = vunpack.c.h.b16 %v1201
        %v2733 = vunpack.c.l.b16 %v1202
        %v2734 = vunpack.c.h.b16 %v1202
        %v2735 = vunpack.c.l.b16 %v1203
        %v2736 = vunpack.c.h.b16 %v1203
        %v2737 = vunpack.c.l.b16 %v1204
        %v2738 = vunpack.c.h.b16 %v1204
        %v2739 = vunpack.c.l.b16 %v1205
        %v2740 = vunpack.c.h.b16 %v1205
        %v2741 = vunpack.c.l.b16 %v1206
        %v2742 = vunpack.c.h.b16 %v1206
        %v2743 = vunpack.c.l.b16 %v1207
        %v2744 = vunpack.c.h.b16 %v1207
        %v2745 = vunpack.c.l.b16 %v1208
        %v2746 = vunpack.c.h.b16 %v1208
        %v2747 = vunpack.c.l.b16 %v1209
        %v2748 = vunpack.c.h.b16 %v1209
        %v2749 = vunpack.c.l.b16 %v1210
        %v2750 = vunpack.c.h.b16 %v1210
        %v2751 = vunpack.c.l.b16 %v1211
        %v2752 = vunpack.c.h.b16 %v1211
        %v2753 = vunpack.c.l.b16 %v1212
        %v2754 = vunpack.c.h.b16 %v1212
        %v2755 = vunpack.c.l.b16 %v1213
        %v2756 = vunpack.c.h.b16 %v1213
        %v2757 = vunpack.c.l.b16 %v1214
        %v2758 = vunpack.c.h.b16 %v1214
        %v2759 = vunpack.c.l.b16 %v1215
        %v2760 = vunpack.c.h.b16 %v1215
        %v2761 = vunpack.c.l.b16 %v1216
        %v2762 = vunpack.c.h.b16 %v1216
        %v2763 = vunpack.c.l.b16 %v1217
        %v2764 = vunpack.c.h.b16 %v1217
        %v2765 = vunpack.c.l.b16 %v1218
        %v2766 = vunpack.c.h.b16 %v1218
        %v2767 = vunpack.c.l.b16 %v1219
        %v2768 = vunpack.c.h.b16 %v1219
        %v2769 = vunpack.c.l.b16 %v1220
        %v2770 = vunpack.c.h.b16 %v1220
        %v2771 = vunpack.c.l.b16 %v1221
        %v2772 = vunpack.c.h.b16 %v1221
        %v2773 = vunpack.c.l.b16 %v1222
        %v2774 = vunpack.c.h.b16 %v1222
        %v2775 = vunpack.c.l.b16 %v1223
        %v2776 = vunpack.c.h.b16 %v1223
        %v2777 = vunpack.c.l.b16 %v1224
        %v2778 = vunpack.c.h.b16 %v1224
        %v2779 = vunpack.c.l.b16 %v1225
        %v2780 = vunpack.c.h.b16 %v1225
        %v2781 = vunpack.c.l.b16 %v1226
        %v2782 = vunpack.c.h.b16 %v1226
        %v2783 = vunpack.c.l.b16 %v1227
        %v2784 = vunpack.c.h.b16 %v1227
        %v2785 = vunpack.c.l.b16 %v1228
        %v2786 = vunpack.c.h.b16 %v1228
        %v2787 = vunpack.c.l.b16 %v1229
        %v2788 = vunpack.c.h.b16 %v1229
        %v2789 = vunpack.c.l.b16 %v1230
        %v2790 = vunpack.c.h.b16 %v1230
        %v2791 = vunpack.c.l.b16 %v1231
        %v2792 = vunpack.c.h.b16 %v1231
        %v2793 = vunpack.c.l.b16 %v1232
        %v2794 = vunpack.c.h.b16 %v1232
        %v2795 = vunpack.c.l.b16 %v1233
        %v2796 = vunpack.c.h.b16 %v1233
        %v2797 = vunpack.c.l.b16 %v1234
        %v2798 = vunpack.c.h.b16 %v1234
        %v2799 = vunpack.c.l.b16 %v1235
        %v2800 = vunpack.c.h.b16 %v1235
        %v2801 = vunpack.c.l.b16 %v1236
        %v2802 = vunpack.c.h.b16 %v1236
        %v2803 = vunpack.c.l.b16 %v1237
        %v2804 = vunpack.c.h.b16 %v1237
        %v2805 = vunpack.c.l.b16 %v1238
        %v2806 = vunpack.c.h.b16 %v1238
        %v2807 = vunpack.c.l.b16 %v1239
        %v2808 = vunpack.c.h.b16 %v1239
        %v2809 = vunpack.c.l.b16 %v1240
        %v2810 = vunpack.c.h.b16 %v1240
        %v2811 = vunpack.c.l.b16 %v1241
        %v2812 = vunpack.c.h.b16 %v1241
        %v2813 = vunpack.c.l.b16 %v1242
        %v2814 = vunpack.c.h.b16 %v1242
        %v2815 = vunpack.c.l.b16 %v1243
        %v2816 = vunpack.c.h.b16 %v1243
        %v2817 = vunpack.c.l.b16 %v1244
        %v2818 = vunpack.c.h.b16 %v1244
        %v2819 = vunpack.c.l.b16 %v1245
        %v2820 = vunpack.c.h.b16 %v1245
        %v2821 = vunpack.c.l.b16 %v1246
        %v2822 = vunpack.c.h.b16 %v1246
        %v2823 = vunpack.c.l.b16 %v1247
        %v2824 = vunpack.c.h.b16 %v1247
        %v2825 = vunpack.c.l.b16 %v1248
        %v2826 = vunpack.c.h.b16 %v1248
        %v2827 = vunpack.c.l.b16 %v1249
        %v2828 = vunpack.c.h.b16 %v1249
        %v2829 = vunpack.c.l.b16 %v1250
        %v2830 = vunpack.c.h.b16 %v1250
        %v2831 = vunpack.c.l.b16 %v1251
        %v2832 = vunpack.c.h.b16 %v1251
        %v2833 = vunpack.c.l.b16 %v1252
        %v2834 = vunpack.c.h.b16 %v1252
        %v2835 = vunpack.c.l.b16 %v1253
        %v2836 = vunpack.c.h.b16 %v1253
        %v2837 = vunpack.c.l.b16 %v1254
        %v2838 = vunpack.c.h.b16 %v1254
        %v2839 = vunpack.c.l.b16 %v1255
        %v2840 = vunpack.c.h.b16 %v1255
        %v2841 = vunpack.c.l.b16 %v1256
        %v2842 = vunpack.c.h.b16 %v1256
        %v2843 = vunpack.c.l.b16 %v1257
        %v2844 = vunpack.c.h.b16 %v1257
        %v2845 = vunpack.c.l.b16 %v1258
        %v2846 = vunpack.c.h.b16 %v1258
        %v2847 = vunpack.c.l.b16 %v1259
        %v2848 = vunpack.c.h.b16 %v1259
        %v2849 = vunpack.c.l.b16 %v1260
        %v2850 = vunpack.c.h.b16 %v1260
        %v2851 = vunpack.c.l.b16 %v1261
        %v2852 = vunpack.c.h.b16 %v1261
        %v2853 = vunpack.c.l.b16 %v1262
        %v2854 = vunpack.c.h.b16 %v1262
        %v2855 = vunpack.c.l.b16 %v1263
        %v2856 = vunpack.c.h.b16 %v1263
        %v2857 = vunpack.c.l.b16 %v1264
        %v2858 = vunpack.c.h.b16 %v1264
        %v2859 = vunpack.c.l.b16 %v1265
        %v2860 = vunpack.c.h.b16 %v1265
        %v2861 = vunpack.c.l.b16 %v1266
        %v2862 = vunpack.c.h.b16 %v1266
        %v2863 = vunpack.c.l.b16 %v1267
        %v2864 = vunpack.c.h.b16 %v1267
        %v2865 = vunpack.c.l.b16 %v1268
        %v2866 = vunpack.c.h.b16 %v1268
        %v2867 = vunpack.c.l.b16 %v1269
        %v2868 = vunpack.c.h.b16 %v1269
        %v2869 = vunpack.c.l.b16 %v1270
        %v2870 = vunpack.c.h.b16 %v1270
        %v2871 = vunpack.c.l.b16 %v1271
        %v2872 = vunpack.c.h.b16 %v1271
        %v2873 = vunpack.c.l.b16 %v1272
        %v2874 = vunpack.c.h.b16 %v1272
        %v2875 = vunpack.c.l.b16 %v1273
        %v2876 = vunpack.c.h.b16 %v1273
        %v2877 = vunpack.c.l.b16 %v1274
        %v2878 = vunpack.c.h.b16 %v1274
        %v2879 = vunpack.c.l.b16 %v1275
        %v2880 = vunpack.c.h.b16 %v1275
        %v2881 = vunpack.c.l.b16 %v1276
        %v2882 = vunpack.c.h.b16 %v1276
        %v2883 = vunpack.c.l.b16 %v1277
        %v2884 = vunpack.c.h.b16 %v1277
        %v2885 = vunpack.c.l.b16 %v1278
        %v2886 = vunpack.c.h.b16 %v1278
        %v2887 = vunpack.c.l.b16 %v1279
        %v2888 = vunpack.c.h.b16 %v1279
        %v2889 = vunpack.c.l.b16 %v1280
        %v2890 = vunpack.c.h.b16 %v1280
        %v2891 = vunpack.c.l.b16 %v1281
        %v2892 = vunpack.c.h.b16 %v1281
        %v2893 = vunpack.c.l.b16 %v1282
        %v2894 = vunpack.c.h.b16 %v1282
        %v2895 = vunpack.c.l.b16 %v1283
        %v2896 = vunpack.c.h.b16 %v1283
        %v2897 = vunpack.c.l.b16 %v1284
        %v2898 = vunpack.c.h.b16 %v1284
        %v2899 = vpack.c.b16 %v1879, %v1875
        %v2900 = vpack.c.b16 %v1880, %v1876
        %v2901 = vpack.c.b16 %v1881, %v1877
        %v2902 = vpack.c.b16 %v1882, %v1878
        %v2903 = vpack.c.b16 %v1887, %v1883
        %v2904 = vpack.c.b16 %v1888, %v1884
        %v2905 = vpack.c.b16 %v1889, %v1885
        %v2906 = vpack.c.b16 %v1890, %v1886
        %v2907 = vpack.c.b16 %v1895, %v1891
        %v2908 = vpack.c.b16 %v1896, %v1892
        %v2909 = vpack.c.b16 %v1897, %v1893
        %v2910 = vpack.c.b16 %v1898, %v1894
        %v2911 = vpack.c.b16 %v1903, %v1899
        %v2912 = vpack.c.b16 %v1904, %v1900
        %v2913 = vpack.c.b16 %v1905, %v1901
        %v2914 = vpack.c.b16 %v1906, %v1902
        %v2915 = vpack.c.b16 %v1911, %v1907
        %v2916 = vpack.c.b16 %v1912, %v1908
        %v2917 = vpack.c.b16 %v1913, %v1909
        %v2918 = vpack.c.b16 %v1914, %v1910
        %v2919 = vpack.c.b16 %v1919, %v1915
        %v2920 = vpack.c.b16 %v1920, %v1916
        %v2921 = vpack.c.b16 %v1921, %v1917
        %v2922 = vpack.c.b16 %v1922, %v1918
        %v2923 = vpack.c.b16 %v1927, %v1923
        %v2924 = vpack.c.b16 %v1928, %v1924
        %v2925 = vpack.c.b16 %v1929, %v1925
        %v2926 = vpack.c.b16 %v1930, %v1926
        %v2927 = vpack.c.b16 %v1935, %v1931
        %v2928 = vpack.c.b16 %v1936, %v1932
        %v2929 = vpack.c.b16 %v1937, %v1933
        %v2930 = vpack.c.b16 %v1938, %v1934
        %v2931 = vpack.c.b16 %v1943, %v1939
        %v2932 = vpack.c.b16 %v1944, %v1940
        %v2933 = vpack.c.b16 %v1945, %v1941
        %v2934 = vpack.c.b16 %v1946, %v1942
        %v2935 = vpack.c.b16 %v1951, %v1947
        %v2936 = vpack.c.b16 %v1952, %v1948
        %v2937 = vpack.c.b16 %v1953, %v1949
        %v2938 = vpack.c.b16 %v1954, %v1950
        %v2939 = vpack.c.b16 %v1959, %v1955
        %v2940 = vpack.c.b16 %v1960, %v1956
        %v2941 = vpack.c.b16 %v1961, %v1957
        %v2942 = vpack.c.b16 %v1962, %v1958
        %v2943 = vpack.c.b16 %v1967, %v1963
        %v2944 = vpack.c.b16 %v1968, %v1964
        %v2945 = vpack.c.b16 %v1969, %v1965
        %v2946 = vpack.c.b16 %v1970, %v1966
        %v2947 = vpack.c.b16 %v1975, %v1971
        %v2948 = vpack.c.b16 %v1976, %v1972
        %v2949 = vpack.c.b16 %v1977, %v1973
        %v2950 = vpack.c.b16 %v1978, %v1974
        %v2951 = vpack.c.b16 %v1983, %v1979
        %v2952 = vpack.c.b16 %v1984, %v1980
        %v2953 = vpack.c.b16 %v1985, %v1981
        %v2954 = vpack.c.b16 %v1986, %v1982
        %v2955 = vpack.c.b16 %v1991, %v1987
        %v2956 = vpack.c.b16 %v1992, %v1988
        %v2957 = vpack.c.b16 %v1993, %v1989
        %v2958 = vpack.c.b16 %v1994, %v1990
        %v2959 = vpack.c.b16 %v1999, %v1995
        %v2960 = vpack.c.b16 %v2000, %v1996
        %v2961 = vpack.c.b16 %v2001, %v1997
        %v2962 = vpack.c.b16 %v2002, %v1998
        %v2963 = vpack.c.b16 %v2007, %v2003
        %v2964 = vpack.c.b16 %v2008, %v2004
        %v2965 = vpack.c.b16 %v2009, %v2005
        %v2966 = vpack.c.b16 %v2010, %v2006
        %v2967 = vpack.c.b16 %v2015, %v2011
        %v2968 = vpack.c.b16 %v2016, %v2012
        %v2969 = vpack.c.b16 %v2017, %v2013
        %v2970 = vpack.c.b16 %v2018, %v2014
        %v2971 = vpack.c.b16 %v2023, %v2019
        %v2972 = vpack.c.b16 %v2024, %v2020
        %v2973 = vpack.c.b16 %v2025, %v2021
        %v2974 = vpack.c.b16 %v2026, %v2022
        %v2975 = vpack.c.b16 %v2031, %v2027
        %v2976 = vpack.c.b16 %v2032, %v2028
        %v2977 = vpack.c.b16 %v2033, %v2029
        %v2978 = vpack.c.b16 %v2034, %v2030
        %v2979 = vpack.c.b16 %v2039, %v2035
        %v2980 = vpack.c.b16 %v2040, %v2036
        %v2981 = vpack.c.b16 %v2041, %v2037
        %v2982 = vpack.c.b16 %v2042, %v2038
        %v2983 = vpack.c.b16 %v2047, %v2043
        %v2984 = vpack.c.b16 %v2048, %v2044
        %v2985 = vpack.c.b16 %v2049, %v2045
        %v2986 = vpack.c.b16 %v2050, %v2046
        %v2987 = vpack.c.b16 %v2055, %v2051
        %v2988 = vpack.c.b16 %v2056, %v2052
        %v2989 = vpack.c.b16 %v2057, %v2053
        %v2990 = vpack.c.b16 %v2058, %v2054
        %v2991 = vpack.c.b16 %v2063, %v2059
        %v2992 = vpack.c.b16 %v2064, %v2060
        %v2993 = vpack.c.b16 %v2065, %v2061
        %v2994 = vpack.c.b16 %v2066, %v2062
        %v2995 = vpack.c.b16 %v2071, %v2067
        %v2996 = vpack.c.b16 %v2072, %v2068
        %v2997 = vpack.c.b16 %v2073, %v2069
        %v2998 = vpack.c.b16 %v2074, %v2070
        %v2999 = vpack.c.b16 %v2079, %v2075
        %v3000 = vpack.c.b16 %v2080, %v2076
        %v3001 = vpack.c.b16 %v2081, %v2077
        %v3002 = vpack.c.b16 %v2082, %v2078
        %v3003 = vpack.c.b16 %v2087, %v2083
        %v3004 = vpack.c.b16 %v2088, %v2084
        %v3005 = vpack.c.b16 %v2089, %v2085
        %v3006 = vpack.c.b16 %v2090, %v2086
        %v3007 = vpack.c.b16 %v2095, %v2091
        %v3008 = vpack.c.b16 %v2096, %v2092
        %v3009 = vpack.c.b16 %v2097, %v2093
        %v3010 = vpack.c.b16 %v2098, %v2094
        %v3011 = vpack.c.b16 %v2103, %v2099
        %v3012 = vpack.c.b16 %v2104, %v2100
        %v3013 = vpack.c.b16 %v2105, %v2101
        %v3014 = vpack.c.b16 %v2106, %v2102
        %v3015 = vpack.c.b16 %v2111, %v2107
        %v3016 = vpack.c.b16 %v2112, %v2108
        %v3017 = vpack.c.b16 %v2113, %v2109
        %v3018 = vpack.c.b16 %v2114, %v2110
        %v3019 = vpack.c.b16 %v2119, %v2115
        %v3020 = vpack.c.b16 %v2120, %v2116
        %v3021 = vpack.c.b16 %v2121, %v2117
        %v3022 = vpack.c.b16 %v2122, %v2118
        %v3023 = vpack.c.b16 %v2127, %v2123
        %v3024 = vpack.c.b16 %v2128, %v2124
        %v3025 = vpack.c.b16 %v2129, %v2125
        %v3026 = vpack.c.b16 %v2130, %v2126
        %v3027 = vpack.c.b16 %v2135, %v2131
        %v3028 = vpack.c.b16 %v2136, %v2132
        %v3029 = vpack.c.b16 %v2137, %v2133
        %v3030 = vpack.c.b16 %v2138, %v2134
        %v3031 = vpack.c.b16 %v2143, %v2139
        %v3032 = vpack.c.b16 %v2144, %v2140
        %v3033 = vpack.c.b16 %v2145, %v2141
        %v3034 = vpack.c.b16 %v2146, %v2142
        %v3035 = vpack.c.b16 %v2151, %v2147
        %v3036 = vpack.c.b16 %v2152, %v2148
        %v3037 = vpack.c.b16 %v2153, %v2149
        %v3038 = vpack.c.b16 %v2154, %v2150
        %v3039 = vpack.c.b16 %v2159, %v2155
        %v3040 = vpack.c.b16 %v2160, %v2156
        %v3041 = vpack.c.b16 %v2161, %v2157
        %v3042 = vpack.c.b16 %v2162, %v2158
        %v3043 = vpack.c.b16 %v2167, %v2163
        %v3044 = vpack.c.b16 %v2168, %v2164
        %v3045 = vpack.c.b16 %v2169, %v2165
        %v3046 = vpack.c.b16 %v2170, %v2166
        %v3047 = vpack.c.b16 %v2175, %v2171
        %v3048 = vpack.c.b16 %v2176, %v2172
        %v3049 = vpack.c.b16 %v2177, %v2173
        %v3050 = vpack.c.b16 %v2178, %v2174
        %v3051 = vpack.c.b16 %v2183, %v2179
        %v3052 = vpack.c.b16 %v2184, %v2180
        %v3053 = vpack.c.b16 %v2185, %v2181
        %v3054 = vpack.c.b16 %v2186, %v2182
        %v3055 = vpack.c.b16 %v2191, %v2187
        %v3056 = vpack.c.b16 %v2192, %v2188
        %v3057 = vpack.c.b16 %v2193, %v2189
        %v3058 = vpack.c.b16 %v2194, %v2190
        %v3059 = vpack.c.b16 %v2199, %v2195
        %v3060 = vpack.c.b16 %v2200, %v2196
        %v3061 = vpack.c.b16 %v2201, %v2197
        %v3062 = vpack.c.b16 %v2202, %v2198
        %v3063 = vpack.c.b16 %v2207, %v2203
        %v3064 = vpack.c.b16 %v2208, %v2204
        %v3065 = vpack.c.b16 %v2209, %v2205
        %v3066 = vpack.c.b16 %v2210, %v2206
        %v3067 = vpack.c.b16 %v2215, %v2211
        %v3068 = vpack.c.b16 %v2216, %v2212
        %v3069 = vpack.c.b16 %v2217, %v2213
        %v3070 = vpack.c.b16 %v2218, %v2214
        %v3071 = vpack.c.b16 %v2223, %v2219
        %v3072 = vpack.c.b16 %v2224, %v2220
        %v3073 = vpack.c.b16 %v2225, %v2221
        %v3074 = vpack.c.b16 %v2226, %v2222
        %v3075 = vpack.c.b16 %v2231, %v2227
        %v3076 = vpack.c.b16 %v2232, %v2228
        %v3077 = vpack.c.b16 %v2233, %v2229
        %v3078 = vpack.c.b16 %v2234, %v2230
        %v3079 = vpack.c.b16 %v2239, %v2235
        %v3080 = vpack.c.b16 %v2240, %v2236
        %v3081 = vpack.c.b16 %v2241, %v2237
        %v3082 = vpack.c.b16 %v2242, %v2238
        %v3083 = vpack.c.b16 %v2247, %v2243
        %v3084 = vpack.c.b16 %v2248, %v2244
        %v3085 = vpack.c.b16 %v2249, %v2245
        %v3086 = vpack.c.b16 %v2250, %v2246
        %v3087 = vpack.c.b16 %v2255, %v2251
        %v3088 = vpack.c.b16 %v2256, %v2252
        %v3089 = vpack.c.b16 %v2257, %v2253
        %v3090 = vpack.c.b16 %v2258, %v2254
        %v3091 = vpack.c.b16 %v2263, %v2259
        %v3092 = vpack.c.b16 %v2264, %v2260
        %v3093 = vpack.c.b16 %v2265, %v2261
        %v3094 = vpack.c.b16 %v2266, %v2262
        %v3095 = vpack.c.b16 %v2271, %v2267
        %v3096 = vpack.c.b16 %v2272, %v2268
        %v3097 = vpack.c.b16 %v2273, %v2269
        %v3098 = vpack.c.b16 %v2274, %v2270
        %v3099 = vpack.c.b16 %v2279, %v2275
        %v3100 = vpack.c.b16 %v2280, %v2276
        %v3101 = vpack.c.b16 %v2281, %v2277
        %v3102 = vpack.c.b16 %v2282, %v2278
        %v3103 = vpack.c.b16 %v2287, %v2283
        %v3104 = vpack.c.b16 %v2288, %v2284
        %v3105 = vpack.c.b16 %v2289, %v2285
        %v3106 = vpack.c.b16 %v2290, %v2286
        %v3107 = vpack.c.b16 %v2295, %v2291
        %v3108 = vpack.c.b16 %v2296, %v2292
        %v3109 = vpack.c.b16 %v2297, %v2293
        %v3110 = vpack.c.b16 %v2298, %v2294
        %v3111 = vpack.c.b16 %v2303, %v2299
        %v3112 = vpack.c.b16 %v2304, %v2300
        %v3113 = vpack.c.b16 %v2305, %v2301
        %v3114 = vpack.c.b16 %v2306, %v2302
        %v3115 = vpack.c.b16 %v2311, %v2307
        %v3116 = vpack.c.b16 %v2312, %v2308
        %v3117 = vpack.c.b16 %v2313, %v2309
        %v3118 = vpack.c.b16 %v2314, %v2310
        %v3119 = vpack.c.b16 %v2319, %v2315
        %v3120 = vpack.c.b16 %v2320, %v2316
        %v3121 = vpack.c.b16 %v2321, %v2317
        %v3122 = vpack.c.b16 %v2322, %v2318
        %v3123 = vpack.c.b16 %v2327, %v2323
        %v3124 = vpack.c.b16 %v2328, %v2324
        %v3125 = vpack.c.b16 %v2329, %v2325
        %v3126 = vpack.c.b16 %v2330, %v2326
        %v3127 = vpack.c.b16 %v2335, %v2331
        %v3128 = vpack.c.b16 %v2336, %v2332
        %v3129 = vpack.c.b16 %v2337, %v2333
        %v3130 = vpack.c.b16 %v2338, %v2334
        %v3131 = vpack.c.b16 %v2343, %v2339
        %v3132 = vpack.c.b16 %v2344, %v2340
        %v3133 = vpack.c.b16 %v2345, %v2341
        %v3134 = vpack.c.b16 %v2346, %v2342
        %v3135 = vpack.c.b16 %v2351, %v2347
        %v3136 = vpack.c.b16 %v2352, %v2348
        %v3137 = vpack.c.b16 %v2353, %v2349
        %v3138 = vpack.c.b16 %v2354, %v2350
        %v3139 = vpack.c.b16 %v2359, %v2355
        %v3140 = vpack.c.b16 %v2360, %v2356
        %v3141 = vpack.c.b16 %v2361, %v2357
        %v3142 = vpack.c.b16 %v2362, %v2358
        %v3143 = vpack.c.b16 %v2367, %v2363
        %v3144 = vpack.c.b16 %v2368, %v2364
        %v3145 = vpack.c.b16 %v2369, %v2365
        %v3146 = vpack.c.b16 %v2370, %v2366
        %v3147 = vpack.c.b16 %v2375, %v2371
        %v3148 = vpack.c.b16 %v2376, %v2372
        %v3149 = vpack.c.b16 %v2377, %v2373
        %v3150 = vpack.c.b16 %v2378, %v2374
        %v3151 = vpack.c.b16 %v2383, %v2379
        %v3152 = vpack.c.b16 %v2384, %v2380
        %v3153 = vpack.c.b16 %v2385, %v2381
        %v3154 = vpack.c.b16 %v2386, %v2382
        %v3155 = vpack.c.b16 %v2391, %v2387
        %v3156 = vpack.c.b16 %v2392, %v2388
        %v3157 = vpack.c.b16 %v2393, %v2389
        %v3158 = vpack.c.b16 %v2394, %v2390
        %v3159 = vpack.c.b16 %v2399, %v2395
        %v3160 = vpack.c.b16 %v2400, %v2396
        %v3161 = vpack.c.b16 %v2401, %v2397
        %v3162 = vpack.c.b16 %v2402, %v2398
        %v3163 = vpack.c.b16 %v2407, %v2403
        %v3164 = vpack.c.b16 %v2408, %v2404
        %v3165 = vpack.c.b16 %v2409, %v2405
        %v3166 = vpack.c.b16 %v2410, %v2406
        %v3167 = vpack.c.b16 %v2415, %v2411
        %v3168 = vpack.c.b16 %v2416, %v2412
        %v3169 = vpack.c.b16 %v2417, %v2413
        %v3170 = vpack.c.b16 %v2418, %v2414
        %v3171 = vpack.c.b16 %v2423, %v2419
        %v3172 = vpack.c.b16 %v2424, %v2420
        %v3173 = vpack.c.b16 %v2425, %v2421
        %v3174 = vpack.c.b16 %v2426, %v2422
        %v3175 = vpack.c.b16 %v2431, %v2427
        %v3176 = vpack.c.b16 %v2432, %v2428
        %v3177 = vpack.c.b16 %v2433, %v2429
        %v3178 = vpack.c.b16 %v2434, %v2430
        %v3179 = vpack.c.b16 %v2439, %v2435
        %v3180 = vpack.c.b16 %v2440, %v2436
        %v3181 = vpack.c.b16 %v2441, %v2437
        %v3182 = vpack.c.b16 %v2442, %v2438
        %v3183 = vpack.c.b16 %v2447, %v2443
        %v3184 = vpack.c.b16 %v2448, %v2444
        %v3185 = vpack.c.b16 %v2449, %v2445
        %v3186 = vpack.c.b16 %v2450, %v2446
        %v3187 = vpack.c.b16 %v2455, %v2451
        %v3188 = vpack.c.b16 %v2456, %v2452
        %v3189 = vpack.c.b16 %v2457, %v2453
        %v3190 = vpack.c.b16 %v2458, %v2454
        %v3191 = vpack.c.b16 %v2463, %v2459
        %v3192 = vpack.c.b16 %v2464, %v2460
        %v3193 = vpack.c.b16 %v2465, %v2461
        %v3194 = vpack.c.b16 %v2466, %v2462
        %v3195 = vpack.c.b16 %v2471, %v2467
        %v3196 = vpack.c.b16 %v2472, %v2468
        %v3197 = vpack.c.b16 %v2473, %v2469
        %v3198 = vpack.c.b16 %v2474, %v2470
        %v3199 = vpack.c.b16 %v2479, %v2475
        %v3200 = vpack.c.b16 %v2480, %v2476
        %v3201 = vpack.c.b16 %v2481, %v2477
        %v3202 = vpack.c.b16 %v2482, %v2478
        %v3203 = vpack.c.b16 %v2487, %v2483
        %v3204 = vpack.c.b16 %v2488, %v2484
        %v3205 = vpack.c.b16 %v2489, %v2485
        %v3206 = vpack.c.b16 %v2490, %v2486
        %v3207 = vpack.c.b16 %v2495, %v2491
        %v3208 = vpack.c.b16 %v2496, %v2492
        %v3209 = vpack.c.b16 %v2497, %v2493
        %v3210 = vpack.c.b16 %v2498, %v2494
        %v3211 = vpack.c.b16 %v2503, %v2499
        %v3212 = vpack.c.b16 %v2504, %v2500
        %v3213 = vpack.c.b16 %v2505, %v2501
        %v3214 = vpack.c.b16 %v2506, %v2502
        %v3215 = vpack.c.b16 %v2511, %v2507
        %v3216 = vpack.c.b16 %v2512, %v2508
        %v3217 = vpack.c.b16 %v2513, %v2509
        %v3218 = vpack.c.b16 %v2514, %v2510
        %v3219 = vpack.c.b16 %v2519, %v2515
        %v3220 = vpack.c.b16 %v2520, %v2516
        %v3221 = vpack.c.b16 %v2521, %v2517
        %v3222 = vpack.c.b16 %v2522, %v2518
        %v3223 = vpack.c.b16 %v2527, %v2523
        %v3224 = vpack.c.b16 %v2528, %v2524
        %v3225 = vpack.c.b16 %v2529, %v2525
        %v3226 = vpack.c.b16 %v2530, %v2526
        %v3227 = vpack.c.b16 %v2535, %v2531
        %v3228 = vpack.c.b16 %v2536, %v2532
        %v3229 = vpack.c.b16 %v2537, %v2533
        %v3230 = vpack.c.b16 %v2538, %v2534
        %v3231 = vpack.c.b16 %v2543, %v2539
        %v3232 = vpack.c.b16 %v2544, %v2540
        %v3233 = vpack.c.b16 %v2545, %v2541
        %v3234 = vpack.c.b16 %v2546, %v2542
        %v3235 = vpack.c.b16 %v2551, %v2547
        %v3236 = vpack.c.b16 %v2552, %v2548
        %v3237 = vpack.c.b16 %v2553, %v2549
        %v3238 = vpack.c.b16 %v2554, %v2550
        %v3239 = vpack.c.b16 %v2559, %v2555
        %v3240 = vpack.c.b16 %v2560, %v2556
        %v3241 = vpack.c.b16 %v2561, %v2557
        %v3242 = vpack.c.b16 %v2562, %v2558
        %v3243 = vpack.c.b16 %v2567, %v2563
        %v3244 = vpack.c.b16 %v2568, %v2564
        %v3245 = vpack.c.b16 %v2569, %v2565
        %v3246 = vpack.c.b16 %v2570, %v2566
        %v3247 = vpack.c.b16 %v2575, %v2571
        %v3248 = vpack.c.b16 %v2576, %v2572
        %v3249 = vpack.c.b16 %v2577, %v2573
        %v3250 = vpack.c.b16 %v2578, %v2574
        %v3251 = vpack.c.b16 %v2583, %v2579
        %v3252 = vpack.c.b16 %v2584, %v2580
        %v3253 = vpack.c.b16 %v2585, %v2581
        %v3254 = vpack.c.b16 %v2586, %v2582
        %v3255 = vpack.c.b16 %v2591, %v2587
        %v3256 = vpack.c.b16 %v2592, %v2588
        %v3257 = vpack.c.b16 %v2593, %v2589
        %v3258 = vpack.c.b16 %v2594, %v2590
        %v3259 = vpack.c.b16 %v2599, %v2595
        %v3260 = vpack.c.b16 %v2600, %v2596
        %v3261 = vpack.c.b16 %v2601, %v2597
        %v3262 = vpack.c.b16 %v2602, %v2598
        %v3263 = vpack.c.b16 %v2607, %v2603
        %v3264 = vpack.c.b16 %v2608, %v2604
        %v3265 = vpack.c.b16 %v2609, %v2605
        %v3266 = vpack.c.b16 %v2610, %v2606
        %v3267 = vpack.c.b16 %v2615, %v2611
        %v3268 = vpack.c.b16 %v2616, %v2612
        %v3269 = vpack.c.b16 %v2617, %v2613
        %v3270 = vpack.c.b16 %v2618, %v2614
        %v3271 = vpack.c.b16 %v2623, %v2619
        %v3272 = vpack.c.b16 %v2624, %v2620
        %v3273 = vpack.c.b16 %v2625, %v2621
        %v3274 = vpack.c.b16 %v2626, %v2622
        %v3275 = vpack.c.b16 %v2631, %v2627
        %v3276 = vpack.c.b16 %v2632, %v2628
        %v3277 = vpack.c.b16 %v2633, %v2629
        %v3278 = vpack.c.b16 %v2634, %v2630
        %v3279 = vpack.c.b16 %v2639, %v2635
        %v3280 = vpack.c.b16 %v2640, %v2636
        %v3281 = vpack.c.b16 %v2641, %v2637
        %v3282 = vpack.c.b16 %v2642, %v2638
        %v3283 = vpack.c.b16 %v2647, %v2643
        %v3284 = vpack.c.b16 %v2648, %v2644
        %v3285 = vpack.c.b16 %v2649, %v2645
        %v3286 = vpack.c.b16 %v2650, %v2646
        %v3287 = vpack.c.b16 %v2655, %v2651
        %v3288 = vpack.c.b16 %v2656, %v2652
        %v3289 = vpack.c.b16 %v2657, %v2653
        %v3290 = vpack.c.b16 %v2658, %v2654
        %v3291 = vpack.c.b16 %v2663, %v2659
        %v3292 = vpack.c.b16 %v2664, %v2660
        %v3293 = vpack.c.b16 %v2665, %v2661
        %v3294 = vpack.c.b16 %v2666, %v2662
        %v3295 = vpack.c.b16 %v2671, %v2667
        %v3296 = vpack.c.b16 %v2672, %v2668
        %v3297 = vpack.c.b16 %v2673, %v2669
        %v3298 = vpack.c.b16 %v2674, %v2670
        %v3299 = vpack.c.b16 %v2679, %v2675
        %v3300 = vpack.c.b16 %v2680, %v2676
        %v3301 = vpack.c.b16 %v2681, %v2677
        %v3302 = vpack.c.b16 %v2682, %v2678
        %v3303 = vpack.c.b16 %v2687, %v2683
        %v3304 = vpack.c.b16 %v2688, %v2684
        %v3305 = vpack.c.b16 %v2689, %v2685
        %v3306 = vpack.c.b16 %v2690, %v2686
        %v3307 = vpack.c.b16 %v2695, %v2691
        %v3308 = vpack.c.b16 %v2696, %v2692
        %v3309 = vpack.c.b16 %v2697, %v2693
        %v3310 = vpack.c.b16 %v2698, %v2694
        %v3311 = vpack.c.b16 %v2703, %v2699
        %v3312 = vpack.c.b16 %v2704, %v2700
        %v3313 = vpack.c.b16 %v2705, %v2701
        %v3314 = vpack.c.b16 %v2706, %v2702
        %v3315 = vpack.c.b16 %v2711, %v2707
        %v3316 = vpack.c.b16 %v2712, %v2708
        %v3317 = vpack.c.b16 %v2713, %v2709
        %v3318 = vpack.c.b16 %v2714, %v2710
        %v3319 = vpack.c.b16 %v2719, %v2715
        %v3320 = vpack.c.b16 %v2720, %v2716
        %v3321 = vpack.c.b16 %v2721, %v2717
        %v3322 = vpack.c.b16 %v2722, %v2718
        %v3323 = vpack.c.b16 %v2727, %v2723
        %v3324 = vpack.c.b16 %v2728, %v2724
        %v3325 = vpack.c.b16 %v2729, %v2725
        %v3326 = vpack.c.b16 %v2730, %v2726
        %v3327 = vpack.c.b16 %v2735, %v2731
        %v3328 = vpack.c.b16 %v2736, %v2732
        %v3329 = vpack.c.b16 %v2737, %v2733
        %v3330 = vpack.c.b16 %v2738, %v2734
        %v3331 = vpack.c.b16 %v2743, %v2739
        %v3332 = vpack.c.b16 %v2744, %v2740
        %v3333 = vpack.c.b16 %v2745, %v2741
        %v3334 = vpack.c.b16 %v2746, %v2742
        %v3335 = vpack.c.b16 %v2751, %v2747
        %v3336 = vpack.c.b16 %v2752, %v2748
        %v3337 = vpack.c.b16 %v2753, %v2749
        %v3338 = vpack.c.b16 %v2754, %v2750
        %v3339 = vpack.c.b16 %v2759, %v2755
        %v3340 = vpack.c.b16 %v2760, %v2756
        %v3341 = vpack.c.b16 %v2761, %v2757
        %v3342 = vpack.c.b16 %v2762, %v2758
        %v3343 = vpack.c.b16 %v2767, %v2763
        %v3344 = vpack.c.b16 %v2768, %v2764
        %v3345 = vpack.c.b16 %v2769, %v2765
        %v3346 = vpack.c.b16 %v2770, %v2766
        %v3347 = vpack.c.b16 %v2775, %v2771
        %v3348 = vpack.c.b16 %v2776, %v2772
        %v3349 = vpack.c.b16 %v2777, %v2773
        %v3350 = vpack.c.b16 %v2778, %v2774
        %v3351 = vpack.c.b16 %v2783, %v2779
        %v3352 = vpack.c.b16 %v2784, %v2780
        %v3353 = vpack.c.b16 %v2785, %v2781
        %v3354 = vpack.c.b16 %v2786, %v2782
        %v3355 = vpack.c.b16 %v2791, %v2787
        %v3356 = vpack.c.b16 %v2792, %v2788
        %v3357 = vpack.c.b16 %v2793, %v2789
        %v3358 = vpack.c.b16 %v2794, %v2790
        %v3359 = vpack.c.b16 %v2799, %v2795
        %v3360 = vpack.c.b16 %v2800, %v2796
        %v3361 = vpack.c.b16 %v2801, %v2797
        %v3362 = vpack.c.b16 %v2802, %v2798
        %v3363 = vpack.c.b16 %v2807, %v2803
        %v3364 = vpack.c.b16 %v2808, %v2804
        %v3365 = vpack.c.b16 %v2809, %v2805
        %v3366 = vpack.c.b16 %v2810, %v2806
        %v3367 = vpack.c.b16 %v2815, %v2811
        %v3368 = vpack.c.b16 %v2816, %v2812
        %v3369 = vpack.c.b16 %v2817, %v2813
        %v3370 = vpack.c.b16 %v2818, %v2814
        %v3371 = vpack.c.b16 %v2823, %v2819
        %v3372 = vpack.c.b16 %v2824, %v2820
        %v3373 = vpack.c.b16 %v2825, %v2821
        %v3374 = vpack.c.b16 %v2826, %v2822
        %v3375 = vpack.c.b16 %v2831, %v2827
        %v3376 = vpack.c.b16 %v2832, %v2828
        %v3377 = vpack.c.b16 %v2833, %v2829
        %v3378 = vpack.c.b16 %v2834, %v2830
        %v3379 = vpack.c.b16 %v2839, %v2835
        %v3380 = vpack.c.b16 %v2840, %v2836
        %v3381 = vpack.c.b16 %v2841, %v2837
        %v3382 = vpack.c.b16 %v2842, %v2838
        %v3383 = vpack.c.b16 %v2847, %v2843
        %v3384 = vpack.c.b16 %v2848, %v2844
        %v3385 = vpack.c.b16 %v2849, %v2845
        %v3386 = vpack.c.b16 %v2850, %v2846
        %v3387 = vpack.c.b16 %v2855, %v2851
        %v3388 = vpack.c.b16 %v2856, %v2852
        %v3389 = vpack.c.b16 %v2857, %v2853
        %v3390 = vpack.c.b16 %v2858, %v2854
        %v3391 = vpack.c.b16 %v2863, %v2859
        %v3392 = vpack.c.b16 %v2864, %v2860
        %v3393 = vpack.c.b16 %v2865, %v2861
        %v3394 = vpack.c.b16 %v2866, %v2862
        %v3395 = vpack.c.b16 %v2871, %v2867
        %v3396 = vpack.c.b16 %v2872, %v2868
        %v3397 = vpack.c.b16 %v2873, %v2869
        %v3398 = vpack.c.b16 %v2874, %v2870
        %v3399 = vpack.c.b16 %v2879, %v2875
        %v3400 = vpack.c.b16 %v2880, %v2876
        %v3401 = vpack.c.b16 %v2881, %v2877
        %v3402 = vpack.c.b16 %v2882, %v2878
        %v3403 = vpack.c.b16 %v2887, %v2883
        %v3404 = vpack.c.b16 %v2888, %v2884
        %v3405 = vpack.c.b16 %v2889, %v2885
        %v3406 = vpack.c.b16 %v2890, %v2886
        %v3407 = vpack.c.b16 %v2895, %v2891
        %v3408 = vpack.c.b16 %v2896, %v2892
        %v3409 = vpack.c.b16 %v2897, %v2893
        %v3410 = vpack.c.b16 %v2898, %v2894
        %3923 = vmatprep.subr.bf16.mxu0 %v2900
        %3924 = vmatpush1.bf16.msra.mxu0 %v2899
        %3925 = vmatprep.subr.bf16.mxu0 %v2904
        %3926 = vmatpush1.bf16.msra.mxu0 %v2903
        %3927 = vmatprep.subr.bf16.mxu0 %v2908
        %3928 = vmatpush1.bf16.msra.mxu0 %v2907
        %3929 = vmatprep.subr.bf16.mxu0 %v2912
        %3930 = vmatpush1.bf16.msra.mxu0 %v2911
        %3931 = vmatprep.subr.bf16.mxu0 %v2916
        %3932 = vmatpush1.bf16.msra.mxu0 %v2915
        %3933 = vmatprep.subr.bf16.mxu0 %v2920
        %3934 = vmatpush1.bf16.msra.mxu0 %v2919
        %3935 = vmatprep.subr.bf16.mxu0 %v2924
        %3936 = vmatpush1.bf16.msra.mxu0 %v2923
        %3937 = vmatprep.subr.bf16.mxu0 %v2928
        %3938 = vmatpush1.bf16.msra.mxu0 %v2927
        %3939 = vmatprep.subr.bf16.mxu0 %v2932
        %3940 = vmatpush1.bf16.msra.mxu0 %v2931
        %3941 = vmatprep.subr.bf16.mxu0 %v2936
        %3942 = vmatpush1.bf16.msra.mxu0 %v2935
        %3943 = vmatprep.subr.bf16.mxu0 %v2940
        %3944 = vmatpush1.bf16.msra.mxu0 %v2939
        %3945 = vmatprep.subr.bf16.mxu0 %v2944
        %3946 = vmatpush1.bf16.msra.mxu0 %v2943
        %3947 = vmatprep.subr.bf16.mxu0 %v2948
        %3948 = vmatpush1.bf16.msra.mxu0 %v2947
        %3949 = vmatprep.subr.bf16.mxu0 %v2952
        %3950 = vmatpush1.bf16.msra.mxu0 %v2951
        %3951 = vmatprep.subr.bf16.mxu0 %v2956
        %3952 = vmatpush1.bf16.msra.mxu0 %v2955
        %3953 = vmatprep.subr.bf16.mxu0 %v2960
        %3954 = vmatpush1.bf16.msra.mxu0 %v2959
        %3955 = vmatprep.mubr.bf16.mxu0 %v1332
        %3956 = vmatmul.mubr.bf16.gmra.mrb[0].mxu0 %v1331
        %v3957 = vpop.f32.mrb[0].mxu0
        %v3958 = vadd.f32 %v1290, %v3957
        %v3959 = vpop.f32.mrb[0].mxu0
        %v3960 = vadd.f32 %v1294, %v3959
        %v3961 = vpop.f32.mrb[0].mxu0
        %v3962 = vpop.f32.mrb[0].mxu0
        %3963 = vdwg.mxu0
        %3964 = vmatprep.subr.bf16.mxu0 %v2964
        %3965 = vmatpush1.bf16.msra.mxu0 %v2963
        %3966 = vmatprep.subr.bf16.mxu0 %v2968
        %3967 = vmatpush1.bf16.msra.mxu0 %v2967
        %3968 = vmatprep.subr.bf16.mxu0 %v2972
        %3969 = vmatpush1.bf16.msra.mxu0 %v2971
        %3970 = vmatprep.subr.bf16.mxu0 %v2976
        %3971 = vmatpush1.bf16.msra.mxu0 %v2975
        %3972 = vmatprep.subr.bf16.mxu0 %v2980
        %3973 = vmatpush1.bf16.msra.mxu0 %v2979
        %3974 = vmatprep.subr.bf16.mxu0 %v2984
        %3975 = vmatpush1.bf16.msra.mxu0 %v2983
        %3976 = vmatprep.subr.bf16.mxu0 %v2988
        %3977 = vmatpush1.bf16.msra.mxu0 %v2987
        %3978 = vmatprep.subr.bf16.mxu0 %v2992
        %3979 = vmatpush1.bf16.msra.mxu0 %v2991
        %3980 = vmatprep.subr.bf16.mxu0 %v2996
        %3981 = vmatpush1.bf16.msra.mxu0 %v2995
        %3982 = vmatprep.subr.bf16.mxu0 %v3000
        %3983 = vmatpush1.bf16.msra.mxu0 %v2999
        %3984 = vmatprep.subr.bf16.mxu0 %v3004
        %3985 = vmatpush1.bf16.msra.mxu0 %v3003
        %3986 = vmatprep.subr.bf16.mxu0 %v3008
        %3987 = vmatpush1.bf16.msra.mxu0 %v3007
        %3988 = vmatprep.subr.bf16.mxu0 %v3012
        %3989 = vmatpush1.bf16.msra.mxu0 %v3011
        %3990 = vmatprep.subr.bf16.mxu0 %v3016
        %3991 = vmatpush1.bf16.msra.mxu0 %v3015
        %3992 = vmatprep.subr.bf16.mxu0 %v3020
        %3993 = vmatpush1.bf16.msra.mxu0 %v3019
        %3994 = vmatprep.subr.bf16.mxu0 %v3024
        %3995 = vmatpush1.bf16.msra.mxu0 %v3023
        %3996 = vmatprep.mubr.bf16.mxu0 %v1334
        %3997 = vmatmul.mubr.bf16.gmra.mrb[0].mxu0 %v1333
        %v3998 = vpop.f32.mrb[0].mxu0
        %v3999 = vadd.f32 %v3958, %v3998
        %v4000 = vpop.f32.mrb[0].mxu0
        %v4001 = vadd.f32 %v3960, %v4000
        %v4002 = vpop.f32.mrb[0].mxu0
        %v4003 = vpop.f32.mrb[0].mxu0
        %4004 = vdwg.mxu0
        %4005 = vmatprep.subr.bf16.mxu0 %v3028
        %4006 = vmatpush1.bf16.msra.mxu0 %v3027
        %4007 = vmatprep.subr.bf16.mxu0 %v3032
        %4008 = vmatpush1.bf16.msra.mxu0 %v3031
        %4009 = vmatprep.subr.bf16.mxu0 %v3036
        %4010 = vmatpush1.bf16.msra.mxu0 %v3035
        %4011 = vmatprep.subr.bf16.mxu0 %v3040
        %4012 = vmatpush1.bf16.msra.mxu0 %v3039
        %4013 = vmatprep.subr.bf16.mxu0 %v3044
        %4014 = vmatpush1.bf16.msra.mxu0 %v3043
        %4015 = vmatprep.subr.bf16.mxu0 %v3048
        %4016 = vmatpush1.bf16.msra.mxu0 %v3047
        %4017 = vmatprep.subr.bf16.mxu0 %v3052
        %4018 = vmatpush1.bf16.msra.mxu0 %v3051
        %4019 = vmatprep.subr.bf16.mxu0 %v3056
        %4020 = vmatpush1.bf16.msra.mxu0 %v3055
        %4021 = vmatprep.subr.bf16.mxu0 %v3060
        %4022 = vmatpush1.bf16.msra.mxu0 %v3059
        %4023 = vmatprep.subr.bf16.mxu0 %v3064
        %4024 = vmatpush1.bf16.msra.mxu0 %v3063
        %4025 = vmatprep.subr.bf16.mxu0 %v3068
        %4026 = vmatpush1.bf16.msra.mxu0 %v3067
        %4027 = vmatprep.subr.bf16.mxu0 %v3072
        %4028 = vmatpush1.bf16.msra.mxu0 %v3071
        %4029 = vmatprep.subr.bf16.mxu0 %v3076
        %4030 = vmatpush1.bf16.msra.mxu0 %v3075
        %4031 = vmatprep.subr.bf16.mxu0 %v3080
        %4032 = vmatpush1.bf16.msra.mxu0 %v3079
        %4033 = vmatprep.subr.bf16.mxu0 %v3084
        %4034 = vmatpush1.bf16.msra.mxu0 %v3083
        %4035 = vmatprep.subr.bf16.mxu0 %v3088
        %4036 = vmatpush1.bf16.msra.mxu0 %v3087
        %4037 = vmatprep.mubr.bf16.mxu0 %v1336
        %4038 = vmatmul.mubr.bf16.gmra.mrb[0].mxu0 %v1335
        %v4039 = vpop.f32.mrb[0].mxu0
        %v4040 = vadd.f32 %v3999, %v4039
        %v4041 = vpop.f32.mrb[0].mxu0
        %v4042 = vadd.f32 %v4001, %v4041
        %v4043 = vpop.f32.mrb[0].mxu0
        %v4044 = vpop.f32.mrb[0].mxu0
        %4045 = vdwg.mxu0
        %4046 = vmatprep.subr.bf16.mxu0 %v3092
        %4047 = vmatpush1.bf16.msra.mxu0 %v3091
        %4048 = vmatprep.subr.bf16.mxu0 %v3096
        %4049 = vmatpush1.bf16.msra.mxu0 %v3095
        %4050 = vmatprep.subr.bf16.mxu0 %v3100
        %4051 = vmatpush1.bf16.msra.mxu0 %v3099
        %4052 = vmatprep.subr.bf16.mxu0 %v3104
        %4053 = vmatpush1.bf16.msra.mxu0 %v3103
        %4054 = vmatprep.subr.bf16.mxu0 %v3108
        %4055 = vmatpush1.bf16.msra.mxu0 %v3107
        %4056 = vmatprep.subr.bf16.mxu0 %v3112
        %4057 = vmatpush1.bf16.msra.mxu0 %v3111
        %4058 = vmatprep.subr.bf16.mxu0 %v3116
        %4059 = vmatpush1.bf16.msra.mxu0 %v3115
        %4060 = vmatprep.subr.bf16.mxu0 %v3120
        %4061 = vmatpush1.bf16.msra.mxu0 %v3119
        %4062 = vmatprep.subr.bf16.mxu0 %v3124
        %4063 = vmatpush1.bf16.msra.mxu0 %v3123
        %4064 = vmatprep.subr.bf16.mxu0 %v3128
        %4065 = vmatpush1.bf16.msra.mxu0 %v3127
        %4066 = vmatprep.subr.bf16.mxu0 %v3132
        %4067 = vmatpush1.bf16.msra.mxu0 %v3131
        %4068 = vmatprep.subr.bf16.mxu0 %v3136
        %4069 = vmatpush1.bf16.msra.mxu0 %v3135
        %4070 = vmatprep.subr.bf16.mxu0 %v3140
        %4071 = vmatpush1.bf16.msra.mxu0 %v3139
        %4072 = vmatprep.subr.bf16.mxu0 %v3144
        %4073 = vmatpush1.bf16.msra.mxu0 %v3143
        %4074 = vmatprep.subr.bf16.mxu0 %v3148
        %4075 = vmatpush1.bf16.msra.mxu0 %v3147
        %4076 = vmatprep.subr.bf16.mxu0 %v3152
        %4077 = vmatpush1.bf16.msra.mxu0 %v3151
        %4078 = vmatprep.mubr.bf16.mxu0 %v1338
        %4079 = vmatmul.mubr.bf16.gmra.mrb[0].mxu0 %v1337
        %v4080 = vpop.f32.mrb[0].mxu0
        %v4081 = vadd.f32 %v4040, %v4080
        %v4082 = vpop.f32.mrb[0].mxu0
        %v4083 = vadd.f32 %v4042, %v4082
        %v4084 = vpop.f32.mrb[0].mxu0
        %v4085 = vpop.f32.mrb[0].mxu0
        %4086 = vdwg.mxu0
        %4087 = vmatprep.subr.bf16.mxu0 %v3156
        %4088 = vmatpush1.bf16.msra.mxu0 %v3155
        %4089 = vmatprep.subr.bf16.mxu0 %v3160
        %4090 = vmatpush1.bf16.msra.mxu0 %v3159
        %4091 = vmatprep.subr.bf16.mxu0 %v3164
        %4092 = vmatpush1.bf16.msra.mxu0 %v3163
        %4093 = vmatprep.subr.bf16.mxu0 %v3168
        %4094 = vmatpush1.bf16.msra.mxu0 %v3167
        %4095 = vmatprep.subr.bf16.mxu0 %v3172
        %4096 = vmatpush1.bf16.msra.mxu0 %v3171
        %4097 = vmatprep.subr.bf16.mxu0 %v3176
        %4098 = vmatpush1.bf16.msra.mxu0 %v3175
        %4099 = vmatprep.subr.bf16.mxu0 %v3180
        %4100 = vmatpush1.bf16.msra.mxu0 %v3179
        %4101 = vmatprep.subr.bf16.mxu0 %v3184
        %4102 = vmatpush1.bf16.msra.mxu0 %v3183
        %4103 = vmatprep.subr.bf16.mxu0 %v3188
        %4104 = vmatpush1.bf16.msra.mxu0 %v3187
        %4105 = vmatprep.subr.bf16.mxu0 %v3192
        %4106 = vmatpush1.bf16.msra.mxu0 %v3191
        %4107 = vmatprep.subr.bf16.mxu0 %v3196
        %4108 = vmatpush1.bf16.msra.mxu0 %v3195
        %4109 = vmatprep.subr.bf16.mxu0 %v3200
        %4110 = vmatpush1.bf16.msra.mxu0 %v3199
        %4111 = vmatprep.subr.bf16.mxu0 %v3204
        %4112 = vmatpush1.bf16.msra.mxu0 %v3203
        %4113 = vmatprep.subr.bf16.mxu0 %v3208
        %4114 = vmatpush1.bf16.msra.mxu0 %v3207
        %4115 = vmatprep.subr.bf16.mxu0 %v3212
        %4116 = vmatpush1.bf16.msra.mxu0 %v3211
        %4117 = vmatprep.subr.bf16.mxu0 %v3216
        %4118 = vmatpush1.bf16.msra.mxu0 %v3215
        %4119 = vmatprep.mubr.bf16.mxu0 %v1340
        %4120 = vmatmul.mubr.bf16.gmra.mrb[0].mxu0 %v1339
        %v4121 = vpop.f32.mrb[0].mxu0
        %v4122 = vadd.f32 %v4081, %v4121
        %v4123 = vpop.f32.mrb[0].mxu0
        %v4124 = vadd.f32 %v4083, %v4123
        %v4125 = vpop.f32.mrb[0].mxu0
        %v4126 = vpop.f32.mrb[0].mxu0
        %4127 = vdwg.mxu0
        %4128 = vmatprep.subr.bf16.mxu0 %v3220
        %4129 = vmatpush1.bf16.msra.mxu0 %v3219
        %4130 = vmatprep.subr.bf16.mxu0 %v3224
        %4131 = vmatpush1.bf16.msra.mxu0 %v3223
        %4132 = vmatprep.subr.bf16.mxu0 %v3228
        %4133 = vmatpush1.bf16.msra.mxu0 %v3227
        %4134 = vmatprep.subr.bf16.mxu0 %v3232
        %4135 = vmatpush1.bf16.msra.mxu0 %v3231
        %4136 = vmatprep.subr.bf16.mxu0 %v3236
        %4137 = vmatpush1.bf16.msra.mxu0 %v3235
        %4138 = vmatprep.subr.bf16.mxu0 %v3240
        %4139 = vmatpush1.bf16.msra.mxu0 %v3239
        %4140 = vmatprep.subr.bf16.mxu0 %v3244
        %4141 = vmatpush1.bf16.msra.mxu0 %v3243
        %4142 = vmatprep.subr.bf16.mxu0 %v3248
        %4143 = vmatpush1.bf16.msra.mxu0 %v3247
        %4144 = vmatprep.subr.bf16.mxu0 %v3252
        %4145 = vmatpush1.bf16.msra.mxu0 %v3251
        %4146 = vmatprep.subr.bf16.mxu0 %v3256
        %4147 = vmatpush1.bf16.msra.mxu0 %v3255
        %4148 = vmatprep.subr.bf16.mxu0 %v3260
        %4149 = vmatpush1.bf16.msra.mxu0 %v3259
        %4150 = vmatprep.subr.bf16.mxu0 %v3264
        %4151 = vmatpush1.bf16.msra.mxu0 %v3263
        %4152 = vmatprep.subr.bf16.mxu0 %v3268
        %4153 = vmatpush1.bf16.msra.mxu0 %v3267
        %4154 = vmatprep.subr.bf16.mxu0 %v3272
        %4155 = vmatpush1.bf16.msra.mxu0 %v3271
        %4156 = vmatprep.subr.bf16.mxu0 %v3276
        %4157 = vmatpush1.bf16.msra.mxu0 %v3275
        %4158 = vmatprep.subr.bf16.mxu0 %v3280
        %4159 = vmatpush1.bf16.msra.mxu0 %v3279
        %4160 = vmatprep.mubr.bf16.mxu0 %v1342
        %4161 = vmatmul.mubr.bf16.gmra.mrb[0].mxu0 %v1341
        %v4162 = vpop.f32.mrb[0].mxu0
        %v4163 = vadd.f32 %v4122, %v4162
        %v4164 = vpop.f32.mrb[0].mxu0
        %v4165 = vadd.f32 %v4124, %v4164
        %v4166 = vpop.f32.mrb[0].mxu0
        %v4167 = vpop.f32.mrb[0].mxu0
        %4168 = vdwg.mxu0
        %4169 = vmatprep.subr.bf16.mxu0 %v3284
        %4170 = vmatpush1.bf16.msra.mxu0 %v3283
        %4171 = vmatprep.subr.bf16.mxu0 %v3288
        %4172 = vmatpush1.bf16.msra.mxu0 %v3287
        %4173 = vmatprep.subr.bf16.mxu0 %v3292
        %4174 = vmatpush1.bf16.msra.mxu0 %v3291
        %4175 = vmatprep.subr.bf16.mxu0 %v3296
        %4176 = vmatpush1.bf16.msra.mxu0 %v3295
        %4177 = vmatprep.subr.bf16.mxu0 %v3300
        %4178 = vmatpush1.bf16.msra.mxu0 %v3299
        %4179 = vmatprep.subr.bf16.mxu0 %v3304
        %4180 = vmatpush1.bf16.msra.mxu0 %v3303
        %4181 = vmatprep.subr.bf16.mxu0 %v3308
        %4182 = vmatpush1.bf16.msra.mxu0 %v3307
        %4183 = vmatprep.subr.bf16.mxu0 %v3312
        %4184 = vmatpush1.bf16.msra.mxu0 %v3311
        %4185 = vmatprep.subr.bf16.mxu0 %v3316
        %4186 = vmatpush1.bf16.msra.mxu0 %v3315
        %4187 = vmatprep.subr.bf16.mxu0 %v3320
        %4188 = vmatpush1.bf16.msra.mxu0 %v3319
        %4189 = vmatprep.subr.bf16.mxu0 %v3324
        %4190 = vmatpush1.bf16.msra.mxu0 %v3323
        %4191 = vmatprep.subr.bf16.mxu0 %v3328
        %4192 = vmatpush1.bf16.msra.mxu0 %v3327
        %4193 = vmatprep.subr.bf16.mxu0 %v3332
        %4194 = vmatpush1.bf16.msra.mxu0 %v3331
        %4195 = vmatprep.subr.bf16.mxu0 %v3336
        %4196 = vmatpush1.bf16.msra.mxu0 %v3335
        %4197 = vmatprep.subr.bf16.mxu0 %v3340
        %4198 = vmatpush1.bf16.msra.mxu0 %v3339
        %4199 = vmatprep.subr.bf16.mxu0 %v3344
        %4200 = vmatpush1.bf16.msra.mxu0 %v3343
        %4201 = vmatprep.mubr.bf16.mxu0 %v1344
        %4202 = vmatmul.mubr.bf16.gmra.mrb[0].mxu0 %v1343
        %v4203 = vpop.f32.mrb[0].mxu0
        %v4204 = vadd.f32 %v4163, %v4203
        %v4205 = vpop.f32.mrb[0].mxu0
        %v4206 = vadd.f32 %v4165, %v4205
        %v4207 = vpop.f32.mrb[0].mxu0
        %v4208 = vpop.f32.mrb[0].mxu0
        %4209 = vdwg.mxu0
        %4210 = vmatprep.subr.bf16.mxu0 %v3348
        %4211 = vmatpush1.bf16.msra.mxu0 %v3347
        %4212 = vmatprep.subr.bf16.mxu0 %v3352
        %4213 = vmatpush1.bf16.msra.mxu0 %v3351
        %4214 = vmatprep.subr.bf16.mxu0 %v3356
        %4215 = vmatpush1.bf16.msra.mxu0 %v3355
        %4216 = vmatprep.subr.bf16.mxu0 %v3360
        %4217 = vmatpush1.bf16.msra.mxu0 %v3359
        %4218 = vmatprep.subr.bf16.mxu0 %v3364
        %4219 = vmatpush1.bf16.msra.mxu0 %v3363
        %4220 = vmatprep.subr.bf16.mxu0 %v3368
        %4221 = vmatpush1.bf16.msra.mxu0 %v3367
        %4222 = vmatprep.subr.bf16.mxu0 %v3372
        %4223 = vmatpush1.bf16.msra.mxu0 %v3371
        %4224 = vmatprep.subr.bf16.mxu0 %v3376
        %4225 = vmatpush1.bf16.msra.mxu0 %v3375
        %4226 = vmatprep.subr.bf16.mxu0 %v3380
        %4227 = vmatpush1.bf16.msra.mxu0 %v3379
        %4228 = vmatprep.subr.bf16.mxu0 %v3384
        %4229 = vmatpush1.bf16.msra.mxu0 %v3383
        %4230 = vmatprep.subr.bf16.mxu0 %v3388
        %4231 = vmatpush1.bf16.msra.mxu0 %v3387
        %4232 = vmatprep.subr.bf16.mxu0 %v3392
        %4233 = vmatpush1.bf16.msra.mxu0 %v3391
        %4234 = vmatprep.subr.bf16.mxu0 %v3396
        %4235 = vmatpush1.bf16.msra.mxu0 %v3395
        %4236 = vmatprep.subr.bf16.mxu0 %v3400
        %4237 = vmatpush1.bf16.msra.mxu0 %v3399
        %4238 = vmatprep.subr.bf16.mxu0 %v3404
        %4239 = vmatpush1.bf16.msra.mxu0 %v3403
        %4240 = vmatprep.subr.bf16.mxu0 %v3408
        %4241 = vmatpush1.bf16.msra.mxu0 %v3407
        %4242 = vmatprep.mubr.bf16.mxu0 %v1346
        %4243 = vmatmul.mubr.bf16.gmra.mrb[0].mxu0 %v1345
        %v4244 = vpop.f32.mrb[0].mxu0
        %v4245 = vadd.f32 %v4204, %v4244
        %v4246 = vpop.f32.mrb[0].mxu0
        %v4247 = vadd.f32 %v4206, %v4246
        %v4248 = vpop.f32.mrb[0].mxu0
        %v4249 = vpop.f32.mrb[0].mxu0
        %4250 = vdwg.mxu0
        %4251 = vmatprep.subr.bf16.mxu0 %v2902
        %4252 = vmatpush1.bf16.msra.mxu0 %v2901
        %4253 = vmatprep.subr.bf16.mxu0 %v2906
        %4254 = vmatpush1.bf16.msra.mxu0 %v2905
        %4255 = vmatprep.subr.bf16.mxu0 %v2910
        %4256 = vmatpush1.bf16.msra.mxu0 %v2909
        %4257 = vmatprep.subr.bf16.mxu0 %v2914
        %4258 = vmatpush1.bf16.msra.mxu0 %v2913
        %4259 = vmatprep.subr.bf16.mxu0 %v2918
        %4260 = vmatpush1.bf16.msra.mxu0 %v2917
        %4261 = vmatprep.subr.bf16.mxu0 %v2922
        %4262 = vmatpush1.bf16.msra.mxu0 %v2921
        %4263 = vmatprep.subr.bf16.mxu0 %v2926
        %4264 = vmatpush1.bf16.msra.mxu0 %v2925
        %4265 = vmatprep.subr.bf16.mxu0 %v2930
        %4266 = vmatpush1.bf16.msra.mxu0 %v2929
        %4267 = vmatprep.subr.bf16.mxu0 %v2934
        %4268 = vmatpush1.bf16.msra.mxu0 %v2933
        %4269 = vmatprep.subr.bf16.mxu0 %v2938
        %4270 = vmatpush1.bf16.msra.mxu0 %v2937
        %4271 = vmatprep.subr.bf16.mxu0 %v2942
        %4272 = vmatpush1.bf16.msra.mxu0 %v2941
        %4273 = vmatprep.subr.bf16.mxu0 %v2946
        %4274 = vmatpush1.bf16.msra.mxu0 %v2945
        %4275 = vmatprep.subr.bf16.mxu0 %v2950
        %4276 = vmatpush1.bf16.msra.mxu0 %v2949
        %4277 = vmatprep.subr.bf16.mxu0 %v2954
        %4278 = vmatpush1.bf16.msra.mxu0 %v2953
        %4279 = vmatprep.subr.bf16.mxu0 %v2958
        %4280 = vmatpush1.bf16.msra.mxu0 %v2957
        %4281 = vmatprep.subr.bf16.mxu0 %v2962
        %4282 = vmatpush1.bf16.msra.mxu0 %v2961
        %4283 = vmatprep.mubr.bf16.mxu0 %v1332
        %4284 = vmatmul.mubr.bf16.gmra.mrb[0].mxu0 %v1331
        %v4285 = vpop.f32.mrb[0].mxu0
        %v4286 = vadd.f32 %v1298, %v4285
        %v4287 = vpop.f32.mrb[0].mxu0
        %v4288 = vadd.f32 %v1302, %v4287
        %v4289 = vpop.f32.mrb[0].mxu0
        %v4290 = vpop.f32.mrb[0].mxu0
        %4291 = vdwg.mxu0
        %4292 = vmatprep.subr.bf16.mxu0 %v2966
        %4293 = vmatpush1.bf16.msra.mxu0 %v2965
        %4294 = vmatprep.subr.bf16.mxu0 %v2970
        %4295 = vmatpush1.bf16.msra.mxu0 %v2969
        %4296 = vmatprep.subr.bf16.mxu0 %v2974
        %4297 = vmatpush1.bf16.msra.mxu0 %v2973
        %4298 = vmatprep.subr.bf16.mxu0 %v2978
        %4299 = vmatpush1.bf16.msra.mxu0 %v2977
        %4300 = vmatprep.subr.bf16.mxu0 %v2982
        %4301 = vmatpush1.bf16.msra.mxu0 %v2981
        %4302 = vmatprep.subr.bf16.mxu0 %v2986
        %4303 = vmatpush1.bf16.msra.mxu0 %v2985
        %4304 = vmatprep.subr.bf16.mxu0 %v2990
        %4305 = vmatpush1.bf16.msra.mxu0 %v2989
        %4306 = vmatprep.subr.bf16.mxu0 %v2994
        %4307 = vmatpush1.bf16.msra.mxu0 %v2993
        %4308 = vmatprep.subr.bf16.mxu0 %v2998
        %4309 = vmatpush1.bf16.msra.mxu0 %v2997
        %4310 = vmatprep.subr.bf16.mxu0 %v3002
        %4311 = vmatpush1.bf16.msra.mxu0 %v3001
        %4312 = vmatprep.subr.bf16.mxu0 %v3006
        %4313 = vmatpush1.bf16.msra.mxu0 %v3005
        %4314 = vmatprep.subr.bf16.mxu0 %v3010
        %4315 = vmatpush1.bf16.msra.mxu0 %v3009
        %4316 = vmatprep.subr.bf16.mxu0 %v3014
        %4317 = vmatpush1.bf16.msra.mxu0 %v3013
        %4318 = vmatprep.subr.bf16.mxu0 %v3018
        %4319 = vmatpush1.bf16.msra.mxu0 %v3017
        %4320 = vmatprep.subr.bf16.mxu0 %v3022
        %4321 = vmatpush1.bf16.msra.mxu0 %v3021
        %4322 = vmatprep.subr.bf16.mxu0 %v3026
        %4323 = vmatpush1.bf16.msra.mxu0 %v3025
        %4324 = vmatprep.mubr.bf16.mxu0 %v1334
        %4325 = vmatmul.mubr.bf16.gmra.mrb[0].mxu0 %v1333
        %v4326 = vpop.f32.mrb[0].mxu0
        %v4327 = vadd.f32 %v4286, %v4326
        %v4328 = vpop.f32.mrb[0].mxu0
        %v4329 = vadd.f32 %v4288, %v4328
        %v4330 = vpop.f32.mrb[0].mxu0
        %v4331 = vpop.f32.mrb[0].mxu0
        %4332 = vdwg.mxu0
        %4333 = vmatprep.subr.bf16.mxu0 %v3030
        %4334 = vmatpush1.bf16.msra.mxu0 %v3029
        %4335 = vmatprep.subr.bf16.mxu0 %v3034
        %4336 = vmatpush1.bf16.msra.mxu0 %v3033
        %4337 = vmatprep.subr.bf16.mxu0 %v3038
        %4338 = vmatpush1.bf16.msra.mxu0 %v3037
        %4339 = vmatprep.subr.bf16.mxu0 %v3042
        %4340 = vmatpush1.bf16.msra.mxu0 %v3041
        %4341 = vmatprep.subr.bf16.mxu0 %v3046
        %4342 = vmatpush1.bf16.msra.mxu0 %v3045
        %4343 = vmatprep.subr.bf16.mxu0 %v3050
        %4344 = vmatpush1.bf16.msra.mxu0 %v3049
        %4345 = vmatprep.subr.bf16.mxu0 %v3054
        %4346 = vmatpush1.bf16.msra.mxu0 %v3053
        %4347 = vmatprep.subr.bf16.mxu0 %v3058
        %4348 = vmatpush1.bf16.msra.mxu0 %v3057
        %4349 = vmatprep.subr.bf16.mxu0 %v3062
        %4350 = vmatpush1.bf16.msra.mxu0 %v3061
        %4351 = vmatprep.subr.bf16.mxu0 %v3066
        %4352 = vmatpush1.bf16.msra.mxu0 %v3065
        %4353 = vmatprep.subr.bf16.mxu0 %v3070
        %4354 = vmatpush1.bf16.msra.mxu0 %v3069
        %4355 = vmatprep.subr.bf16.mxu0 %v3074
        %4356 = vmatpush1.bf16.msra.mxu0 %v3073
        %4357 = vmatprep.subr.bf16.mxu0 %v3078
        %4358 = vmatpush1.bf16.msra.mxu0 %v3077
        %4359 = vmatprep.subr.bf16.mxu0 %v3082
        %4360 = vmatpush1.bf16.msra.mxu0 %v3081
        %4361 = vmatprep.subr.bf16.mxu0 %v3086
        %4362 = vmatpush1.bf16.msra.mxu0 %v3085
        %4363 = vmatprep.subr.bf16.mxu0 %v3090
        %4364 = vmatpush1.bf16.msra.mxu0 %v3089
        %4365 = vmatprep.mubr.bf16.mxu0 %v1336
        %4366 = vmatmul.mubr.bf16.gmra.mrb[0].mxu0 %v1335
        %v4367 = vpop.f32.mrb[0].mxu0
        %v4368 = vadd.f32 %v4327, %v4367
        %v4369 = vpop.f32.mrb[0].mxu0
        %v4370 = vadd.f32 %v4329, %v4369
        %v4371 = vpop.f32.mrb[0].mxu0
        %v4372 = vpop.f32.mrb[0].mxu0
        %4373 = vdwg.mxu0
        %4374 = vmatprep.subr.bf16.mxu0 %v3094
        %4375 = vmatpush1.bf16.msra.mxu0 %v3093
        %4376 = vmatprep.subr.bf16.mxu0 %v3098
        %4377 = vmatpush1.bf16.msra.mxu0 %v3097
        %4378 = vmatprep.subr.bf16.mxu0 %v3102
        %4379 = vmatpush1.bf16.msra.mxu0 %v3101
        %4380 = vmatprep.subr.bf16.mxu0 %v3106
        %4381 = vmatpush1.bf16.msra.mxu0 %v3105
        %4382 = vmatprep.subr.bf16.mxu0 %v3110
        %4383 = vmatpush1.bf16.msra.mxu0 %v3109
        %4384 = vmatprep.subr.bf16.mxu0 %v3114
        %4385 = vmatpush1.bf16.msra.mxu0 %v3113
        %4386 = vmatprep.subr.bf16.mxu0 %v3118
        %4387 = vmatpush1.bf16.msra.mxu0 %v3117
        %4388 = vmatprep.subr.bf16.mxu0 %v3122
        %4389 = vmatpush1.bf16.msra.mxu0 %v3121
        %4390 = vmatprep.subr.bf16.mxu0 %v3126
        %4391 = vmatpush1.bf16.msra.mxu0 %v3125
        %4392 = vmatprep.subr.bf16.mxu0 %v3130
        %4393 = vmatpush1.bf16.msra.mxu0 %v3129
        %4394 = vmatprep.subr.bf16.mxu0 %v3134
        %4395 = vmatpush1.bf16.msra.mxu0 %v3133
        %4396 = vmatprep.subr.bf16.mxu0 %v3138
        %4397 = vmatpush1.bf16.msra.mxu0 %v3137
        %4398 = vmatprep.subr.bf16.mxu0 %v3142
        %4399 = vmatpush1.bf16.msra.mxu0 %v3141
        %4400 = vmatprep.subr.bf16.mxu0 %v3146
        %4401 = vmatpush1.bf16.msra.mxu0 %v3145
        %4402 = vmatprep.subr.bf16.mxu0 %v3150
        %4403 = vmatpush1.bf16.msra.mxu0 %v3149
        %4404 = vmatprep.subr.bf16.mxu0 %v3154
        %4405 = vmatpush1.bf16.msra.mxu0 %v3153
        %4406 = vmatprep.mubr.bf16.mxu0 %v1338
        %4407 = vmatmul.mubr.bf16.gmra.mrb[0].mxu0 %v1337
        %v4408 = vpop.f32.mrb[0].mxu0
        %v4409 = vadd.f32 %v4368, %v4408
        %v4410 = vpop.f32.mrb[0].mxu0
        %v4411 = vadd.f32 %v4370, %v4410
        %v4412 = vpop.f32.mrb[0].mxu0
        %v4413 = vpop.f32.mrb[0].mxu0
        %4414 = vdwg.mxu0
        %4415 = vmatprep.subr.bf16.mxu0 %v3158
        %4416 = vmatpush1.bf16.msra.mxu0 %v3157
        %4417 = vmatprep.subr.bf16.mxu0 %v3162
        %4418 = vmatpush1.bf16.msra.mxu0 %v3161
        %4419 = vmatprep.subr.bf16.mxu0 %v3166
        %4420 = vmatpush1.bf16.msra.mxu0 %v3165
        %4421 = vmatprep.subr.bf16.mxu0 %v3170
        %4422 = vmatpush1.bf16.msra.mxu0 %v3169
        %4423 = vmatprep.subr.bf16.mxu0 %v3174
        %4424 = vmatpush1.bf16.msra.mxu0 %v3173
        %4425 = vmatprep.subr.bf16.mxu0 %v3178
        %4426 = vmatpush1.bf16.msra.mxu0 %v3177
        %4427 = vmatprep.subr.bf16.mxu0 %v3182
        %4428 = vmatpush1.bf16.msra.mxu0 %v3181
        %4429 = vmatprep.subr.bf16.mxu0 %v3186
        %4430 = vmatpush1.bf16.msra.mxu0 %v3185
        %4431 = vmatprep.subr.bf16.mxu0 %v3190
        %4432 = vmatpush1.bf16.msra.mxu0 %v3189
        %4433 = vmatprep.subr.bf16.mxu0 %v3194
        %4434 = vmatpush1.bf16.msra.mxu0 %v3193
        %4435 = vmatprep.subr.bf16.mxu0 %v3198
        %4436 = vmatpush1.bf16.msra.mxu0 %v3197
        %4437 = vmatprep.subr.bf16.mxu0 %v3202
        %4438 = vmatpush1.bf16.msra.mxu0 %v3201
        %4439 = vmatprep.subr.bf16.mxu0 %v3206
        %4440 = vmatpush1.bf16.msra.mxu0 %v3205
        %4441 = vmatprep.subr.bf16.mxu0 %v3210
        %4442 = vmatpush1.bf16.msra.mxu0 %v3209
        %4443 = vmatprep.subr.bf16.mxu0 %v3214
        %4444 = vmatpush1.bf16.msra.mxu0 %v3213
        %4445 = vmatprep.subr.bf16.mxu0 %v3218
        %4446 = vmatpush1.bf16.msra.mxu0 %v3217
        %4447 = vmatprep.mubr.bf16.mxu0 %v1340
        %4448 = vmatmul.mubr.bf16.gmra.mrb[0].mxu0 %v1339
        %v4449 = vpop.f32.mrb[0].mxu0
        %v4450 = vadd.f32 %v4409, %v4449
        %v4451 = vpop.f32.mrb[0].mxu0
        %v4452 = vadd.f32 %v4411, %v4451
        %v4453 = vpop.f32.mrb[0].mxu0
        %v4454 = vpop.f32.mrb[0].mxu0
        %4455 = vdwg.mxu0
        %4456 = vmatprep.subr.bf16.mxu0 %v3222
        %4457 = vmatpush1.bf16.msra.mxu0 %v3221
        %4458 = vmatprep.subr.bf16.mxu0 %v3226
        %4459 = vmatpush1.bf16.msra.mxu0 %v3225
        %4460 = vmatprep.subr.bf16.mxu0 %v3230
        %4461 = vmatpush1.bf16.msra.mxu0 %v3229
        %4462 = vmatprep.subr.bf16.mxu0 %v3234
        %4463 = vmatpush1.bf16.msra.mxu0 %v3233
        %4464 = vmatprep.subr.bf16.mxu0 %v3238
        %4465 = vmatpush1.bf16.msra.mxu0 %v3237
        %4466 = vmatprep.subr.bf16.mxu0 %v3242
        %4467 = vmatpush1.bf16.msra.mxu0 %v3241
        %4468 = vmatprep.subr.bf16.mxu0 %v3246
        %4469 = vmatpush1.bf16.msra.mxu0 %v3245
        %4470 = vmatprep.subr.bf16.mxu0 %v3250
        %4471 = vmatpush1.bf16.msra.mxu0 %v3249
        %4472 = vmatprep.subr.bf16.mxu0 %v3254
        %4473 = vmatpush1.bf16.msra.mxu0 %v3253
        %4474 = vmatprep.subr.bf16.mxu0 %v3258
        %4475 = vmatpush1.bf16.msra.mxu0 %v3257
        %4476 = vmatprep.subr.bf16.mxu0 %v3262
        %4477 = vmatpush1.bf16.msra.mxu0 %v3261
        %4478 = vmatprep.subr.bf16.mxu0 %v3266
        %4479 = vmatpush1.bf16.msra.mxu0 %v3265
        %4480 = vmatprep.subr.bf16.mxu0 %v3270
        %4481 = vmatpush1.bf16.msra.mxu0 %v3269
        %4482 = vmatprep.subr.bf16.mxu0 %v3274
        %4483 = vmatpush1.bf16.msra.mxu0 %v3273
        %4484 = vmatprep.subr.bf16.mxu0 %v3278
        %4485 = vmatpush1.bf16.msra.mxu0 %v3277
        %4486 = vmatprep.subr.bf16.mxu0 %v3282
        %4487 = vmatpush1.bf16.msra.mxu0 %v3281
        %4488 = vmatprep.mubr.bf16.mxu0 %v1342
        %4489 = vmatmul.mubr.bf16.gmra.mrb[0].mxu0 %v1341
        %v4490 = vpop.f32.mrb[0].mxu0
        %v4491 = vadd.f32 %v4450, %v4490
        %v4492 = vpop.f32.mrb[0].mxu0
        %v4493 = vadd.f32 %v4452, %v4492
        %v4494 = vpop.f32.mrb[0].mxu0
        %v4495 = vpop.f32.mrb[0].mxu0
        %4496 = vdwg.mxu0
        %4497 = vmatprep.subr.bf16.mxu0 %v3286
        %4498 = vmatpush1.bf16.msra.mxu0 %v3285
        %4499 = vmatprep.subr.bf16.mxu0 %v3290
        %4500 = vmatpush1.bf16.msra.mxu0 %v3289
        %4501 = vmatprep.subr.bf16.mxu0 %v3294
        %4502 = vmatpush1.bf16.msra.mxu0 %v3293
        %4503 = vmatprep.subr.bf16.mxu0 %v3298
        %4504 = vmatpush1.bf16.msra.mxu0 %v3297
        %4505 = vmatprep.subr.bf16.mxu0 %v3302
        %4506 = vmatpush1.bf16.msra.mxu0 %v3301
        %4507 = vmatprep.subr.bf16.mxu0 %v3306
        %4508 = vmatpush1.bf16.msra.mxu0 %v3305
        %4509 = vmatprep.subr.bf16.mxu0 %v3310
        %4510 = vmatpush1.bf16.msra.mxu0 %v3309
        %4511 = vmatprep.subr.bf16.mxu0 %v3314
        %4512 = vmatpush1.bf16.msra.mxu0 %v3313
        %4513 = vmatprep.subr.bf16.mxu0 %v3318
        %4514 = vmatpush1.bf16.msra.mxu0 %v3317
        %4515 = vmatprep.subr.bf16.mxu0 %v3322
        %4516 = vmatpush1.bf16.msra.mxu0 %v3321
        %4517 = vmatprep.subr.bf16.mxu0 %v3326
        %4518 = vmatpush1.bf16.msra.mxu0 %v3325
        %4519 = vmatprep.subr.bf16.mxu0 %v3330
        %4520 = vmatpush1.bf16.msra.mxu0 %v3329
        %4521 = vmatprep.subr.bf16.mxu0 %v3334
        %4522 = vmatpush1.bf16.msra.mxu0 %v3333
        %4523 = vmatprep.subr.bf16.mxu0 %v3338
        %4524 = vmatpush1.bf16.msra.mxu0 %v3337
        %4525 = vmatprep.subr.bf16.mxu0 %v3342
        %4526 = vmatpush1.bf16.msra.mxu0 %v3341
        %4527 = vmatprep.subr.bf16.mxu0 %v3346
        %4528 = vmatpush1.bf16.msra.mxu0 %v3345
        %4529 = vmatprep.mubr.bf16.mxu0 %v1344
        %4530 = vmatmul.mubr.bf16.gmra.mrb[0].mxu0 %v1343
        %v4531 = vpop.f32.mrb[0].mxu0
        %v4532 = vadd.f32 %v4491, %v4531
        %v4533 = vpop.f32.mrb[0].mxu0
        %v4534 = vadd.f32 %v4493, %v4533
        %v4535 = vpop.f32.mrb[0].mxu0
        %v4536 = vpop.f32.mrb[0].mxu0
        %4537 = vdwg.mxu0
        %4538 = vmatprep.subr.bf16.mxu0 %v3350
        %4539 = vmatpush1.bf16.msra.mxu0 %v3349
        %4540 = vmatprep.subr.bf16.mxu0 %v3354
        %4541 = vmatpush1.bf16.msra.mxu0 %v3353
        %4542 = vmatprep.subr.bf16.mxu0 %v3358
        %4543 = vmatpush1.bf16.msra.mxu0 %v3357
        %4544 = vmatprep.subr.bf16.mxu0 %v3362
        %4545 = vmatpush1.bf16.msra.mxu0 %v3361
        %4546 = vmatprep.subr.bf16.mxu0 %v3366
        %4547 = vmatpush1.bf16.msra.mxu0 %v3365
        %4548 = vmatprep.subr.bf16.mxu0 %v3370
        %4549 = vmatpush1.bf16.msra.mxu0 %v3369
        %4550 = vmatprep.subr.bf16.mxu0 %v3374
        %4551 = vmatpush1.bf16.msra.mxu0 %v3373
        %4552 = vmatprep.subr.bf16.mxu0 %v3378
        %4553 = vmatpush1.bf16.msra.mxu0 %v3377
        %4554 = vmatprep.subr.bf16.mxu0 %v3382
        %4555 = vmatpush1.bf16.msra.mxu0 %v3381
        %4556 = vmatprep.subr.bf16.mxu0 %v3386
        %4557 = vmatpush1.bf16.msra.mxu0 %v3385
        %4558 = vmatprep.subr.bf16.mxu0 %v3390
        %4559 = vmatpush1.bf16.msra.mxu0 %v3389
        %4560 = vmatprep.subr.bf16.mxu0 %v3394
        %4561 = vmatpush1.bf16.msra.mxu0 %v3393
        %4562 = vmatprep.subr.bf16.mxu0 %v3398
        %4563 = vmatpush1.bf16.msra.mxu0 %v3397
        %4564 = vmatprep.subr.bf16.mxu0 %v3402
        %4565 = vmatpush1.bf16.msra.mxu0 %v3401
        %4566 = vmatprep.subr.bf16.mxu0 %v3406
        %4567 = vmatpush1.bf16.msra.mxu0 %v3405
        %4568 = vmatprep.subr.bf16.mxu0 %v3410
        %4569 = vmatpush1.bf16.msra.mxu0 %v3409
        %4570 = vmatprep.mubr.bf16.mxu0 %v1346
        %4571 = vmatmul.mubr.bf16.gmra.mrb[0].mxu0 %v1345
        %v4572 = vpop.f32.mrb[0].mxu0
        %v4573 = vadd.f32 %v4532, %v4572
        %v4574 = vpop.f32.mrb[0].mxu0
        %v4575 = vadd.f32 %v4534, %v4574
        %v4576 = vpop.f32.mrb[0].mxu0
        %v4577 = vpop.f32.mrb[0].mxu0
        %4578 = vdwg.mxu0
        %v4579 = vmax.f32 %v4245, 0.0
        %v4580 = vmax.f32 %v4247, 0.0
        %v4581 = vmax.f32 %v4573, 0.0
        %v4582 = vmax.f32 %v4575, 0.0
        %v4583 = vld [vmem:[%s8] sm:$0xff]
        %v4584 = vpack.c.bf16 %v4579, %v4579
        %v4585 = vpack.c.bf16 %v4580, %v4580
        %v4586 = vpack.c.bf16 %v4581, %v4581
        %v4587 = vpack.c.bf16 %v4582, %v4582
        %v4588 = vld [vmem:[%s396] sm:$0xf]
        %v4589 = vld [vmem:[%s396 + $0x4] sm:$0xf]
        %v4590 = vld [vmem:[%s396 + $0x8] sm:$0xf]
        %v4591 = vld [vmem:[%s396 + $0xc] sm:$0xf]
        %v4592 = vld [vmem:[%s396 + $0x10] sm:$0xf]
        %v4593 = vld [vmem:[%s396 + $0x14] sm:$0xf]
        %v4594 = vld [vmem:[%s396 + $0x18] sm:$0xf]
        %v4595 = vld [vmem:[%s396 + $0x1c] sm:$0xf]
        %v4596 = vld [vmem:[%s396 + $0x20] sm:$0xf]
        %v4597 = vld [vmem:[%s396 + $0x24] sm:$0xf]
        %v4598 = vld [vmem:[%s396 + $0x28] sm:$0xf]
        %v4599 = vld [vmem:[%s396 + $0x2c] sm:$0xf]
        %v4600 = vld [vmem:[%s396 + $0x30] sm:$0xf]
        %v4601 = vld [vmem:[%s396 + $0x34] sm:$0xf]
        %v4602 = vld [vmem:[%s396 + $0x38] sm:$0xf]
        %v4603 = vld [vmem:[%s396 + $0x3c] sm:$0xf]
        %v4604 = vld [vmem:[%s396 + $0x40] sm:$0xf]
        %v4605 = vld [vmem:[%s396 + $0x44] sm:$0xf]
        %v4606 = vld [vmem:[%s396 + $0x48] sm:$0xf]
        %v4607 = vld [vmem:[%s396 + $0x4c] sm:$0xf]
        %v4608 = vld [vmem:[%s396 + $0x50] sm:$0xf]
        %v4609 = vld [vmem:[%s396 + $0x54] sm:$0xf]
        %v4610 = vld [vmem:[%s396 + $0x58] sm:$0xf]
        %v4611 = vld [vmem:[%s396 + $0x5c] sm:$0xf]
        %v4612 = vld [vmem:[%s396 + $0x60] sm:$0xf]
        %v4613 = vld [vmem:[%s396 + $0x64] sm:$0xf]
        %v4614 = vld [vmem:[%s396 + $0x68] sm:$0xf]
        %v4615 = vld [vmem:[%s396 + $0x6c] sm:$0xf]
        %v4616 = vld [vmem:[%s396 + $0x70] sm:$0xf]
        %v4617 = vld [vmem:[%s396 + $0x74] sm:$0xf]
        %v4618 = vld [vmem:[%s396 + $0x78] sm:$0xf]
        %v4619 = vld [vmem:[%s396 + $0x7c] sm:$0xf]
        %v4620 = vld [vmem:[%s396 + $0x80] sm:$0xf]
        %v4621 = vld [vmem:[%s396 + $0x84] sm:$0xf]
        %v4622 = vld [vmem:[%s396 + $0x88] sm:$0xf]
        %v4623 = vld [vmem:[%s396 + $0x8c] sm:$0xf]
        %v4624 = vld [vmem:[%s396 + $0x90] sm:$0xf]
        %v4625 = vld [vmem:[%s396 + $0x94] sm:$0xf]
        %v4626 = vld [vmem:[%s396 + $0x98] sm:$0xf]
        %v4627 = vld [vmem:[%s396 + $0x9c] sm:$0xf]
        %v4628 = vld [vmem:[%s396 + $0xa0] sm:$0xf]
        %v4629 = vld [vmem:[%s396 + $0xa4] sm:$0xf]
        %v4630 = vld [vmem:[%s396 + $0xa8] sm:$0xf]
        %v4631 = vld [vmem:[%s396 + $0xac] sm:$0xf]
        %v4632 = vld [vmem:[%s396 + $0xb0] sm:$0xf]
        %v4633 = vld [vmem:[%s396 + $0xb4] sm:$0xf]
        %v4634 = vld [vmem:[%s396 + $0xb8] sm:$0xf]
        %v4635 = vld [vmem:[%s396 + $0xbc] sm:$0xf]
        %v4636 = vld [vmem:[%s396 + $0xc0] sm:$0xf]
        %v4637 = vld [vmem:[%s396 + $0xc4] sm:$0xf]
        %v4638 = vld [vmem:[%s396 + $0xc8] sm:$0xf]
        %v4639 = vld [vmem:[%s396 + $0xcc] sm:$0xf]
        %v4640 = vld [vmem:[%s396 + $0xd0] sm:$0xf]
        %v4641 = vld [vmem:[%s396 + $0xd4] sm:$0xf]
        %v4642 = vld [vmem:[%s396 + $0xd8] sm:$0xf]
        %v4643 = vld [vmem:[%s396 + $0xdc] sm:$0xf]
        %v4644 = vld [vmem:[%s396 + $0xe0] sm:$0xf]
        %v4645 = vld [vmem:[%s396 + $0xe4] sm:$0xf]
        %v4646 = vld [vmem:[%s396 + $0xe8] sm:$0xf]
        %v4647 = vld [vmem:[%s396 + $0xec] sm:$0xf]
        %v4648 = vld [vmem:[%s396 + $0xf0] sm:$0xf]
        %v4649 = vld [vmem:[%s396 + $0xf4] sm:$0xf]
        %v4650 = vld [vmem:[%s396 + $0xf8] sm:$0xf]
        %v4651 = vld [vmem:[%s396 + $0xfc] sm:$0xf]
        %v4716 = vunpack.c.l.b16 %v4588
        %v4717 = vunpack.c.l.b16 %v4589
        %v4718 = vunpack.c.l.b16 %v4590
        %v4719 = vunpack.c.l.b16 %v4591
        %v4720 = vunpack.c.l.b16 %v4592
        %v4721 = vunpack.c.l.b16 %v4593
        %v4722 = vunpack.c.l.b16 %v4594
        %v4723 = vunpack.c.l.b16 %v4595
        %v4724 = vunpack.c.l.b16 %v4596
        %v4725 = vunpack.c.l.b16 %v4597
        %v4726 = vunpack.c.l.b16 %v4598
        %v4727 = vunpack.c.l.b16 %v4599
        %v4728 = vunpack.c.l.b16 %v4600
        %v4729 = vunpack.c.l.b16 %v4601
        %v4730 = vunpack.c.l.b16 %v4602
        %v4731 = vunpack.c.l.b16 %v4603
        %v4732 = vunpack.c.l.b16 %v4604
        %v4733 = vunpack.c.l.b16 %v4605
        %v4734 = vunpack.c.l.b16 %v4606
        %v4735 = vunpack.c.l.b16 %v4607
        %v4736 = vunpack.c.l.b16 %v4608
        %v4737 = vunpack.c.l.b16 %v4609
        %v4738 = vunpack.c.l.b16 %v4610
        %v4739 = vunpack.c.l.b16 %v4611
        %v4740 = vunpack.c.l.b16 %v4612
        %v4741 = vunpack.c.l.b16 %v4613
        %v4742 = vunpack.c.l.b16 %v4614
        %v4743 = vunpack.c.l.b16 %v4615
        %v4744 = vunpack.c.l.b16 %v4616
        %v4745 = vunpack.c.l.b16 %v4617
        %v4746 = vunpack.c.l.b16 %v4618
        %v4747 = vunpack.c.l.b16 %v4619
        %v4748 = vunpack.c.l.b16 %v4620
        %v4749 = vunpack.c.l.b16 %v4621
        %v4750 = vunpack.c.l.b16 %v4622
        %v4751 = vunpack.c.l.b16 %v4623
        %v4752 = vunpack.c.l.b16 %v4624
        %v4753 = vunpack.c.l.b16 %v4625
        %v4754 = vunpack.c.l.b16 %v4626
        %v4755 = vunpack.c.l.b16 %v4627
        %v4756 = vunpack.c.l.b16 %v4628
        %v4757 = vunpack.c.l.b16 %v4629
        %v4758 = vunpack.c.l.b16 %v4630
        %v4759 = vunpack.c.l.b16 %v4631
        %v4760 = vunpack.c.l.b16 %v4632
        %v4761 = vunpack.c.l.b16 %v4633
        %v4762 = vunpack.c.l.b16 %v4634
        %v4763 = vunpack.c.l.b16 %v4635
        %v4764 = vunpack.c.l.b16 %v4636
        %v4765 = vunpack.c.l.b16 %v4637
        %v4766 = vunpack.c.l.b16 %v4638
        %v4767 = vunpack.c.l.b16 %v4639
        %v4768 = vunpack.c.l.b16 %v4640
        %v4769 = vunpack.c.l.b16 %v4641
        %v4770 = vunpack.c.l.b16 %v4642
        %v4771 = vunpack.c.l.b16 %v4643
        %v4772 = vunpack.c.l.b16 %v4644
        %v4773 = vunpack.c.l.b16 %v4645
        %v4774 = vunpack.c.l.b16 %v4646
        %v4775 = vunpack.c.l.b16 %v4647
        %v4776 = vunpack.c.l.b16 %v4648
        %v4777 = vunpack.c.l.b16 %v4649
        %v4778 = vunpack.c.l.b16 %v4650
        %v4779 = vunpack.c.l.b16 %v4651
        %v4780 = vpack.c.b16 %v4717, %v4716
        %v4781 = vpack.c.b16 %v4719, %v4718
        %v4782 = vpack.c.b16 %v4721, %v4720
        %v4783 = vpack.c.b16 %v4723, %v4722
        %v4784 = vpack.c.b16 %v4725, %v4724
        %v4785 = vpack.c.b16 %v4727, %v4726
        %v4786 = vpack.c.b16 %v4729, %v4728
        %v4787 = vpack.c.b16 %v4731, %v4730
        %v4788 = vpack.c.b16 %v4733, %v4732
        %v4789 = vpack.c.b16 %v4735, %v4734
        %v4790 = vpack.c.b16 %v4737, %v4736
        %v4791 = vpack.c.b16 %v4739, %v4738
        %v4792 = vpack.c.b16 %v4741, %v4740
        %v4793 = vpack.c.b16 %v4743, %v4742
        %v4794 = vpack.c.b16 %v4745, %v4744
        %v4795 = vpack.c.b16 %v4747, %v4746
        %v4796 = vpack.c.b16 %v4749, %v4748
        %v4797 = vpack.c.b16 %v4751, %v4750
        %v4798 = vpack.c.b16 %v4753, %v4752
        %v4799 = vpack.c.b16 %v4755, %v4754
        %v4800 = vpack.c.b16 %v4757, %v4756
        %v4801 = vpack.c.b16 %v4759, %v4758
        %v4802 = vpack.c.b16 %v4761, %v4760
        %v4803 = vpack.c.b16 %v4763, %v4762
        %v4804 = vpack.c.b16 %v4765, %v4764
        %v4805 = vpack.c.b16 %v4767, %v4766
        %v4806 = vpack.c.b16 %v4769, %v4768
        %v4807 = vpack.c.b16 %v4771, %v4770
        %v4808 = vpack.c.b16 %v4773, %v4772
        %v4809 = vpack.c.b16 %v4775, %v4774
        %v4810 = vpack.c.b16 %v4777, %v4776
        %v4811 = vpack.c.b16 %v4779, %v4778
        %4844 = vmatprep.subr.bf16.mxu0 0
        %4845 = vmatpush1.bf16.msra.mxu0 %v4780
        %4846 = vmatprep.subr.bf16.mxu0 0
        %4847 = vmatpush1.bf16.msra.mxu0 %v4781
        %4848 = vmatprep.subr.bf16.mxu0 0
        %4849 = vmatpush1.bf16.msra.mxu0 %v4782
        %4850 = vmatprep.subr.bf16.mxu0 0
        %4851 = vmatpush1.bf16.msra.mxu0 %v4783
        %4852 = vmatprep.subr.bf16.mxu0 0
        %4853 = vmatpush1.bf16.msra.mxu0 %v4784
        %4854 = vmatprep.subr.bf16.mxu0 0
        %4855 = vmatpush1.bf16.msra.mxu0 %v4785
        %4856 = vmatprep.subr.bf16.mxu0 0
        %4857 = vmatpush1.bf16.msra.mxu0 %v4786
        %4858 = vmatprep.subr.bf16.mxu0 0
        %4859 = vmatpush1.bf16.msra.mxu0 %v4787
        %4860 = vmatprep.subr.bf16.mxu0 0
        %4861 = vmatpush1.bf16.msra.mxu0 %v4788
        %4862 = vmatprep.subr.bf16.mxu0 0
        %4863 = vmatpush1.bf16.msra.mxu0 %v4789
        %4864 = vmatprep.subr.bf16.mxu0 0
        %4865 = vmatpush1.bf16.msra.mxu0 %v4790
        %4866 = vmatprep.subr.bf16.mxu0 0
        %4867 = vmatpush1.bf16.msra.mxu0 %v4791
        %4868 = vmatprep.subr.bf16.mxu0 0
        %4869 = vmatpush1.bf16.msra.mxu0 %v4792
        %4870 = vmatprep.subr.bf16.mxu0 0
        %4871 = vmatpush1.bf16.msra.mxu0 %v4793
        %4872 = vmatprep.subr.bf16.mxu0 0
        %4873 = vmatpush1.bf16.msra.mxu0 %v4794
        %4874 = vmatprep.subr.bf16.mxu0 0
        %4875 = vmatpush1.bf16.msra.mxu0 %v4795
        %4876 = vmatprep.mubr.bf16.mxu0 %v4585
        %4877 = vmatmul.mubr.bf16.gmra.mrb[0].mxu0 %v4584
        %v4878 = vpop.f32.mrb[0].mxu0
        %v4879 = vadd.f32 0.0, %v4878
        %v4880 = vpop.f32.mrb[0].mxu0
        %v4881 = vpop.f32.mrb[0].mxu0
        %v4882 = vpop.f32.mrb[0].mxu0
        %4883 = vdwg.mxu0
        %4884 = vmatprep.subr.bf16.mxu0 0
        %4885 = vmatpush1.bf16.msra.mxu0 %v4796
        %4886 = vmatprep.subr.bf16.mxu0 0
        %4887 = vmatpush1.bf16.msra.mxu0 %v4797
        %4888 = vmatprep.subr.bf16.mxu0 0
        %4889 = vmatpush1.bf16.msra.mxu0 %v4798
        %4890 = vmatprep.subr.bf16.mxu0 0
        %4891 = vmatpush1.bf16.msra.mxu0 %v4799
        %4892 = vmatprep.subr.bf16.mxu0 0
        %4893 = vmatpush1.bf16.msra.mxu0 %v4800
        %4894 = vmatprep.subr.bf16.mxu0 0
        %4895 = vmatpush1.bf16.msra.mxu0 %v4801
        %4896 = vmatprep.subr.bf16.mxu0 0
        %4897 = vmatpush1.bf16.msra.mxu0 %v4802
        %4898 = vmatprep.subr.bf16.mxu0 0
        %4899 = vmatpush1.bf16.msra.mxu0 %v4803
        %4900 = vmatprep.subr.bf16.mxu0 0
        %4901 = vmatpush1.bf16.msra.mxu0 %v4804
        %4902 = vmatprep.subr.bf16.mxu0 0
        %4903 = vmatpush1.bf16.msra.mxu0 %v4805
        %4904 = vmatprep.subr.bf16.mxu0 0
        %4905 = vmatpush1.bf16.msra.mxu0 %v4806
        %4906 = vmatprep.subr.bf16.mxu0 0
        %4907 = vmatpush1.bf16.msra.mxu0 %v4807
        %4908 = vmatprep.subr.bf16.mxu0 0
        %4909 = vmatpush1.bf16.msra.mxu0 %v4808
        %4910 = vmatprep.subr.bf16.mxu0 0
        %4911 = vmatpush1.bf16.msra.mxu0 %v4809
        %4912 = vmatprep.subr.bf16.mxu0 0
        %4913 = vmatpush1.bf16.msra.mxu0 %v4810
        %4914 = vmatprep.subr.bf16.mxu0 0
        %4915 = vmatpush1.bf16.msra.mxu0 %v4811
        %4916 = vmatprep.mubr.bf16.mxu0 %v4587
        %4917 = vmatmul.mubr.bf16.gmra.mrb[0].mxu0 %v4586
        %v4918 = vpop.f32.mrb[0].mxu0
        %v4919 = vadd.f32 %v4879, %v4918
        %v4920 = vpop.f32.mrb[0].mxu0
        %v4921 = vpop.f32.mrb[0].mxu0
        %v4922 = vpop.f32.mrb[0].mxu0
        %4923 = vdwg.mxu0
        %v4924 = vadd.f32 %v4583, %v4919
        %4925 = vst [vmem:[%s8] sm:$0xff] %v4924
        %p4926 = scmp.eq.s32.totalorder %s27, 1
        // Predicated region
        $region85: #{inception_aux_forward.1} parent=51 // pred_check
          %p4927 = pneg %p4926
        $region86: #{inception_aux_forward.1} parent=51 // pred_check_branch
          %4929 = sbr.rel (%p4927) target = $region88
        $region87: #{inception_aux_forward.1} parent=51 // pred_region
          %v4930 = vld [vmem:[%s8] sm:$0xff]
          %v4931 = vld [vmem:[#allocation13] sm:$0x1]
          %v4933 = vlaneseq
          %v4934 = vshrl.u32 %v4933, 7
          %v4935 = vsub.s32 0, %v4934
          %v4936 = vrot.slane %v4931, %v4935
          %v4938 = vadd.f32 %v4930, %v4936
          %v4939 = vxor.u32 %v4938, 2147483648
          %v4940 = vmul.f32 %v4939, 1.442695
          %v4941 = vpow.pop %v4940
          %v4942 = vadd.f32 %v4941, 1.0
          %v4943 = vrcp.pop %v4942
          %v4944 = vmul.f32 1.0, %v4943
          %4945 = vst [vmem:[%s8] sm:$0xff] %v4944
        $region88: #{inception_aux_forward.1} parent=51 // pred_fallthru
          _
        // Predicated region
        $region89: #{inception_aux_forward.1} parent=51 // pred_check
          %p4946 = pneg %p223
        $region90: #{inception_aux_forward.1} parent=51 // pred_check_branch
          %4948 = sbr.rel (%p4946) target = $region92
        $region91: #{inception_aux_forward.1} parent=51 // pred_region
          _
        $region92: #{inception_aux_forward.1} parent=51 // pred_fallthru
          _
        // Predicated region
        $region93: #{inception_aux_forward.1} parent=51 // pred_check
          %p4949 = pneg %p223
        $region94: #{inception_aux_forward.1} parent=51 // pred_check_branch
          %4951 = sbr.rel (%p4949) target = $region96
        $region95: #{inception_aux_forward.1} parent=51 // pred_region
          _
        $region96: #{inception_aux_forward.1} parent=51 // pred_fallthru
          _
      $region52: #{inception_aux_forward.1} parent=5 // pred_fallthru
        _
      %p4952 = scmp.le.s32.totalorder 2, %s22
      // Predicated region
      $region97: #{inception_aux_forward.1} parent=5 // pred_check
        %p4953 = pneg %p4952
      $region98: #{inception_aux_forward.1} parent=5 // pred_check_branch
        %4955 = sbr.rel (%p4953) target = $region100
      $region99: #{inception_aux_forward.1} parent=5 // pred_region
        %s4956 = ssub.s32 %s22, 2
      $region100: #{inception_aux_forward.1} parent=5 // pred_fallthru
        _
    $region6: #{inception_aux_forward.1} parent=1 // loop_footer
      %s26 = sadd.s32 1, %s22
    $region7: #{inception_aux_forward.1} parent=1 // loop_footer_branch
      %21 = sbr.rel target = $region3
    $region8: #{inception_aux_forward.1} parent=1 // loop_exit
      _
    %4957 = vsyncpa [#allocation4], 1
    %s4958 = scalar_lea.sflag [#allocation4], 1
    %4959 = vsyncpa %s4958, 1
    %4960 = vsyncpa [#allocation6], 1
    %4961 = vsyncpa [#allocation9], 1
    %s4962 = scalar_lea.sflag [#allocation9], 1
    %4963 = vsyncpa %s4962, 1
    %4964 = vsyncpa [#allocation12], 1
    %s4965 = scalar_lea.sflag [#allocation12], 1
    %4966 = vsyncpa %s4965, 1

</llo_original>
